<compile_context>
chip_gen: v6e
topology: v6e:2x2x1
jax: 0.10.0
libtpu: 0.0.40
codegen_flags: <defaults>
</compile_context>

<pallas_src>
import functools
import math

import jax
import jax.numpy as jnp
from jax import lax
from jax.experimental import pallas as pl
from jax.experimental.pallas import tpu as pltpu


# ----------------------------- helpers -----------------------------

def _vmem_limit_bytes():
    # 3/4 of physical VMEM: ~96 MiB on v5e/v6e (128 MiB parts), ~48 MiB on v7x.
    try:
        return int(pltpu.get_tpu_info().vmem_capacity_bytes * 3 // 4)
    except Exception:
        return None


_VMEM_LIMIT = _vmem_limit_bytes()


def _cparams(dims):
    return pltpu.CompilerParams(
        dimension_semantics=dims, vmem_limit_bytes=_VMEM_LIMIT)


def _pick(n, candidates):
    """Largest candidate tile that evenly divides n; else the full extent.
    TODO(synk): pad non-divisible extents (e.g. vocab=32000, odd seq) to a tile
    multiple with a masked epilogue instead of falling back to full extent."""
    for c in candidates:
        if c <= n and n % c == 0:
            return c
    return n


_SUBLANE_TILES = (512, 256, 128, 64, 32, 16, 8)   # row (sublane) tiles
_RMS_SUBLANE_TILES = (256, 128, 64, 32, 16, 8)    # capped: (tm, K) stays small
_LANE_TILES = (1024, 512, 256, 128)               # column (lane) tiles
_K_TILES = (2048, 1024, 512, 256, 128)            # reduction tiles
_SEQ_TILES = (256, 128, 64, 32, 16)               # flash q/kv tiles (>=16 bf16)


# --------------- int8 per-output-channel weight quantization ---------------

def _quantize_int8(w):
    """Symmetric per-output-channel int8 quantization of an f32 [K, N] weight."""
    amax = jnp.maximum(jnp.max(jnp.abs(w), axis=0, keepdims=True), 1e-8)
    scale = (amax / 127.0).astype(jnp.float32)                 # [1, N]
    q = jnp.clip(jnp.round(w / scale), -127, 127).astype(jnp.int8)
    return q, scale


# --------------------- fused RMSNorm + matmul (K resident) ---------------------

def _rms_matmul_kernel(x_ref, g_ref, w_ref, s_ref, o_ref, xn_sc, *, act, eps):
    # Hoisted RMSNorm: computed once per M tile (ni == 0), reused for every
    # N tile via the xn_sc scratch (N grid axis is "arbitrary" so it carries).
    @pl.when(pl.program_id(1) == 0)
    def _norm():
        x = x_ref[...].astype(jnp.float32)
        inv = lax.rsqrt(jnp.mean(x * x, axis=-1, keepdims=True) + eps)
        xn_sc[...] = (x * inv * g_ref[...].astype(jnp.float32)).astype(jnp.bfloat16)

    # int8 weight values -> bf16 for the MXU; per-out-channel dequant scale is
    # folded into the f32 accumulator in the epilogue (commutes with the K-sum).
    w = w_ref[...].astype(jnp.float32).astype(jnp.bfloat16)
    acc = jnp.dot(xn_sc[...], w, preferred_element_type=jnp.float32)
    acc = acc * s_ref[...]
    if act == "gelu":
        acc = jax.nn.gelu(acc)
    o_ref[...] = acc.astype(o_ref.dtype)


def fused_rms_matmul(x, gamma, w_q, w_scale, act=None, out_dtype=None, eps=1e-6):
    """out = act((rmsnorm(x) * gamma) @ dequant(w_q, w_scale)), tiled over (M, N).

    K stays resident per block.
    TODO(synk): add a K-tiled variant (2-pass RMS stats + f32 acc scratch) for
    very large hidden sizes on v7x's 64 MiB VMEM.
    """
    M, K = x.shape
    K2, N = w_q.shape
    assert K == K2 and w_scale.shape == (1, N)
    out_dtype = out_dtype or x.dtype
    tm = _pick(M, _RMS_SUBLANE_TILES)
    tn = _pick(N, _LANE_TILES)
    return pl.pallas_call(
        functools.partial(_rms_matmul_kernel, act=act, eps=eps),
        out_shape=jax.ShapeDtypeStruct((M, N), out_dtype),
        grid=(M // tm, N // tn),
        in_specs=[
            pl.BlockSpec((tm, K), lambda mi, ni: (mi, 0)),     # x tile (re-DMA elided)
            pl.BlockSpec((1, K), lambda mi, ni: (0, 0)),       # gamma
            pl.BlockSpec((K, tn), lambda mi, ni: (0, ni)),     # int8 weight strip
            pl.BlockSpec((1, tn), lambda mi, ni: (0, ni)),     # dequant scales
        ],
        out_specs=pl.BlockSpec((tm, tn), lambda mi, ni: (mi, ni)),
        scratch_shapes=[pltpu.VMEM((tm, K), jnp.bfloat16)],    # normalized x
        compiler_params=_cparams(("parallel", "arbitrary")),
    )(x, gamma.reshape(1, K), w_q, w_scale)


# --------------------------- flash causal attention ---------------------------

def _flash_kernel(q_ref, k_ref, v_ref, o_ref, q_sc, m_sc, l_sc, acc_sc,
                  *, scale, tq, tk):
    qi = pl.program_id(2)
    ki = pl.program_id(3)
    nkv = pl.num_programs(3)

    @pl.when(ki == 0)
    def _init():
        # q * scale hoisted out of the kv loop: once per q tile.
        q_sc[...] = (q_ref[...].astype(jnp.float32) * scale).astype(jnp.bfloat16)
        m_sc[...] = jnp.full(m_sc.shape, -jnp.inf, m_sc.dtype)
        l_sc[...] = jnp.zeros(l_sc.shape, l_sc.dtype)
        acc_sc[...] = jnp.zeros(acc_sc.shape, acc_sc.dtype)

    def _scores():
        return lax.dot_general(q_sc[...], k_ref[...], (((1,), (1,)), ((), ())),
                               preferred_element_type=jnp.float32)

    def _accumulate(s):
        m_prev = m_sc[...]
        m_new = jnp.maximum(m_prev, jnp.max(s, axis=-1, keepdims=True))
        alpha = jnp.exp(m_prev - m_new)
        p = jnp.exp(s - m_new)
        l_sc[...] = alpha * l_sc[...] + jnp.sum(p, axis=-1, keepdims=True)
        acc_sc[...] = alpha * acc_sc[...] + jnp.dot(
            p.astype(jnp.bfloat16), v_ref[...], preferred_element_type=jnp.float32)
        m_sc[...] = m_new

    # tq == tk: tiles strictly below the diagonal need no mask, the diagonal
    # tile uses a local iota mask, and fully-future tiles are skipped (their
    # KV DMAs are elided by the clamped index_map in flash_attention).
    @pl.when(ki < qi)
    def _full_tile():
        _accumulate(_scores())

    @pl.when(ki == qi)
    def _diag_tile():
        s = _scores()
        row = lax.broadcasted_iota(jnp.int32, (tq, tk), 0)
        col = lax.broadcasted_iota(jnp.int32, (tq, tk), 1)
        _accumulate(jnp.where(col <= row, s, jnp.float32(-1e30)))

    @pl.when(ki == nkv - 1)
    def _finalize():
        o_ref[...] = (acc_sc[...] *
                      pl.reciprocal(l_sc[...], approx=True)).astype(o_ref.dtype)


def flash_attention(qkv, *, batch, seq, n_heads, head_dim):
    """qkv: [B*S, 3*H] lane-dense ([q heads | k heads | v heads], each head a
    D-wide column block) -> merged-head attention output [B*S, H]."""
    nh, D = n_heads, head_dim
    M = batch * seq
    H = nh * D
    tq = _pick(seq, _SEQ_TILES)      # >=16 rows keeps bf16 (16,128) tiles full
    tk = tq
    nq = seq // tq
    nk = seq // tk
    kern = functools.partial(_flash_kernel, scale=1.0 / math.sqrt(D), tq=tq, tk=tk)
    return pl.pallas_call(
        kern,
        out_shape=jax.ShapeDtypeStruct((M, H), qkv.dtype),
        grid=(nh, batch, nq, nk),
        in_specs=[
            pl.BlockSpec((tq, D), lambda h, b, qi, ki: (b * nq + qi, h)),
            # Clamp ki at the causal frontier (qi): consecutive identical block
            # indices let Pallas elide DMAs for fully-future KV tiles.
            pl.BlockSpec((tk, D),
                         lambda h, b, qi, ki: (b * nk + jnp.minimum(ki, qi), nh + h)),
            pl.BlockSpec((tk, D),
                         lambda h, b, qi, ki: (b * nk + jnp.minimum(ki, qi), 2 * nh + h)),
        ],
        # merged-head output: head h occupies the D-wide lane block h of [M, H]
        out_specs=pl.BlockSpec((tq, D), lambda h, b, qi, ki: (b * nq + qi, h)),
        scratch_shapes=[
            pltpu.VMEM((tq, D), jnp.bfloat16),  # scaled q
            pltpu.VMEM((tq, 1), jnp.float32),   # running max
            pltpu.VMEM((tq, 1), jnp.float32),   # running denom
            pltpu.VMEM((tq, D), jnp.float32),   # output accumulator
        ],
        compiler_params=_cparams(("parallel", "parallel", "parallel", "arbitrary")),
    )(qkv, qkv, qkv)


# ---------------- tiled matmul with fused residual add (K tiled) ----------------

def _matmul_res_kernel(x_ref, w_ref, s_ref, r_ref, o_ref, acc_ref):
    @pl.when(pl.program_id(2) == 0)
    def _init():
        acc_ref[...] = jnp.zeros_like(acc_ref)

    w = w_ref[...].astype(jnp.float32).astype(jnp.bfloat16)    # int8 -> bf16 values
    acc_ref[...] += jnp.dot(x_ref[...], w, preferred_element_type=jnp.float32)

    @pl.when(pl.program_id(2) == pl.num_programs(2) - 1)
    def _finalize():
        o_ref[...] = (acc_ref[...] * s_ref[...] +
                      r_ref[...].astype(jnp.float32)).astype(o_ref.dtype)


def matmul_residual(x, w_q, w_scale, res):
    """out = x @ dequant(w_q, w_scale) + res, tiled over (M, N, K), f32 acc."""
    M, K = x.shape
    K2, N = w_q.shape
    assert K == K2 and res.shape == (M, N) and w_scale.shape == (1, N)
    # Maximize tm: the weight matrix is re-streamed M/tm times during prefill.
    tm = _pick(M, _SUBLANE_TILES)
    tn = _pick(N, _LANE_TILES)
    tk = _pick(K, _K_TILES)
    return pl.pallas_call(
        _matmul_res_kernel,
        out_shape=jax.ShapeDtypeStruct((M, N), res.dtype),
        grid=(M // tm, N // tn, K // tk),
        in_specs=[
            pl.BlockSpec((tm, tk), lambda mi, ni, ki: (mi, ki)),
            pl.BlockSpec((tk, tn), lambda mi, ni, ki: (ki, ni)),
            pl.BlockSpec((1, tn), lambda mi, ni, ki: (0, ni)),
            pl.BlockSpec((tm, tn), lambda mi, ni, ki: (mi, ni)),
        ],
        out_specs=pl.BlockSpec((tm, tn), lambda mi, ni, ki: (mi, ni)),
        scratch_shapes=[pltpu.VMEM((tm, tn), jnp.float32)],
        compiler_params=_cparams(("parallel", "parallel", "arbitrary")),
    )(x, w_q, w_scale, res)


# ----------------------------- model wrapper -----------------------------

def init_params(key, *, vocab, hidden, n_layers, n_heads, mlp_dim):
    keys = jax.random.split(key, 2 + 4 * n_layers)

    def w(k, shape, std=0.02):
        return jax.random.normal(k, shape, jnp.float32) * std

    lm_q, lm_s = _quantize_int8(w(keys[1], (hidden, vocab)))
    params = {
        "embed": w(keys[0], (vocab, hidden)).astype(jnp.bfloat16),
        "lm_head": lm_q, "lm_head_scale": lm_s,
        "final_norm": jnp.ones((hidden,), jnp.bfloat16),
        "layers": [],
    }
    for l in range(n_layers):
        k = keys[2 + 4 * l: 2 + 4 * (l + 1)]
        # [Wq heads | Wk heads | Wv heads], each head a D-wide column block
        wqkv_q, wqkv_s = _quantize_int8(w(k[0], (hidden, 3 * hidden)))
        wo_q, wo_s = _quantize_int8(w(k[1], (hidden, hidden)))
        w1_q, w1_s = _quantize_int8(w(k[2], (hidden, mlp_dim)))
        w2_q, w2_s = _quantize_int8(w(k[3], (mlp_dim, hidden)))
        params["layers"].append({
            "attn_norm": jnp.ones((hidden,), jnp.bfloat16),
            "mlp_norm": jnp.ones((hidden,), jnp.bfloat16),
            "wqkv": wqkv_q, "wqkv_scale": wqkv_s,
            "wo": wo_q, "wo_scale": wo_s,
            "w1": w1_q, "w1_scale": w1_s,
            "w2": w2_q, "w2_scale": w2_s,
        })
    return params


def exl2_forward(params, input_ids, *, n_heads):
    """Causal LM forward: input_ids [B, S] int32 -> logits [B, S, vocab]."""
    # TODO(synk): RMSNorm eps / GELU (vs SwiGLU) may differ from the wrapped
    # Exl2 checkpoint's config; structure matches a generic decoder-only LM.
    B, S = input_ids.shape
    H = params["embed"].shape[1]
    D = H // n_heads

    # embedding lookup (glue, plain JAX)
    x = jnp.take(params["embed"], input_ids, axis=0).reshape(B * S, H)

    for layer in params["layers"]:
        # attention block: fused norm+QKV (lane-dense [M, 3H]) -> flash attn
        # -> out-proj (+residual)
        qkv = fused_rms_matmul(x, layer["attn_norm"],
                               layer["wqkv"], layer["wqkv_scale"])   # [B*S, 3H]
        attn = flash_attention(qkv, batch=B, seq=S,
                               n_heads=n_heads, head_dim=D)          # [B*S, H]
        x = matmul_residual(attn, layer["wo"], layer["wo_scale"], x)

        # MLP block: fused norm + up-proj + GELU -> down-proj (+residual)
        h = fused_rms_matmul(x, layer["mlp_norm"],
                             layer["w1"], layer["w1_scale"], act="gelu")
        x = matmul_residual(h, layer["w2"], layer["w2_scale"], x)

    # final norm fused into the (vocab-tiled, lane-dense) lm_head matmul
    logits = fused_rms_matmul(x, params["final_norm"],
                              params["lm_head"], params["lm_head_scale"])
    return logits.reshape(B, S, -1)


if __name__ == "__main__":
    # Small but TPU-tile-friendly shapes (head_dim = 128 lanes, seq mult of 16).
    B, S = 2, 16
    vocab, hidden, n_layers, n_heads, mlp_dim = 512, 256, 2, 2, 512

    key = jax.random.PRNGKey(0)
    pkey, ikey = jax.random.split(key)
    params = init_params(pkey, vocab=vocab, hidden=hidden, n_layers=n_layers,
                         n_heads=n_heads, mlp_dim=mlp_dim)
    input_ids = jax.random.randint(ikey, (B, S), 0, vocab, dtype=jnp.int32)

    fwd = jax.jit(functools.partial(exl2_forward, n_heads=n_heads))
    logits = jax.block_until_ready(fwd(params, input_ids))

    assert logits.shape == (B, S, vocab)
    assert bool(jnp.all(jnp.isfinite(logits.astype(jnp.float32))))
    print("KERNEL_OK")
</pallas_src>

<mosaic_0001>
module attributes {stable_mosaic.version = 11 : i64} {
  func.func @_rms_matmul_kernel(%arg0: i32, %arg1: i32, %arg2: memref<32x256xbf16, #tpu.memory_space<vmem>>, %arg3: memref<1x256xbf16, #tpu.memory_space<vmem>>, %arg4: memref<256x256xi8, #tpu.memory_space<vmem>>, %arg5: memref<1x256xf32, #tpu.memory_space<vmem>>, %arg6: memref<32x256xbf16, #tpu.memory_space<vmem>>, %arg7: memref<32x256xbf16, #tpu.memory_space<vmem>>) attributes {dimension_semantics = [#tpu.dimension_semantics<parallel>, #tpu.dimension_semantics<arbitrary>], iteration_bounds = array<i64: 1, 3>, scalar_prefetch = 0 : i64, scratch_operands = 1 : i64, tpu.core_type = #tpu.core_type<tc>, window_params = [{transform_indices = @transform_0, window_bounds = array<i64: 32, 256>}, {pipeline_mode = #tpu.pipeline_mode<synchronous>, transform_indices = @transform_1, window_bounds = array<i64: 1, 256>}, {transform_indices = @transform_2, window_bounds = array<i64: 256, 256>}, {transform_indices = @transform_3, window_bounds = array<i64: 1, 256>}, {transform_indices = @transform_4, window_bounds = array<i64: 32, 256>}]} {
    %c0_i32 = arith.constant 0 : i32
    %0 = arith.cmpi eq, %arg1, %c0_i32 : i32
    %1 = arith.extui %0 : i1 to i32
    %c0_i32_0 = arith.constant 0 : i32
    %2 = arith.cmpi ne, %1, %c0_i32_0 : i32
    scf.if %2 {
      %c0_8 = arith.constant 0 : index
      %c0_9 = arith.constant 0 : index
      %13 = vector.load %arg2[%c0_8, %c0_9] : memref<32x256xbf16, #tpu.memory_space<vmem>>, vector<32x256xbf16>
      %14 = arith.extf %13 : vector<32x256xbf16> to vector<32x256xf32>
      %15 = arith.mulf %14, %14 : vector<32x256xf32>
      %cst_10 = arith.constant dense<0.000000e+00> : vector<32xf32>
      %16 = vector.multi_reduction <add>, %15, %cst_10 [1] : vector<32x256xf32> to vector<32xf32>
      %17 = vector.shape_cast %16 : vector<32xf32> to vector<32x1xf32>
      %cst_11 = arith.constant 2.560000e+02 : f32
      %18 = vector.broadcast %cst_11 : f32 to vector<32x1xf32>
      %19 = arith.divf %17, %18 : vector<32x1xf32>
      %cst_12 = arith.constant 9.99999997E-7 : f32
      %20 = vector.broadcast %cst_12 : f32 to vector<32x1xf32>
      %21 = arith.addf %19, %20 : vector<32x1xf32>
      %22 = math.rsqrt %21 : vector<32x1xf32>
      %23 = vector.broadcast %22 : vector<32x1xf32> to vector<32x256xf32>
      %24 = arith.mulf %14, %23 : vector<32x256xf32>
      %c0_13 = arith.constant 0 : index
      %c0_14 = arith.constant 0 : index
      %25 = vector.load %arg3[%c0_13, %c0_14] : memref<1x256xbf16, #tpu.memory_space<vmem>>, vector<1x256xbf16>
      %26 = arith.extf %25 : vector<1x256xbf16> to vector<1x256xf32>
      %27 = vector.broadcast %26 : vector<1x256xf32> to vector<32x256xf32>
      %28 = arith.mulf %24, %27 : vector<32x256xf32>
      %29 = arith.truncf %28 : vector<32x256xf32> to vector<32x256xbf16>
      %c0_15 = arith.constant 0 : index
      %c0_16 = arith.constant 0 : index
      %30 = vector.load %arg7[%c0_15, %c0_16] : memref<32x256xbf16, #tpu.memory_space<vmem>>, vector<32x256xbf16>
      tpu.vector_store %arg7[%c0_15, %c0_16], %29 {strides = array<i32>} : memref<32x256xbf16, #tpu.memory_space<vmem>>, vector<32x256xbf16>,
    } else {
    }
    %c0 = arith.constant 0 : index
    %c0_1 = arith.constant 0 : index
    %3 = vector.load %arg4[%c0, %c0_1] : memref<256x256xi8, #tpu.memory_space<vmem>>, vector<256x256xi8>
    %4 = arith.sitofp %3 : vector<256x256xi8> to vector<256x256xf32>
    %5 = arith.truncf %4 : vector<256x256xf32> to vector<256x256xbf16>
    %c0_2 = arith.constant 0 : index
    %c0_3 = arith.constant 0 : index
    %6 = vector.load %arg7[%c0_2, %c0_3] : memref<32x256xbf16, #tpu.memory_space<vmem>>, vector<32x256xbf16>
    %cst = arith.constant dense<0.000000e+00> : vector<32x256xf32>
    %7 = tpu.matmul %6, %5, %cst {dimension_numbers = #tpu.dot_dimension_numbers<[1], [0], [0], [1], [0, 0, 1, 1], [], []>} : vector<32x256xbf16>, vector<256x256xbf16>, vector<32x256xf32> -> vector<32x256xf32>
    %c0_4 = arith.constant 0 : index
    %c0_5 = arith.constant 0 : index
    %8 = vector.load %arg5[%c0_4, %c0_5] : memref<1x256xf32, #tpu.memory_space<vmem>>, vector<1x256xf32>
    %9 = vector.broadcast %8 : vector<1x256xf32> to vector<32x256xf32>
    %10 = arith.mulf %7, %9 : vector<32x256xf32>
    %11 = arith.truncf %10 : vector<32x256xf32> to vector<32x256xbf16>
    %c0_6 = arith.constant 0 : index
    %c0_7 = arith.constant 0 : index
    %12 = vector.load %arg6[%c0_6, %c0_7] : memref<32x256xbf16, #tpu.memory_space<vmem>>, vector<32x256xbf16>
    tpu.vector_store %arg6[%c0_6, %c0_7], %11 {strides = array<i32>} : memref<32x256xbf16, #tpu.memory_space<vmem>>, vector<32x256xbf16>,
    return
  }
  func.func @transform_0(%arg0: i32, %arg1: i32) -> (i32, i32) {
    %c0_i32 = arith.constant 0 : i32
    %c0_i32_0 = arith.constant 0 : i32
    return %arg0, %c0_i32 : i32, i32
  }
  func.func @transform_1(%arg0: i32, %arg1: i32) -> (i32, i32) {
    %c0_i32 = arith.constant 0 : i32
    %c0_i32_0 = arith.constant 0 : i32
    %c0_i32_1 = arith.constant 0 : i32
    return %c0_i32, %c0_i32_0 : i32, i32
  }
  func.func @transform_2(%arg0: i32, %arg1: i32) -> (i32, i32) {
    %c0_i32 = arith.constant 0 : i32
    %c0_i32_0 = arith.constant 0 : i32
    return %c0_i32, %arg1 : i32, i32
  }
  func.func @transform_3(%arg0: i32, %arg1: i32) -> (i32, i32) {
    %c0_i32 = arith.constant 0 : i32
    %c0_i32_0 = arith.constant 0 : i32
    return %c0_i32, %arg1 : i32, i32
  }
  func.func @transform_4(%arg0: i32, %arg1: i32) -> (i32, i32) {
    %c0_i32 = arith.constant 0 : i32
    return %arg0, %arg1 : i32, i32
  }
}

module attributes {stable_mosaic.version = 11 : i64} {
  func.func @_matmul_res_kernel(%arg0: i32, %arg1: i32, %arg2: i32, %arg3: memref<32x256xbf16, #tpu.memory_space<vmem>>, %arg4: memref<256x256xi8, #tpu.memory_space<vmem>>, %arg5: memref<1x256xf32, #tpu.memory_space<vmem>>, %arg6: memref<32x256xbf16, #tpu.memory_space<vmem>>, %arg7: memref<32x256xbf16, #tpu.memory_space<vmem>>, %arg8: memref<32x256xf32, #tpu.memory_space<vmem>>) attributes {dimension_semantics = [#tpu.dimension_semantics<parallel>, #tpu.dimension_semantics<parallel>, #tpu.dimension_semantics<arbitrary>], iteration_bounds = array<i64: 1, 1, 1>, scalar_prefetch = 0 : i64, scratch_operands = 1 : i64, tpu.core_type = #tpu.core_type<tc>, window_params = [{transform_indices = @transform_0, window_bounds = array<i64: 32, 256>}, {transform_indices = @transform_1, window_bounds = array<i64: 256, 256>}, {transform_indices = @transform_2, window_bounds = array<i64: 1, 256>}, {transform_indices = @transform_3, window_bounds = array<i64: 32, 256>}, {transform_indices = @transform_4, window_bounds = array<i64: 32, 256>}]} {
    %c0_i32 = arith.constant 0 : i32
    %0 = arith.cmpi eq, %arg2, %c0_i32 : i32
    %1 = arith.extui %0 : i1 to i32
    %c0_i32_0 = arith.constant 0 : i32
    %2 = arith.cmpi ne, %1, %c0_i32_0 : i32
    scf.if %2 {
      %cst_10 = arith.constant 0.000000e+00 : f32
      %14 = vector.broadcast %cst_10 : f32 to vector<32x256xf32>
      %c0_11 = arith.constant 0 : index
      %c0_12 = arith.constant 0 : index
      %15 = vector.load %arg8[%c0_11, %c0_12] : memref<32x256xf32, #tpu.memory_space<vmem>>, vector<32x256xf32>
      tpu.vector_store %arg8[%c0_11, %c0_12], %14 {strides = array<i32>} : memref<32x256xf32, #tpu.memory_space<vmem>>, vector<32x256xf32>,
    } else {
    }
    %c0 = arith.constant 0 : index
    %c0_1 = arith.constant 0 : index
    %3 = vector.load %arg4[%c0, %c0_1] : memref<256x256xi8, #tpu.memory_space<vmem>>, vector<256x256xi8>
    %4 = arith.sitofp %3 : vector<256x256xi8> to vector<256x256xf32>
    %5 = arith.truncf %4 : vector<256x256xf32> to vector<256x256xbf16>
    %c0_2 = arith.constant 0 : index
    %c0_3 = arith.constant 0 : index
    %6 = vector.load %arg8[%c0_2, %c0_3] : memref<32x256xf32, #tpu.memory_space<vmem>>, vector<32x256xf32>
    %c0_4 = arith.constant 0 : index
    %c0_5 = arith.constant 0 : index
    %7 = vector.load %arg3[%c0_4, %c0_5] : memref<32x256xbf16, #tpu.memory_space<vmem>>, vector<32x256xbf16>
    %cst = arith.constant dense<0.000000e+00> : vector<32x256xf32>
    %8 = tpu.matmul %7, %5, %cst {dimension_numbers = #tpu.dot_dimension_numbers<[1], [0], [0], [1], [0, 0, 1, 1], [], []>} : vector<32x256xbf16>, vector<256x256xbf16>, vector<32x256xf32> -> vector<32x256xf32>
    %9 = arith.addf %6, %8 : vector<32x256xf32>
    %c0_6 = arith.constant 0 : index
    %c0_7 = arith.constant 0 : index
    %10 = vector.load %arg8[%c0_6, %c0_7] : memref<32x256xf32, #tpu.memory_space<vmem>>, vector<32x256xf32>
    tpu.vector_store %arg8[%c0_6, %c0_7], %9 {strides = array<i32>} : memref<32x256xf32, #tpu.memory_space<vmem>>, vector<32x256xf32>,
    %c0_i32_8 = arith.constant 0 : i32
    %11 = arith.cmpi eq, %arg2, %c0_i32_8 : i32
    %12 = arith.extui %11 : i1 to i32
    %c0_i32_9 = arith.constant 0 : i32
    %13 = arith.cmpi ne, %12, %c0_i32_9 : i32
    scf.if %13 {
      %c0_10 = arith.constant 0 : index
      %c0_11 = arith.constant 0 : index
      %14 = vector.load %arg8[%c0_10, %c0_11] : memref<32x256xf32, #tpu.memory_space<vmem>>, vector<32x256xf32>
      %c0_12 = arith.constant 0 : index
      %c0_13 = arith.constant 0 : index
      %15 = vector.load %arg5[%c0_12, %c0_13] : memref<1x256xf32, #tpu.memory_space<vmem>>, vector<1x256xf32>
      %16 = vector.broadcast %15 : vector<1x256xf32> to vector<32x256xf32>
      %17 = arith.mulf %14, %16 : vector<32x256xf32>
      %c0_14 = arith.constant 0 : index
      %c0_15 = arith.constant 0 : index
      %18 = vector.load %arg6[%c0_14, %c0_15] : memref<32x256xbf16, #tpu.memory_space<vmem>>, vector<32x256xbf16>
      %19 = arith.extf %18 : vector<32x256xbf16> to vector<32x256xf32>
      %20 = arith.addf %17, %19 : vector<32x256xf32>
      %21 = arith.truncf %20 : vector<32x256xf32> to vector<32x256xbf16>
      %c0_16 = arith.constant 0 : index
      %c0_17 = arith.constant 0 : index
      %22 = vector.load %arg7[%c0_16, %c0_17] : memref<32x256xbf16, #tpu.memory_space<vmem>>, vector<32x256xbf16>
      tpu.vector_store %arg7[%c0_16, %c0_17], %21 {strides = array<i32>} : memref<32x256xbf16, #tpu.memory_space<vmem>>, vector<32x256xbf16>,
    } else {
    }
    return
  }
  func.func @transform_0(%arg0: i32, %arg1: i32, %arg2: i32) -> (i32, i32) {
    %c0_i32 = arith.constant 0 : i32
    return %arg0, %arg2 : i32, i32
  }
  func.func @transform_1(%arg0: i32, %arg1: i32, %arg2: i32) -> (i32, i32) {
    %c0_i32 = arith.constant 0 : i32
    return %arg2, %arg1 : i32, i32
  }
  func.func @transform_2(%arg0: i32, %arg1: i32, %arg2: i32) -> (i32, i32) {
    %c0_i32 = arith.constant 0 : i32
    %c0_i32_0 = arith.constant 0 : i32
    return %c0_i32, %arg1 : i32, i32
  }
  func.func @transform_3(%arg0: i32, %arg1: i32, %arg2: i32) -> (i32, i32) {
    %c0_i32 = arith.constant 0 : i32
    return %arg0, %arg1 : i32, i32
  }
  func.func @transform_4(%arg0: i32, %arg1: i32, %arg2: i32) -> (i32, i32) {
    %c0_i32 = arith.constant 0 : i32
    return %arg0, %arg1 : i32, i32
  }
}

module attributes {stable_mosaic.version = 11 : i64} {
  func.func @_flash_kernel(%arg0: i32, %arg1: i32, %arg2: i32, %arg3: i32, %arg4: memref<16x128xbf16, #tpu.memory_space<vmem>>, %arg5: memref<16x128xbf16, #tpu.memory_space<vmem>>, %arg6: memref<16x128xbf16, #tpu.memory_space<vmem>>, %arg7: memref<16x128xbf16, #tpu.memory_space<vmem>>, %arg8: memref<16x128xbf16, #tpu.memory_space<vmem>>, %arg9: memref<16x1xf32, #tpu.memory_space<vmem>>, %arg10: memref<16x1xf32, #tpu.memory_space<vmem>>, %arg11: memref<16x128xf32, #tpu.memory_space<vmem>>) attributes {dimension_semantics = [#tpu.dimension_semantics<parallel>, #tpu.dimension_semantics<parallel>, #tpu.dimension_semantics<parallel>, #tpu.dimension_semantics<arbitrary>], iteration_bounds = array<i64: 2, 2, 1, 1>, scalar_prefetch = 0 : i64, scratch_operands = 4 : i64, tpu.core_type = #tpu.core_type<tc>, window_params = [{transform_indices = @transform_0, window_bounds = array<i64: 16, 128>}, {transform_indices = @transform_1, window_bounds = array<i64: 16, 128>}, {transform_indices = @transform_2, window_bounds = array<i64: 16, 128>}, {transform_indices = @transform_3, window_bounds = array<i64: 16, 128>}]} {
    %c0_i32 = arith.constant 0 : i32
    %0 = arith.cmpi eq, %arg3, %c0_i32 : i32
    %1 = arith.extui %0 : i1 to i32
    %c0_i32_0 = arith.constant 0 : i32
    %2 = arith.cmpi ne, %1, %c0_i32_0 : i32
    scf.if %2 {
      %c0 = arith.constant 0 : index
      %c0_5 = arith.constant 0 : index
      %12 = vector.load %arg4[%c0, %c0_5] : memref<16x128xbf16, #tpu.memory_space<vmem>>, vector<16x128xbf16>
      %13 = arith.extf %12 : vector<16x128xbf16> to vector<16x128xf32>
      %cst = arith.constant 0.0883883461 : f32
      %14 = vector.broadcast %cst : f32 to vector<16x128xf32>
      %15 = arith.mulf %13, %14 : vector<16x128xf32>
      %16 = arith.truncf %15 : vector<16x128xf32> to vector<16x128xbf16>
      %c0_6 = arith.constant 0 : index
      %c0_7 = arith.constant 0 : index
      %17 = vector.load %arg8[%c0_6, %c0_7] : memref<16x128xbf16, #tpu.memory_space<vmem>>, vector<16x128xbf16>
      tpu.vector_store %arg8[%c0_6, %c0_7], %16 {strides = array<i32>} : memref<16x128xbf16, #tpu.memory_space<vmem>>, vector<16x128xbf16>,
      %cst_8 = arith.constant 0xFF800000 : f32
      %18 = vector.broadcast %cst_8 : f32 to vector<16x1xf32>
      %c0_9 = arith.constant 0 : index
      %c0_10 = arith.constant 0 : index
      %19 = vector.load %arg9[%c0_9, %c0_10] : memref<16x1xf32, #tpu.memory_space<vmem>>, vector<16x1xf32>
      tpu.vector_store %arg9[%c0_9, %c0_10], %18 {strides = array<i32>} : memref<16x1xf32, #tpu.memory_space<vmem>>, vector<16x1xf32>,
      %cst_11 = arith.constant 0.000000e+00 : f32
      %20 = vector.broadcast %cst_11 : f32 to vector<16x1xf32>
      %c0_12 = arith.constant 0 : index
      %c0_13 = arith.constant 0 : index
      %21 = vector.load %arg10[%c0_12, %c0_13] : memref<16x1xf32, #tpu.memory_space<vmem>>, vector<16x1xf32>
      tpu.vector_store %arg10[%c0_12, %c0_13], %20 {strides = array<i32>} : memref<16x1xf32, #tpu.memory_space<vmem>>, vector<16x1xf32>,
      %cst_14 = arith.constant 0.000000e+00 : f32
      %22 = vector.broadcast %cst_14 : f32 to vector<16x128xf32>
      %c0_15 = arith.constant 0 : index
      %c0_16 = arith.constant 0 : index
      %23 = vector.load %arg11[%c0_15, %c0_16] : memref<16x128xf32, #tpu.memory_space<vmem>>, vector<16x128xf32>
      tpu.vector_store %arg11[%c0_15, %c0_16], %22 {strides = array<i32>} : memref<16x128xf32, #tpu.memory_space<vmem>>, vector<16x128xf32>,
    } else {
    }
    %3 = arith.cmpi slt, %arg3, %arg2 : i32
    %4 = arith.extui %3 : i1 to i32
    %c0_i32_1 = arith.constant 0 : i32
    %5 = arith.cmpi ne, %4, %c0_i32_1 : i32
    scf.if %5 {
      %c0 = arith.constant 0 : index
      %c0_5 = arith.constant 0 : index
      %12 = vector.load %arg8[%c0, %c0_5] : memref<16x128xbf16, #tpu.memory_space<vmem>>, vector<16x128xbf16>
      %c0_6 = arith.constant 0 : index
      %c0_7 = arith.constant 0 : index
      %13 = vector.load %arg5[%c0_6, %c0_7] : memref<16x128xbf16, #tpu.memory_space<vmem>>, vector<16x128xbf16>
      %cst = arith.constant dense<0.000000e+00> : vector<16x16xf32>
      %14 = tpu.matmul %12, %13, %cst {dimension_numbers = #tpu.dot_dimension_numbers<[1], [1], [0], [0], [0, 0, 1, 0], [], []>} : vector<16x128xbf16>, vector<16x128xbf16>, vector<16x16xf32> -> vector<16x16xf32>
      %c0_8 = arith.constant 0 : index
      %c0_9 = arith.constant 0 : index
      %15 = vector.load %arg9[%c0_8, %c0_9] : memref<16x1xf32, #tpu.memory_space<vmem>>, vector<16x1xf32>
      %cst_10 = arith.constant dense<0xFF800000> : vector<16xf32>
      %16 = vector.multi_reduction <maximumf>, %14, %cst_10 [1] : vector<16x16xf32> to vector<16xf32>
      %17 = vector.shape_cast %16 : vector<16xf32> to vector<16x1xf32>
      %18 = arith.maximumf %15, %17 : vector<16x1xf32>
      %19 = arith.subf %15, %18 : vector<16x1xf32>
      %20 = math.exp %19 : vector<16x1xf32>
      %21 = vector.broadcast %18 : vector<16x1xf32> to vector<16x16xf32>
      %22 = arith.subf %14, %21 : vector<16x16xf32>
      %23 = math.exp %22 : vector<16x16xf32>
      %c0_11 = arith.constant 0 : index
      %c0_12 = arith.constant 0 : index
      %24 = vector.load %arg10[%c0_11, %c0_12] : memref<16x1xf32, #tpu.memory_space<vmem>>, vector<16x1xf32>
      %25 = arith.mulf %20, %24 : vector<16x1xf32>
      %cst_13 = arith.constant dense<0.000000e+00> : vector<16xf32>
      %26 = vector.multi_reduction <add>, %23, %cst_13 [1] : vector<16x16xf32> to vector<16xf32>
      %27 = vector.shape_cast %26 : vector<16xf32> to vector<16x1xf32>
      %28 = arith.addf %25, %27 : vector<16x1xf32>
      %c0_14 = arith.constant 0 : index
      %c0_15 = arith.constant 0 : index
      %29 = vector.load %arg10[%c0_14, %c0_15] : memref<16x1xf32, #tpu.memory_space<vmem>>, vector<16x1xf32>
      tpu.vector_store %arg10[%c0_14, %c0_15], %28 {strides = array<i32>} : memref<16x1xf32, #tpu.memory_space<vmem>>, vector<16x1xf32>,
      %c0_16 = arith.constant 0 : index
      %c0_17 = arith.constant 0 : index
      %30 = vector.load %arg11[%c0_16, %c0_17] : memref<16x128xf32, #tpu.memory_space<vmem>>, vector<16x128xf32>
      %31 = vector.broadcast %20 : vector<16x1xf32> to vector<16x128xf32>
      %32 = arith.mulf %31, %30 : vector<16x128xf32>
      %33 = arith.truncf %23 : vector<16x16xf32> to vector<16x16xbf16>
      %c0_18 = arith.constant 0 : index
      %c0_19 = arith.constant 0 : index
      %34 = vector.load %arg6[%c0_18, %c0_19] : memref<16x128xbf16, #tpu.memory_space<vmem>>, vector<16x128xbf16>
      %cst_20 = arith.constant dense<0.000000e+00> : vector<16x128xf32>
      %35 = tpu.matmul %33, %34, %cst_20 {dimension_numbers = #tpu.dot_dimension_numbers<[1], [0], [0], [1], [0, 0, 1, 1], [], []>} : vector<16x16xbf16>, vector<16x128xbf16>, vector<16x128xf32> -> vector<16x128xf32>
      %36 = arith.addf %32, %35 : vector<16x128xf32>
      %c0_21 = arith.constant 0 : index
      %c0_22 = arith.constant 0 : index
      %37 = vector.load %arg11[%c0_21, %c0_22] : memref<16x128xf32, #tpu.memory_space<vmem>>, vector<16x128xf32>
      tpu.vector_store %arg11[%c0_21, %c0_22], %36 {strides = array<i32>} : memref<16x128xf32, #tpu.memory_space<vmem>>, vector<16x128xf32>,
      %c0_23 = arith.constant 0 : index
      %c0_24 = arith.constant 0 : index
      %38 = vector.load %arg9[%c0_23, %c0_24] : memref<16x1xf32, #tpu.memory_space<vmem>>, vector<16x1xf32>
      tpu.vector_store %arg9[%c0_23, %c0_24], %18 {strides = array<i32>} : memref<16x1xf32, #tpu.memory_space<vmem>>, vector<16x1xf32>,
    } else {
    }
    %6 = arith.cmpi eq, %arg3, %arg2 : i32
    %7 = arith.extui %6 : i1 to i32
    %c0_i32_2 = arith.constant 0 : i32
    %8 = arith.cmpi ne, %7, %c0_i32_2 : i32
    scf.if %8 {
      %c0 = arith.constant 0 : index
      %c0_5 = arith.constant 0 : index
      %12 = vector.load %arg8[%c0, %c0_5] : memref<16x128xbf16, #tpu.memory_space<vmem>>, vector<16x128xbf16>
      %c0_6 = arith.constant 0 : index
      %c0_7 = arith.constant 0 : index
      %13 = vector.load %arg5[%c0_6, %c0_7] : memref<16x128xbf16, #tpu.memory_space<vmem>>, vector<16x128xbf16>
      %cst = arith.constant dense<0.000000e+00> : vector<16x16xf32>
      %14 = tpu.matmul %12, %13, %cst {dimension_numbers = #tpu.dot_dimension_numbers<[1], [1], [0], [0], [0, 0, 1, 0], [], []>} : vector<16x128xbf16>, vector<16x128xbf16>, vector<16x16xf32> -> vector<16x16xf32>
      %15 = tpu.iota {dimensions = array<i32: 0>} : vector<16x16xi32>
      %16 = tpu.iota {dimensions = array<i32: 1>} : vector<16x16xi32>
      %17 = arith.cmpi sle, %16, %15 : vector<16x16xi32>
      %cst_8 = arith.constant -1.000000e+30 : f32
      %18 = vector.broadcast %cst_8 : f32 to vector<16x16xf32>
      %19 = arith.select %17, %14, %18 : vector<16x16xi1>, vector<16x16xf32>
      %c0_9 = arith.constant 0 : index
      %c0_10 = arith.constant 0 : index
      %20 = vector.load %arg9[%c0_9, %c0_10] : memref<16x1xf32, #tpu.memory_space<vmem>>, vector<16x1xf32>
      %cst_11 = arith.constant dense<0xFF800000> : vector<16xf32>
      %21 = vector.multi_reduction <maximumf>, %19, %cst_11 [1] : vector<16x16xf32> to vector<16xf32>
      %22 = vector.shape_cast %21 : vector<16xf32> to vector<16x1xf32>
      %23 = arith.maximumf %20, %22 : vector<16x1xf32>
      %24 = arith.subf %20, %23 : vector<16x1xf32>
      %25 = math.exp %24 : vector<16x1xf32>
      %26 = vector.broadcast %23 : vector<16x1xf32> to vector<16x16xf32>
      %27 = arith.subf %19, %26 : vector<16x16xf32>
      %28 = math.exp %27 : vector<16x16xf32>
      %c0_12 = arith.constant 0 : index
      %c0_13 = arith.constant 0 : index
      %29 = vector.load %arg10[%c0_12, %c0_13] : memref<16x1xf32, #tpu.memory_space<vmem>>, vector<16x1xf32>
      %30 = arith.mulf %25, %29 : vector<16x1xf32>
      %cst_14 = arith.constant dense<0.000000e+00> : vector<16xf32>
      %31 = vector.multi_reduction <add>, %28, %cst_14 [1] : vector<16x16xf32> to vector<16xf32>
      %32 = vector.shape_cast %31 : vector<16xf32> to vector<16x1xf32>
      %33 = arith.addf %30, %32 : vector<16x1xf32>
      %c0_15 = arith.constant 0 : index
      %c0_16 = arith.constant 0 : index
      %34 = vector.load %arg10[%c0_15, %c0_16] : memref<16x1xf32, #tpu.memory_space<vmem>>, vector<16x1xf32>
      tpu.vector_store %arg10[%c0_15, %c0_16], %33 {strides = array<i32>} : memref<16x1xf32, #tpu.memory_space<vmem>>, vector<16x1xf32>,
      %c0_17 = arith.constant 0 : index
      %c0_18 = arith.constant 0 : index
      %35 = vector.load %arg11[%c0_17, %c0_18] : memref<16x128xf32, #tpu.memory_space<vmem>>, vector<16x128xf32>
      %36 = vector.broadcast %25 : vector<16x1xf32> to vector<16x128xf32>
      %37 = arith.mulf %36, %35 : vector<16x128xf32>
      %38 = arith.truncf %28 : vector<16x16xf32> to vector<16x16xbf16>
      %c0_19 = arith.constant 0 : index
      %c0_20 = arith.constant 0 : index
      %39 = vector.load %arg6[%c0_19, %c0_20] : memref<16x128xbf16, #tpu.memory_space<vmem>>, vector<16x128xbf16>
      %cst_21 = arith.constant dense<0.000000e+00> : vector<16x128xf32>
      %40 = tpu.matmul %38, %39, %cst_21 {dimension_numbers = #tpu.dot_dimension_numbers<[1], [0], [0], [1], [0, 0, 1, 1], [], []>} : vector<16x16xbf16>, vector<16x128xbf16>, vector<16x128xf32> -> vector<16x128xf32>
      %41 = arith.addf %37, %40 : vector<16x128xf32>
      %c0_22 = arith.constant 0 : index
      %c0_23 = arith.constant 0 : index
      %42 = vector.load %arg11[%c0_22, %c0_23] : memref<16x128xf32, #tpu.memory_space<vmem>>, vector<16x128xf32>
      tpu.vector_store %arg11[%c0_22, %c0_23], %41 {strides = array<i32>} : memref<16x128xf32, #tpu.memory_space<vmem>>, vector<16x128xf32>,
      %c0_24 = arith.constant 0 : index
      %c0_25 = arith.constant 0 : index
      %43 = vector.load %arg9[%c0_24, %c0_25] : memref<16x1xf32, #tpu.memory_space<vmem>>, vector<16x1xf32>
      tpu.vector_store %arg9[%c0_24, %c0_25], %23 {strides = array<i32>} : memref<16x1xf32, #tpu.memory_space<vmem>>, vector<16x1xf32>,
    } else {
    }
    %c0_i32_3 = arith.constant 0 : i32
    %9 = arith.cmpi eq, %arg3, %c0_i32_3 : i32
    %10 = arith.extui %9 : i1 to i32
    %c0_i32_4 = arith.constant 0 : i32
    %11 = arith.cmpi ne, %10, %c0_i32_4 : i32
    scf.if %11 {
      %c0 = arith.constant 0 : index
      %c0_5 = arith.constant 0 : index
      %12 = vector.load %arg11[%c0, %c0_5] : memref<16x128xf32, #tpu.memory_space<vmem>>, vector<16x128xf32>
      %c0_6 = arith.constant 0 : index
      %c0_7 = arith.constant 0 : index
      %13 = vector.load %arg10[%c0_6, %c0_7] : memref<16x1xf32, #tpu.memory_space<vmem>>, vector<16x1xf32>
      %14 = tpu.reciprocal %13 {approx = true} : vector<16x1xf32> -> vector<16x1xf32>
      %15 = vector.broadcast %14 : vector<16x1xf32> to vector<16x128xf32>
      %16 = arith.mulf %12, %15 : vector<16x128xf32>
      %17 = arith.truncf %16 : vector<16x128xf32> to vector<16x128xbf16>
      %c0_8 = arith.constant 0 : index
      %c0_9 = arith.constant 0 : index
      %18 = vector.load %arg7[%c0_8, %c0_9] : memref<16x128xbf16, #tpu.memory_space<vmem>>, vector<16x128xbf16>
      tpu.vector_store %arg7[%c0_8, %c0_9], %17 {strides = array<i32>} : memref<16x128xbf16, #tpu.memory_space<vmem>>, vector<16x128xbf16>,
    } else {
    }
    return
  }
  func.func @transform_0(%arg0: i32, %arg1: i32, %arg2: i32, %arg3: i32) -> (i32, i32) {
    %c1_i32 = arith.constant 1 : i32
    %0 = arith.muli %arg1, %c1_i32 : i32
    %1 = arith.addi %0, %arg2 : i32
    %c0_i32 = arith.constant 0 : i32
    return %1, %arg0 : i32, i32
  }
  func.func @transform_1(%arg0: i32, %arg1: i32, %arg2: i32, %arg3: i32) -> (i32, i32) {
    %c1_i32 = arith.constant 1 : i32
    %0 = arith.muli %arg1, %c1_i32 : i32
    %1 = arith.minsi %arg3, %arg2 : i32
    %2 = arith.addi %0, %1 : i32
    %c2_i32 = arith.constant 2 : i32
    %3 = arith.addi %c2_i32, %arg0 : i32
    %c0_i32 = arith.constant 0 : i32
    return %2, %3 : i32, i32
  }
  func.func @transform_2(%arg0: i32, %arg1: i32, %arg2: i32, %arg3: i32) -> (i32, i32) {
    %c1_i32 = arith.constant 1 : i32
    %0 = arith.muli %arg1, %c1_i32 : i32
    %1 = arith.minsi %arg3, %arg2 : i32
    %2 = arith.addi %0, %1 : i32
    %c4_i32 = arith.constant 4 : i32
    %3 = arith.addi %c4_i32, %arg0 : i32
    %c0_i32 = arith.constant 0 : i32
    return %2, %3 : i32, i32
  }
  func.func @transform_3(%arg0: i32, %arg1: i32, %arg2: i32, %arg3: i32) -> (i32, i32) {
    %c1_i32 = arith.constant 1 : i32
    %0 = arith.muli %arg1, %c1_i32 : i32
    %1 = arith.addi %0, %arg2 : i32
    %c0_i32 = arith.constant 0 : i32
    return %1, %arg0 : i32, i32
  }
}

module attributes {stable_mosaic.version = 11 : i64} {
  func.func @_rms_matmul_kernel(%arg0: i32, %arg1: i32, %arg2: memref<32x256xbf16, #tpu.memory_space<vmem>>, %arg3: memref<1x256xbf16, #tpu.memory_space<vmem>>, %arg4: memref<256x512xi8, #tpu.memory_space<vmem>>, %arg5: memref<1x512xf32, #tpu.memory_space<vmem>>, %arg6: memref<32x512xbf16, #tpu.memory_space<vmem>>, %arg7: memref<32x256xbf16, #tpu.memory_space<vmem>>) attributes {dimension_semantics = [#tpu.dimension_semantics<parallel>, #tpu.dimension_semantics<arbitrary>], iteration_bounds = array<i64: 1, 1>, scalar_prefetch = 0 : i64, scratch_operands = 1 : i64, tpu.core_type = #tpu.core_type<tc>, window_params = [{transform_indices = @transform_0, window_bounds = array<i64: 32, 256>}, {pipeline_mode = #tpu.pipeline_mode<synchronous>, transform_indices = @transform_1, window_bounds = array<i64: 1, 256>}, {transform_indices = @transform_2, window_bounds = array<i64: 256, 512>}, {transform_indices = @transform_3, window_bounds = array<i64: 1, 512>}, {transform_indices = @transform_4, window_bounds = array<i64: 32, 512>}]} {
    %c0_i32 = arith.constant 0 : i32
    %0 = arith.cmpi eq, %arg1, %c0_i32 : i32
    %1 = arith.extui %0 : i1 to i32
    %c0_i32_0 = arith.constant 0 : i32
    %2 = arith.cmpi ne, %1, %c0_i32_0 : i32
    scf.if %2 {
      %c0_12 = arith.constant 0 : index
      %c0_13 = arith.constant 0 : index
      %26 = vector.load %arg2[%c0_12, %c0_13] : memref<32x256xbf16, #tpu.memory_space<vmem>>, vector<32x256xbf16>
      %27 = arith.extf %26 : vector<32x256xbf16> to vector<32x256xf32>
      %28 = arith.mulf %27, %27 : vector<32x256xf32>
      %cst_14 = arith.constant dense<0.000000e+00> : vector<32xf32>
      %29 = vector.multi_reduction <add>, %28, %cst_14 [1] : vector<32x256xf32> to vector<32xf32>
      %30 = vector.shape_cast %29 : vector<32xf32> to vector<32x1xf32>
      %cst_15 = arith.constant 2.560000e+02 : f32
      %31 = vector.broadcast %cst_15 : f32 to vector<32x1xf32>
      %32 = arith.divf %30, %31 : vector<32x1xf32>
      %cst_16 = arith.constant 9.99999997E-7 : f32
      %33 = vector.broadcast %cst_16 : f32 to vector<32x1xf32>
      %34 = arith.addf %32, %33 : vector<32x1xf32>
      %35 = math.rsqrt %34 : vector<32x1xf32>
      %36 = vector.broadcast %35 : vector<32x1xf32> to vector<32x256xf32>
      %37 = arith.mulf %27, %36 : vector<32x256xf32>
      %c0_17 = arith.constant 0 : index
      %c0_18 = arith.constant 0 : index
      %38 = vector.load %arg3[%c0_17, %c0_18] : memref<1x256xbf16, #tpu.memory_space<vmem>>, vector<1x256xbf16>
      %39 = arith.extf %38 : vector<1x256xbf16> to vector<1x256xf32>
      %40 = vector.broadcast %39 : vector<1x256xf32> to vector<32x256xf32>
      %41 = arith.mulf %37, %40 : vector<32x256xf32>
      %42 = arith.truncf %41 : vector<32x256xf32> to vector<32x256xbf16>
      %c0_19 = arith.constant 0 : index
      %c0_20 = arith.constant 0 : index
      %43 = vector.load %arg7[%c0_19, %c0_20] : memref<32x256xbf16, #tpu.memory_space<vmem>>, vector<32x256xbf16>
      tpu.vector_store %arg7[%c0_19, %c0_20], %42 {strides = array<i32>} : memref<32x256xbf16, #tpu.memory_space<vmem>>, vector<32x256xbf16>,
    } else {
    }
    %c0 = arith.constant 0 : index
    %c0_1 = arith.constant 0 : index
    %3 = vector.load %arg4[%c0, %c0_1] : memref<256x512xi8, #tpu.memory_space<vmem>>, vector<256x512xi8>
    %4 = arith.sitofp %3 : vector<256x512xi8> to vector<256x512xf32>
    %5 = arith.truncf %4 : vector<256x512xf32> to vector<256x512xbf16>
    %c0_2 = arith.constant 0 : index
    %c0_3 = arith.constant 0 : index
    %6 = vector.load %arg7[%c0_2, %c0_3] : memref<32x256xbf16, #tpu.memory_space<vmem>>, vector<32x256xbf16>
    %cst = arith.constant dense<0.000000e+00> : vector<32x512xf32>
    %7 = tpu.matmul %6, %5, %cst {dimension_numbers = #tpu.dot_dimension_numbers<[1], [0], [0], [1], [0, 0, 1, 1], [], []>} : vector<32x256xbf16>, vector<256x512xbf16>, vector<32x512xf32> -> vector<32x512xf32>
    %c0_4 = arith.constant 0 : index
    %c0_5 = arith.constant 0 : index
    %8 = vector.load %arg5[%c0_4, %c0_5] : memref<1x512xf32, #tpu.memory_space<vmem>>, vector<1x512xf32>
    %9 = vector.broadcast %8 : vector<1x512xf32> to vector<32x512xf32>
    %10 = arith.mulf %7, %9 : vector<32x512xf32>
    %11 = arith.mulf %10, %10 : vector<32x512xf32>
    %12 = arith.mulf %10, %11 : vector<32x512xf32>
    %cst_6 = arith.constant 4.471500e-02 : f32
    %13 = vector.broadcast %cst_6 : f32 to vector<32x512xf32>
    %14 = arith.mulf %13, %12 : vector<32x512xf32>
    %15 = arith.addf %10, %14 : vector<32x512xf32>
    %cst_7 = arith.constant 0.797884583 : f32
    %16 = vector.broadcast %cst_7 : f32 to vector<32x512xf32>
    %17 = arith.mulf %16, %15 : vector<32x512xf32>
    %18 = math.tanh %17 : vector<32x512xf32>
    %cst_8 = arith.constant 1.000000e+00 : f32
    %19 = vector.broadcast %cst_8 : f32 to vector<32x512xf32>
    %20 = arith.addf %19, %18 : vector<32x512xf32>
    %cst_9 = arith.constant 5.000000e-01 : f32
    %21 = vector.broadcast %cst_9 : f32 to vector<32x512xf32>
    %22 = arith.mulf %21, %20 : vector<32x512xf32>
    %23 = arith.mulf %10, %22 : vector<32x512xf32>
    %24 = arith.truncf %23 : vector<32x512xf32> to vector<32x512xbf16>
    %c0_10 = arith.constant 0 : index
    %c0_11 = arith.constant 0 : index
    %25 = vector.load %arg6[%c0_10, %c0_11] : memref<32x512xbf16, #tpu.memory_space<vmem>>, vector<32x512xbf16>
    tpu.vector_store %arg6[%c0_10, %c0_11], %24 {strides = array<i32>} : memref<32x512xbf16, #tpu.memory_space<vmem>>, vector<32x512xbf16>,
    return
  }
  func.func @transform_0(%arg0: i32, %arg1: i32) -> (i32, i32) {
    %c0_i32 = arith.constant 0 : i32
    %c0_i32_0 = arith.constant 0 : i32
    return %arg0, %c0_i32 : i32, i32
  }
  func.func @transform_1(%arg0: i32, %arg1: i32) -> (i32, i32) {
    %c0_i32 = arith.constant 0 : i32
    %c0_i32_0 = arith.constant 0 : i32
    %c0_i32_1 = arith.constant 0 : i32
    return %c0_i32, %c0_i32_0 : i32, i32
  }
  func.func @transform_2(%arg0: i32, %arg1: i32) -> (i32, i32) {
    %c0_i32 = arith.constant 0 : i32
    %c0_i32_0 = arith.constant 0 : i32
    return %c0_i32, %arg1 : i32, i32
  }
  func.func @transform_3(%arg0: i32, %arg1: i32) -> (i32, i32) {
    %c0_i32 = arith.constant 0 : i32
    %c0_i32_0 = arith.constant 0 : i32
    return %c0_i32, %arg1 : i32, i32
  }
  func.func @transform_4(%arg0: i32, %arg1: i32) -> (i32, i32) {
    %c0_i32 = arith.constant 0 : i32
    return %arg0, %arg1 : i32, i32
  }
}

module attributes {stable_mosaic.version = 11 : i64} {
  func.func @_matmul_res_kernel(%arg0: i32, %arg1: i32, %arg2: i32, %arg3: memref<32x512xbf16, #tpu.memory_space<vmem>>, %arg4: memref<512x256xi8, #tpu.memory_space<vmem>>, %arg5: memref<1x256xf32, #tpu.memory_space<vmem>>, %arg6: memref<32x256xbf16, #tpu.memory_space<vmem>>, %arg7: memref<32x256xbf16, #tpu.memory_space<vmem>>, %arg8: memref<32x256xf32, #tpu.memory_space<vmem>>) attributes {dimension_semantics = [#tpu.dimension_semantics<parallel>, #tpu.dimension_semantics<parallel>, #tpu.dimension_semantics<arbitrary>], iteration_bounds = array<i64: 1, 1, 1>, scalar_prefetch = 0 : i64, scratch_operands = 1 : i64, tpu.core_type = #tpu.core_type<tc>, window_params = [{transform_indices = @transform_0, window_bounds = array<i64: 32, 512>}, {transform_indices = @transform_1, window_bounds = array<i64: 512, 256>}, {transform_indices = @transform_2, window_bounds = array<i64: 1, 256>}, {transform_indices = @transform_3, window_bounds = array<i64: 32, 256>}, {transform_indices = @transform_4, window_bounds = array<i64: 32, 256>}]} {
    %c0_i32 = arith.constant 0 : i32
    %0 = arith.cmpi eq, %arg2, %c0_i32 : i32
    %1 = arith.extui %0 : i1 to i32
    %c0_i32_0 = arith.constant 0 : i32
    %2 = arith.cmpi ne, %1, %c0_i32_0 : i32
    scf.if %2 {
      %cst_10 = arith.constant 0.000000e+00 : f32
      %14 = vector.broadcast %cst_10 : f32 to vector<32x256xf32>
      %c0_11 = arith.constant 0 : index
      %c0_12 = arith.constant 0 : index
      %15 = vector.load %arg8[%c0_11, %c0_12] : memref<32x256xf32, #tpu.memory_space<vmem>>, vector<32x256xf32>
      tpu.vector_store %arg8[%c0_11, %c0_12], %14 {strides = array<i32>} : memref<32x256xf32, #tpu.memory_space<vmem>>, vector<32x256xf32>,
    } else {
    }
    %c0 = arith.constant 0 : index
    %c0_1 = arith.constant 0 : index
    %3 = vector.load %arg4[%c0, %c0_1] : memref<512x256xi8, #tpu.memory_space<vmem>>, vector<512x256xi8>
    %4 = arith.sitofp %3 : vector<512x256xi8> to vector<512x256xf32>
    %5 = arith.truncf %4 : vector<512x256xf32> to vector<512x256xbf16>
    %c0_2 = arith.constant 0 : index
    %c0_3 = arith.constant 0 : index
    %6 = vector.load %arg8[%c0_2, %c0_3] : memref<32x256xf32, #tpu.memory_space<vmem>>, vector<32x256xf32>
    %c0_4 = arith.constant 0 : index
    %c0_5 = arith.constant 0 : index
    %7 = vector.load %arg3[%c0_4, %c0_5] : memref<32x512xbf16, #tpu.memory_space<vmem>>, vector<32x512xbf16>
    %cst = arith.constant dense<0.000000e+00> : vector<32x256xf32>
    %8 = tpu.matmul %7, %5, %cst {dimension_numbers = #tpu.dot_dimension_numbers<[1], [0], [0], [1], [0, 0, 1, 1], [], []>} : vector<32x512xbf16>, vector<512x256xbf16>, vector<32x256xf32> -> vector<32x256xf32>
    %9 = arith.addf %6, %8 : vector<32x256xf32>
    %c0_6 = arith.constant 0 : index
    %c0_7 = arith.constant 0 : index
    %10 = vector.load %arg8[%c0_6, %c0_7] : memref<32x256xf32, #tpu.memory_space<vmem>>, vector<32x256xf32>
    tpu.vector_store %arg8[%c0_6, %c0_7], %9 {strides = array<i32>} : memref<32x256xf32, #tpu.memory_space<vmem>>, vector<32x256xf32>,
    %c0_i32_8 = arith.constant 0 : i32
    %11 = arith.cmpi eq, %arg2, %c0_i32_8 : i32
    %12 = arith.extui %11 : i1 to i32
    %c0_i32_9 = arith.constant 0 : i32
    %13 = arith.cmpi ne, %12, %c0_i32_9 : i32
    scf.if %13 {
      %c0_10 = arith.constant 0 : index
      %c0_11 = arith.constant 0 : index
      %14 = vector.load %arg8[%c0_10, %c0_11] : memref<32x256xf32, #tpu.memory_space<vmem>>, vector<32x256xf32>
      %c0_12 = arith.constant 0 : index
      %c0_13 = arith.constant 0 : index
      %15 = vector.load %arg5[%c0_12, %c0_13] : memref<1x256xf32, #tpu.memory_space<vmem>>, vector<1x256xf32>
      %16 = vector.broadcast %15 : vector<1x256xf32> to vector<32x256xf32>
      %17 = arith.mulf %14, %16 : vector<32x256xf32>
      %c0_14 = arith.constant 0 : index
      %c0_15 = arith.constant 0 : index
      %18 = vector.load %arg6[%c0_14, %c0_15] : memref<32x256xbf16, #tpu.memory_space<vmem>>, vector<32x256xbf16>
      %19 = arith.extf %18 : vector<32x256xbf16> to vector<32x256xf32>
      %20 = arith.addf %17, %19 : vector<32x256xf32>
      %21 = arith.truncf %20 : vector<32x256xf32> to vector<32x256xbf16>
      %c0_16 = arith.constant 0 : index
      %c0_17 = arith.constant 0 : index
      %22 = vector.load %arg7[%c0_16, %c0_17] : memref<32x256xbf16, #tpu.memory_space<vmem>>, vector<32x256xbf16>
      tpu.vector_store %arg7[%c0_16, %c0_17], %21 {strides = array<i32>} : memref<32x256xbf16, #tpu.memory_space<vmem>>, vector<32x256xbf16>,
    } else {
    }
    return
  }
  func.func @transform_0(%arg0: i32, %arg1: i32, %arg2: i32) -> (i32, i32) {
    %c0_i32 = arith.constant 0 : i32
    return %arg0, %arg2 : i32, i32
  }
  func.func @transform_1(%arg0: i32, %arg1: i32, %arg2: i32) -> (i32, i32) {
    %c0_i32 = arith.constant 0 : i32
    return %arg2, %arg1 : i32, i32
  }
  func.func @transform_2(%arg0: i32, %arg1: i32, %arg2: i32) -> (i32, i32) {
    %c0_i32 = arith.constant 0 : i32
    %c0_i32_0 = arith.constant 0 : i32
    return %c0_i32, %arg1 : i32, i32
  }
  func.func @transform_3(%arg0: i32, %arg1: i32, %arg2: i32) -> (i32, i32) {
    %c0_i32 = arith.constant 0 : i32
    return %arg0, %arg1 : i32, i32
  }
  func.func @transform_4(%arg0: i32, %arg1: i32, %arg2: i32) -> (i32, i32) {
    %c0_i32 = arith.constant 0 : i32
    return %arg0, %arg1 : i32, i32
  }
}

module attributes {stable_mosaic.version = 11 : i64} {
  func.func @_rms_matmul_kernel(%arg0: i32, %arg1: i32, %arg2: memref<32x256xbf16, #tpu.memory_space<vmem>>, %arg3: memref<1x256xbf16, #tpu.memory_space<vmem>>, %arg4: memref<256x512xi8, #tpu.memory_space<vmem>>, %arg5: memref<1x512xf32, #tpu.memory_space<vmem>>, %arg6: memref<32x512xbf16, #tpu.memory_space<vmem>>, %arg7: memref<32x256xbf16, #tpu.memory_space<vmem>>) attributes {dimension_semantics = [#tpu.dimension_semantics<parallel>, #tpu.dimension_semantics<arbitrary>], iteration_bounds = array<i64: 1, 1>, scalar_prefetch = 0 : i64, scratch_operands = 1 : i64, tpu.core_type = #tpu.core_type<tc>, window_params = [{transform_indices = @transform_0, window_bounds = array<i64: 32, 256>}, {pipeline_mode = #tpu.pipeline_mode<synchronous>, transform_indices = @transform_1, window_bounds = array<i64: 1, 256>}, {transform_indices = @transform_2, window_bounds = array<i64: 256, 512>}, {transform_indices = @transform_3, window_bounds = array<i64: 1, 512>}, {transform_indices = @transform_4, window_bounds = array<i64: 32, 512>}]} {
    %c0_i32 = arith.constant 0 : i32
    %0 = arith.cmpi eq, %arg1, %c0_i32 : i32
    %1 = arith.extui %0 : i1 to i32
    %c0_i32_0 = arith.constant 0 : i32
    %2 = arith.cmpi ne, %1, %c0_i32_0 : i32
    scf.if %2 {
      %c0_8 = arith.constant 0 : index
      %c0_9 = arith.constant 0 : index
      %13 = vector.load %arg2[%c0_8, %c0_9] : memref<32x256xbf16, #tpu.memory_space<vmem>>, vector<32x256xbf16>
      %14 = arith.extf %13 : vector<32x256xbf16> to vector<32x256xf32>
      %15 = arith.mulf %14, %14 : vector<32x256xf32>
      %cst_10 = arith.constant dense<0.000000e+00> : vector<32xf32>
      %16 = vector.multi_reduction <add>, %15, %cst_10 [1] : vector<32x256xf32> to vector<32xf32>
      %17 = vector.shape_cast %16 : vector<32xf32> to vector<32x1xf32>
      %cst_11 = arith.constant 2.560000e+02 : f32
      %18 = vector.broadcast %cst_11 : f32 to vector<32x1xf32>
      %19 = arith.divf %17, %18 : vector<32x1xf32>
      %cst_12 = arith.constant 9.99999997E-7 : f32
      %20 = vector.broadcast %cst_12 : f32 to vector<32x1xf32>
      %21 = arith.addf %19, %20 : vector<32x1xf32>
      %22 = math.rsqrt %21 : vector<32x1xf32>
      %23 = vector.broadcast %22 : vector<32x1xf32> to vector<32x256xf32>
      %24 = arith.mulf %14, %23 : vector<32x256xf32>
      %c0_13 = arith.constant 0 : index
      %c0_14 = arith.constant 0 : index
      %25 = vector.load %arg3[%c0_13, %c0_14] : memref<1x256xbf16, #tpu.memory_space<vmem>>, vector<1x256xbf16>
      %26 = arith.extf %25 : vector<1x256xbf16> to vector<1x256xf32>
      %27 = vector.broadcast %26 : vector<1x256xf32> to vector<32x256xf32>
      %28 = arith.mulf %24, %27 : vector<32x256xf32>
      %29 = arith.truncf %28 : vector<32x256xf32> to vector<32x256xbf16>
      %c0_15 = arith.constant 0 : index
      %c0_16 = arith.constant 0 : index
      %30 = vector.load %arg7[%c0_15, %c0_16] : memref<32x256xbf16, #tpu.memory_space<vmem>>, vector<32x256xbf16>
      tpu.vector_store %arg7[%c0_15, %c0_16], %29 {strides = array<i32>} : memref<32x256xbf16, #tpu.memory_space<vmem>>, vector<32x256xbf16>,
    } else {
    }
    %c0 = arith.constant 0 : index
    %c0_1 = arith.constant 0 : index
    %3 = vector.load %arg4[%c0, %c0_1] : memref<256x512xi8, #tpu.memory_space<vmem>>, vector<256x512xi8>
    %4 = arith.sitofp %3 : vector<256x512xi8> to vector<256x512xf32>
    %5 = arith.truncf %4 : vector<256x512xf32> to vector<256x512xbf16>
    %c0_2 = arith.constant 0 : index
    %c0_3 = arith.constant 0 : index
    %6 = vector.load %arg7[%c0_2, %c0_3] : memref<32x256xbf16, #tpu.memory_space<vmem>>, vector<32x256xbf16>
    %cst = arith.constant dense<0.000000e+00> : vector<32x512xf32>
    %7 = tpu.matmul %6, %5, %cst {dimension_numbers = #tpu.dot_dimension_numbers<[1], [0], [0], [1], [0, 0, 1, 1], [], []>} : vector<32x256xbf16>, vector<256x512xbf16>, vector<32x512xf32> -> vector<32x512xf32>
    %c0_4 = arith.constant 0 : index
    %c0_5 = arith.constant 0 : index
    %8 = vector.load %arg5[%c0_4, %c0_5] : memref<1x512xf32, #tpu.memory_space<vmem>>, vector<1x512xf32>
    %9 = vector.broadcast %8 : vector<1x512xf32> to vector<32x512xf32>
    %10 = arith.mulf %7, %9 : vector<32x512xf32>
    %11 = arith.truncf %10 : vector<32x512xf32> to vector<32x512xbf16>
    %c0_6 = arith.constant 0 : index
    %c0_7 = arith.constant 0 : index
    %12 = vector.load %arg6[%c0_6, %c0_7] : memref<32x512xbf16, #tpu.memory_space<vmem>>, vector<32x512xbf16>
    tpu.vector_store %arg6[%c0_6, %c0_7], %11 {strides = array<i32>} : memref<32x512xbf16, #tpu.memory_space<vmem>>, vector<32x512xbf16>,
    return
  }
  func.func @transform_0(%arg0: i32, %arg1: i32) -> (i32, i32) {
    %c0_i32 = arith.constant 0 : i32
    %c0_i32_0 = arith.constant 0 : i32
    return %arg0, %c0_i32 : i32, i32
  }
  func.func @transform_1(%arg0: i32, %arg1: i32) -> (i32, i32) {
    %c0_i32 = arith.constant 0 : i32
    %c0_i32_0 = arith.constant 0 : i32
    %c0_i32_1 = arith.constant 0 : i32
    return %c0_i32, %c0_i32_0 : i32, i32
  }
  func.func @transform_2(%arg0: i32, %arg1: i32) -> (i32, i32) {
    %c0_i32 = arith.constant 0 : i32
    %c0_i32_0 = arith.constant 0 : i32
    return %c0_i32, %arg1 : i32, i32
  }
  func.func @transform_3(%arg0: i32, %arg1: i32) -> (i32, i32) {
    %c0_i32 = arith.constant 0 : i32
    %c0_i32_0 = arith.constant 0 : i32
    return %c0_i32, %arg1 : i32, i32
  }
  func.func @transform_4(%arg0: i32, %arg1: i32) -> (i32, i32) {
    %c0_i32 = arith.constant 0 : i32
    return %arg0, %arg1 : i32, i32
  }
}

</mosaic_0001>

<llo_original>
// kernel: exl2_forward.13
$region0: #{exl2_forward.13}
  #allocation0 [shape = 'u32[]', space=smem, size = 0x4, offset = 0x4, fixed_abs, tag = 'smem constant byte address 0x4 - core index']
  #allocation1 [shape = 'u32[144,128]{1,0:T(1,128)}', space=vmem, size = 0x12000, scoped, tag = 'internal scratch']
  #allocation2 [shape = 'f32[32,256]{1,0:T(8,128)}', space=vmem, size = 0x8000, scoped, tag = 'scratch operand']
  %s0 = inlined_call_operand.vmem [shape: bf16[32,256], index: 0, kind: input, shape index: {}]
  %s1 = inlined_call_operand.vmem [shape: s8[256,256], index: 1, kind: input, shape index: {}]
  %s2 = inlined_call_operand.vmem [shape: f32[1,256], index: 2, kind: input, shape index: {}]
  %s3 = inlined_call_operand.vmem [shape: bf16[32,256], index: 3, kind: input, shape index: {}]
  %s4 = inlined_call_operand.vmem [shape: bf16[32,256], index: 4, kind: output, shape index: {}]
  %s5 = sld [smem:[#allocation0]]
  $region34: #{exl2_forward.13} parent=0
    _
  %s7 = ssub.s32 1, %s5
  %s8 = scalar_select 0, %s7, %s5
  // Predicated region
  $region2: #{exl2_forward.13} parent=0 // pred_check
    _
  $region3: #{exl2_forward.13} parent=0 // pred_check_branch
    %10 = sbr.rel (0) target = $region5
  $region4: #{exl2_forward.13} parent=0 // pred_region
    _
  $region5: #{exl2_forward.13} parent=0 // pred_fallthru
    _
  // Predicated region
  $region6: #{exl2_forward.13} parent=0 // pred_check
    _
  $region7: #{exl2_forward.13} parent=0 // pred_check_branch
    %12 = sbr.rel (0) target = $region9
  $region8: #{exl2_forward.13} parent=0 // pred_region
    _
  $region9: #{exl2_forward.13} parent=0 // pred_fallthru
    _
  // Predicated region
  $region10: #{exl2_forward.13} parent=0 // pred_check
    _
  $region11: #{exl2_forward.13} parent=0 // pred_check_branch
    %14 = sbr.rel (0) target = $region13
  $region12: #{exl2_forward.13} parent=0 // pred_region
    _
  $region13: #{exl2_forward.13} parent=0 // pred_fallthru
    _
  // Predicated region
  $region14: #{exl2_forward.13} parent=0 // pred_check
    _
  $region15: #{exl2_forward.13} parent=0 // pred_check_branch
    %16 = sbr.rel (0) target = $region17
  $region16: #{exl2_forward.13} parent=0 // pred_region
    _
  $region17: #{exl2_forward.13} parent=0 // pred_fallthru
    _
  %p17 = scmp.eq.s32.totalorder 0, 0
  // Predicated region
  $region18: #{exl2_forward.13} parent=0 // pred_check
    %p18 = pneg %p17
  $region19: #{exl2_forward.13} parent=0 // pred_check_branch
    %20 = sbr.rel (%p18) target = $region21
  $region20: #{exl2_forward.13} parent=0 // pred_region
    %21 = vst [vmem:[#allocation2] sm:$0xff] 0.0
    %22 = vst [vmem:[#allocation2 + $0x8] sm:$0xff] 0.0
    %23 = vst [vmem:[#allocation2 + $0x10] sm:$0xff] 0.0
    %24 = vst [vmem:[#allocation2 + $0x18] sm:$0xff] 0.0
    %25 = vst [vmem:[#allocation2 + $0x20] sm:$0xff] 0.0
    %26 = vst [vmem:[#allocation2 + $0x28] sm:$0xff] 0.0
    %27 = vst [vmem:[#allocation2 + $0x30] sm:$0xff] 0.0
    %28 = vst [vmem:[#allocation2 + $0x38] sm:$0xff] 0.0
  $region21: #{exl2_forward.13} parent=0 // pred_fallthru
    _
  %v29 = vld [vmem:[%s1] sm:$0xff]
  %v30 = vld [vmem:[%s1 + $0x8] sm:$0xff]
  %v31 = vld [vmem:[%s1 + $0x10] sm:$0xff]
  %v32 = vld [vmem:[%s1 + $0x18] sm:$0xff]
  %v33 = vld [vmem:[%s1 + $0x20] sm:$0xff]
  %v34 = vld [vmem:[%s1 + $0x28] sm:$0xff]
  %v35 = vld [vmem:[%s1 + $0x30] sm:$0xff]
  %v36 = vld [vmem:[%s1 + $0x38] sm:$0xff]
  %v37 = vld [vmem:[%s1 + $0x40] sm:$0xff]
  %v38 = vld [vmem:[%s1 + $0x48] sm:$0xff]
  %v39 = vld [vmem:[%s1 + $0x50] sm:$0xff]
  %v40 = vld [vmem:[%s1 + $0x58] sm:$0xff]
  %v41 = vld [vmem:[%s1 + $0x60] sm:$0xff]
  %v42 = vld [vmem:[%s1 + $0x68] sm:$0xff]
  %v43 = vld [vmem:[%s1 + $0x70] sm:$0xff]
  %v44 = vld [vmem:[%s1 + $0x78] sm:$0xff]
  %v45 = vunpack.c.l.s8.bf16 %v29
  %v46 = vunpack.c.l.s8.bf16 %v30
  %v47 = vunpack.c.h.s8.bf16 %v29
  %v48 = vunpack.c.h.s8.bf16 %v30
  %v49 = vunpack.c.l.s8.bf16 %v31
  %v50 = vunpack.c.l.s8.bf16 %v32
  %v51 = vunpack.c.h.s8.bf16 %v31
  %v52 = vunpack.c.h.s8.bf16 %v32
  %v53 = vunpack.c.l.s8.bf16 %v33
  %v54 = vunpack.c.l.s8.bf16 %v34
  %v55 = vunpack.c.h.s8.bf16 %v33
  %v56 = vunpack.c.h.s8.bf16 %v34
  %v57 = vunpack.c.l.s8.bf16 %v35
  %v58 = vunpack.c.l.s8.bf16 %v36
  %v59 = vunpack.c.h.s8.bf16 %v35
  %v60 = vunpack.c.h.s8.bf16 %v36
  %v61 = vunpack.c.l.s8.bf16 %v37
  %v62 = vunpack.c.l.s8.bf16 %v38
  %v63 = vunpack.c.h.s8.bf16 %v37
  %v64 = vunpack.c.h.s8.bf16 %v38
  %v65 = vunpack.c.l.s8.bf16 %v39
  %v66 = vunpack.c.l.s8.bf16 %v40
  %v67 = vunpack.c.h.s8.bf16 %v39
  %v68 = vunpack.c.h.s8.bf16 %v40
  %v69 = vunpack.c.l.s8.bf16 %v41
  %v70 = vunpack.c.l.s8.bf16 %v42
  %v71 = vunpack.c.h.s8.bf16 %v41
  %v72 = vunpack.c.h.s8.bf16 %v42
  %v73 = vunpack.c.l.s8.bf16 %v43
  %v74 = vunpack.c.l.s8.bf16 %v44
  %v75 = vunpack.c.h.s8.bf16 %v43
  %v76 = vunpack.c.h.s8.bf16 %v44
  %v77 = vld [vmem:[#allocation2] sm:$0xff]
  %v78 = vld [vmem:[#allocation2 + $0x8] sm:$0xff]
  %v79 = vld [vmem:[#allocation2 + $0x10] sm:$0xff]
  %v80 = vld [vmem:[#allocation2 + $0x18] sm:$0xff]
  %v81 = vld [vmem:[#allocation2 + $0x20] sm:$0xff]
  %v82 = vld [vmem:[#allocation2 + $0x28] sm:$0xff]
  %v83 = vld [vmem:[#allocation2 + $0x30] sm:$0xff]
  %v84 = vld [vmem:[#allocation2 + $0x38] sm:$0xff]
  %v85 = vld [vmem:[%s0] sm:$0xff]
  %v86 = vld [vmem:[%s0 + $0x8] sm:$0xff]
  %v87 = vld [vmem:[%s0 + $0x10] sm:$0xff]
  %v88 = vld [vmem:[%s0 + $0x18] sm:$0xff]
  %v93 = vunpack.c.l.b16 %v85
  %v94 = vunpack.c.h.b16 %v85
  %v95 = vunpack.c.l.b16 %v86
  %v96 = vunpack.c.h.b16 %v86
  %v97 = vunpack.c.l.b16 %v87
  %v98 = vunpack.c.h.b16 %v87
  %v99 = vunpack.c.l.b16 %v88
  %v100 = vunpack.c.h.b16 %v88
  %v101 = vpack.c.b16 %v95, %v93
  %v102 = vpack.c.b16 %v96, %v94
  %v103 = vpack.c.b16 %v99, %v97
  %v104 = vpack.c.b16 %v100, %v98
  %109 = vmatprep.subr.bf16.mxu0 %v60
  %110 = vmatpush1.bf16.msra.mxu0 %v59
  %111 = vmatprep.subr.bf16.mxu0 %v58
  %112 = vmatpush1.bf16.msra.mxu0 %v57
  %113 = vmatprep.subr.bf16.mxu0 %v56
  %114 = vmatpush1.bf16.msra.mxu0 %v55
  %115 = vmatprep.subr.bf16.mxu0 %v54
  %116 = vmatpush1.bf16.msra.mxu0 %v53
  %117 = vmatprep.subr.bf16.mxu0 %v52
  %118 = vmatpush1.bf16.msra.mxu0 %v51
  %119 = vmatprep.subr.bf16.mxu0 %v50
  %120 = vmatpush1.bf16.msra.mxu0 %v49
  %121 = vmatprep.subr.bf16.mxu0 %v48
  %122 = vmatpush1.bf16.msra.mxu0 %v47
  %123 = vmatprep.subr.bf16.mxu0 %v46
  %124 = vmatpush1.bf16.msra.mxu0 %v45
  %125 = vmatprep.subr.bf16.mxu0 %v76
  %126 = vmatpush2.bf16.msra.mxu0 %v75
  %127 = vmatprep.subr.bf16.mxu0 %v74
  %128 = vmatpush2.bf16.msra.mxu0 %v73
  %129 = vmatprep.subr.bf16.mxu0 %v72
  %130 = vmatpush2.bf16.msra.mxu0 %v71
  %131 = vmatprep.subr.bf16.mxu0 %v70
  %132 = vmatpush2.bf16.msra.mxu0 %v69
  %133 = vmatprep.subr.bf16.mxu0 %v68
  %134 = vmatpush2.bf16.msra.mxu0 %v67
  %135 = vmatprep.subr.bf16.mxu0 %v66
  %136 = vmatpush2.bf16.msra.mxu0 %v65
  %137 = vmatprep.subr.bf16.mxu0 %v64
  %138 = vmatpush2.bf16.msra.mxu0 %v63
  %139 = vmatprep.subr.bf16.mxu0 %v62
  %140 = vmatpush2.bf16.msra.mxu0 %v61
  %141 = vmatprep.mubr.bf16.mxu0 %v102
  %142 = vmatmul.mubr.bf16.gmra.mxu0 %v101
  %v143 = vpop.f32.mrf.mxu0
  %v144 = vadd.f32 0.0, %v143
  %v145 = vpop.f32.mrf.mxu0
  %v146 = vadd.f32 0.0, %v145
  %v147 = vpop.f32.mrf.mxu0
  %v148 = vadd.f32 0.0, %v147
  %v149 = vpop.f32.mrf.mxu0
  %v150 = vadd.f32 0.0, %v149
  %151 = vmatprep.mubr.bf16.mxu0 %v104
  %152 = vmatmul.mubr.bf16.gmra.mxu0 %v103
  %v153 = vpop.f32.mrf.mxu0
  %v154 = vadd.f32 0.0, %v153
  %v155 = vpop.f32.mrf.mxu0
  %v156 = vadd.f32 0.0, %v155
  %v157 = vpop.f32.mrf.mxu0
  %v158 = vadd.f32 0.0, %v157
  %v159 = vpop.f32.mrf.mxu0
  %v160 = vadd.f32 0.0, %v159
  %161 = vdwg.mxu0
  %v162 = vadd.f32 %v77, %v144
  %v163 = vadd.f32 %v78, %v146
  %v164 = vadd.f32 %v79, %v148
  %v165 = vadd.f32 %v80, %v150
  %v166 = vadd.f32 %v81, %v154
  %v167 = vadd.f32 %v82, %v156
  %v168 = vadd.f32 %v83, %v158
  %v169 = vadd.f32 %v84, %v160
  %170 = vst [vmem:[#allocation2] sm:$0xff] %v162
  %171 = vst [vmem:[#allocation2 + $0x8] sm:$0xff] %v163
  %172 = vst [vmem:[#allocation2 + $0x10] sm:$0xff] %v164
  %173 = vst [vmem:[#allocation2 + $0x18] sm:$0xff] %v165
  %174 = vst [vmem:[#allocation2 + $0x20] sm:$0xff] %v166
  %175 = vst [vmem:[#allocation2 + $0x28] sm:$0xff] %v167
  %176 = vst [vmem:[#allocation2 + $0x30] sm:$0xff] %v168
  %177 = vst [vmem:[#allocation2 + $0x38] sm:$0xff] %v169
  // Predicated region
  $region22: #{exl2_forward.13} parent=0 // pred_check
    %p178 = pneg %p17
  $region23: #{exl2_forward.13} parent=0 // pred_check_branch
    %180 = sbr.rel (%p178) target = $region25
  $region24: #{exl2_forward.13} parent=0 // pred_region
    %v181 = vld [vmem:[#allocation2] sm:$0xff]
    %v182 = vld [vmem:[#allocation2 + $0x8] sm:$0xff]
    %v183 = vld [vmem:[#allocation2 + $0x10] sm:$0xff]
    %v184 = vld [vmem:[#allocation2 + $0x18] sm:$0xff]
    %v185 = vld [vmem:[#allocation2 + $0x20] sm:$0xff]
    %v186 = vld [vmem:[#allocation2 + $0x28] sm:$0xff]
    %v187 = vld [vmem:[#allocation2 + $0x30] sm:$0xff]
    %v188 = vld [vmem:[#allocation2 + $0x38] sm:$0xff]
    %v189 = vld [vmem:[%s2] sm:$0x3]
    %v191 = vlaneseq
    %v192 = vshrl.u32 %v191, 7
    %v193 = vsub.s32 0, %v192
    %v194 = vrot.slane %v189, %v193
    %v195 = vlaneseq
    %v196 = vshrl.u32 %v195, 7
    %v197 = vsub.s32 1, %v196
    %v198 = vrot.slane %v189, %v197
    %v201 = vmul.f32 %v181, %v194
    %v202 = vmul.f32 %v182, %v198
    %v203 = vmul.f32 %v183, %v194
    %v204 = vmul.f32 %v184, %v198
    %v205 = vmul.f32 %v185, %v194
    %v206 = vmul.f32 %v186, %v198
    %v207 = vmul.f32 %v187, %v194
    %v208 = vmul.f32 %v188, %v198
    %v209 = vld [vmem:[%s3] sm:$0xff]
    %v210 = vld [vmem:[%s3 + $0x8] sm:$0xff]
    %v211 = vld [vmem:[%s3 + $0x10] sm:$0xff]
    %v212 = vld [vmem:[%s3 + $0x18] sm:$0xff]
    %v213 = vunpack.c.l.bf16 %v209
    %v214 = vunpack.c.h.bf16 %v209
    %v215 = vunpack.c.l.bf16 %v210
    %v216 = vunpack.c.h.bf16 %v210
    %v217 = vunpack.c.l.bf16 %v211
    %v218 = vunpack.c.h.bf16 %v211
    %v219 = vunpack.c.l.bf16 %v212
    %v220 = vunpack.c.h.bf16 %v212
    %v221 = vadd.f32 %v201, %v213
    %v222 = vadd.f32 %v202, %v214
    %v223 = vadd.f32 %v203, %v215
    %v224 = vadd.f32 %v204, %v216
    %v225 = vadd.f32 %v205, %v217
    %v226 = vadd.f32 %v206, %v218
    %v227 = vadd.f32 %v207, %v219
    %v228 = vadd.f32 %v208, %v220
    %v229 = vpack.c.bf16 %v223, %v221
    %v230 = vpack.c.bf16 %v224, %v222
    %v231 = vpack.c.bf16 %v227, %v225
    %v232 = vpack.c.bf16 %v228, %v226
    %v237 = vunpack.c.l.b16 %v229
    %v238 = vunpack.c.l.b16 %v230
    %v239 = vunpack.c.h.b16 %v229
    %v240 = vunpack.c.h.b16 %v230
    %v241 = vunpack.c.l.b16 %v231
    %v242 = vunpack.c.l.b16 %v232
    %v243 = vunpack.c.h.b16 %v231
    %v244 = vunpack.c.h.b16 %v232
    %v245 = vpack.c.b16 %v238, %v237
    %v246 = vpack.c.b16 %v240, %v239
    %v247 = vpack.c.b16 %v242, %v241
    %v248 = vpack.c.b16 %v244, %v243
    %253 = vst [vmem:[%s4] sm:$0xff] %v245
    %254 = vst [vmem:[%s4 + $0x8] sm:$0xff] %v246
    %255 = vst [vmem:[%s4 + $0x10] sm:$0xff] %v247
    %256 = vst [vmem:[%s4 + $0x18] sm:$0xff] %v248
  $region25: #{exl2_forward.13} parent=0 // pred_fallthru
    _
  // Predicated region
  $region26: #{exl2_forward.13} parent=0 // pred_check
    _
  $region27: #{exl2_forward.13} parent=0 // pred_check_branch
    %258 = sbr.rel (0) target = $region29
  $region28: #{exl2_forward.13} parent=0 // pred_region
    _
  $region29: #{exl2_forward.13} parent=0 // pred_fallthru
    _
  // Predicated region
  $region30: #{exl2_forward.13} parent=0 // pred_check
    _
  $region31: #{exl2_forward.13} parent=0 // pred_check_branch
    %260 = sbr.rel (0) target = $region33
  $region32: #{exl2_forward.13} parent=0 // pred_region
    _
  $region33: #{exl2_forward.13} parent=0 // pred_fallthru
    _

// kernel: exl2_forward.11
$region0: #{exl2_forward.11}
  #allocation0 [shape = 'u32[]', space=smem, size = 0x4, offset = 0x4, fixed_abs, tag = 'smem constant byte address 0x4 - core index']
  #allocation1 [shape = 'u32[144,128]{1,0:T(1,128)}', space=vmem, size = 0x12000, scoped, tag = 'internal scratch']
  #allocation2 [shape = 'bf16[32,256]{1,0:T(8,128)(2,1)}', space=vmem, size = 0x4000, scoped, tag = 'scratch operand']
  %s0 = inlined_call_operand.vmem [shape: bf16[32,256], index: 0, kind: input, shape index: {}]
  %s1 = inlined_call_operand.vmem [shape: bf16[1,256], index: 1, kind: input, shape index: {}]
  %s2 = inlined_call_operand.vmem [shape: s8[256,768], index: 2, kind: input, shape index: {}]
  %s3 = inlined_call_operand.vmem [shape: f32[1,768], index: 3, kind: input, shape index: {}]
  %s4 = inlined_call_operand.vmem [shape: bf16[32,768], index: 4, kind: output, shape index: {}]
  %s5 = sld [smem:[#allocation0]]
  $region110: #{exl2_forward.11} parent=0
    _
  %s7 = ssub.s32 1, %s5
  %s8 = scalar_select 0, %s7, %s5
  $region1: #{exl2_forward.11} parent=0
    #allocation3 [shape = 'u8[131072]{0}', space=vmem, size = 0x20000, scoped, tag = 'input window, operand 2']
    #allocation4 [shape = 'u8[32768]{0}', space=vmem, size = 0x8000, scoped, tag = 'output window, operand 0']
    loop: start=0, step=1, limit=5
    $region2: #{exl2_forward.11} parent=1 // loop_pre_header
      _
    $region3: #{exl2_forward.11} parent=1 // loop_header
      %s10 = sphi 0, %s14
      %p11 = scmp.ge.s32.totalorder %s10, 5
      %s17 = sphi 0, %s29
      %s18 = sphi 0, %s25
      %s19 = sphi 0, %s17
      %s20 = sphi 0, %s18
      %s21 = sphi 0, %s19
      %s22 = sphi 0, %s20
      %s32 = sphi 0, %s34
      %s35 = sphi 0, %s32
      %s36 = sphi 0, %s35
      %s52 = sphi 0, %s36
      %s56 = sphi 0, %s56
      %s58 = sphi 0, %s56
      %s59 = sphi 0, %s58
      %s73 = sphi 0, %s59
      %s79 = sphi 0, %s81
      %s82 = sphi 0, %s79
      %s83 = sphi 0, %s82
      %s99 = sphi 0, %s83
      %s105 = sphi 0, %s107
      %s108 = sphi 0, %s105
      %s109 = sphi 0, %s108
      %s125 = sphi 0, %s109
      %s133 = sphi 0, %s135
      %s136 = sphi 0, %s133
      %s137 = sphi 0, %s136
      %s153 = sphi 0, %s137
    $region4: #{exl2_forward.11} parent=1 // loop_header_branch
      %13 = sbr.rel (%p11) target = $region8
    $region5: #{exl2_forward.11} parent=1 // loop_body
      %s15 = ssub.s32 %s10, 1
      %s16 = ssub.s32 %s10, 2
      %s23 = sadd.s32 1, %s18
      %p24 = scmp.ge.s32.totalorder %s23, 3
      %s25 = scalar_select %p24, 0, %s23
      %s26 = sadd.s32 1, %s17
      %s27 = scalar_select %p24, %s26, %s17
      %p28 = scmp.ge.s32.totalorder %s27, 1
      %s29 = scalar_select %p28, 0, %s27
      %s30 = ssub.s32 %s17, %s29
      %p31 = scmp.eq.s32.totalorder %s30, 0
      %s33 = sadd.s32 %s32, 1
      %s34 = scalar_select %p31, %s32, %s33
      %p37 = pneg %p31
      %p38 = scmp.eq.s32.totalorder %s10, 2
      %p39 = por %p37, %p38
      %p40 = scmp.ne.s32.totalorder %s32, %s35
      %p41 = scmp.eq.s32.totalorder %s10, 0
      %p42 = por %p40, %p41
      %p43 = scmp.ne.s32.totalorder %s32, %s35
      %p44 = scmp.eq.s32.totalorder %s15, 2
      %p45 = por %p43, %p44
      %p46 = scmp.ne.s32.totalorder %s35, %s36
      %p47 = scmp.eq.s32.totalorder %s15, 0
      %p48 = por %p46, %p47
      %p49 = scmp.ne.s32.totalorder %s35, %s36
      %p50 = scmp.eq.s32.totalorder %s16, 2
      %p51 = por %p49, %p50
      %p53 = scmp.ne.s32.totalorder %s36, %s52
      %p54 = scmp.eq.s32.totalorder %s16, 0
      %p55 = por %p53, %p54
      %s57 = sadd.s32 %s56, 1
      %p60 = scmp.eq.s32.totalorder %s10, 2
      %p61 = scmp.ne.s32.totalorder %s56, %s58
      %p62 = scmp.eq.s32.totalorder %s10, 0
      %p63 = por %p61, %p62
      %p64 = scmp.ne.s32.totalorder %s56, %s58
      %p65 = scmp.eq.s32.totalorder %s15, 2
      %p66 = por %p64, %p65
      %p67 = scmp.ne.s32.totalorder %s58, %s59
      %p68 = scmp.eq.s32.totalorder %s15, 0
      %p69 = por %p67, %p68
      %p70 = scmp.ne.s32.totalorder %s58, %s59
      %p71 = scmp.eq.s32.totalorder %s16, 2
      %p72 = por %p70, %p71
      %p74 = scmp.ne.s32.totalorder %s59, %s73
      %p75 = scmp.eq.s32.totalorder %s16, 0
      %p76 = por %p74, %p75
      %s77 = ssub.s32 %s18, %s25
      %p78 = scmp.eq.s32.totalorder %s77, 0
      %s80 = sadd.s32 %s79, 1
      %s81 = scalar_select %p78, %s79, %s80
      %p84 = pneg %p78
      %p85 = scmp.eq.s32.totalorder %s10, 2
      %p86 = por %p84, %p85
      %p87 = scmp.ne.s32.totalorder %s79, %s82
      %p88 = scmp.eq.s32.totalorder %s10, 0
      %p89 = por %p87, %p88
      %p90 = scmp.ne.s32.totalorder %s79, %s82
      %p91 = scmp.eq.s32.totalorder %s15, 2
      %p92 = por %p90, %p91
      %p93 = scmp.ne.s32.totalorder %s82, %s83
      %p94 = scmp.eq.s32.totalorder %s15, 0
      %p95 = por %p93, %p94
      %p96 = scmp.ne.s32.totalorder %s82, %s83
      %p97 = scmp.eq.s32.totalorder %s16, 2
      %p98 = por %p96, %p97
      %p100 = scmp.ne.s32.totalorder %s83, %s99
      %p101 = scmp.eq.s32.totalorder %s16, 0
      %p102 = por %p100, %p101
      %s103 = ssub.s32 %s18, %s25
      %p104 = scmp.eq.s32.totalorder %s103, 0
      %s106 = sadd.s32 %s105, 1
      %s107 = scalar_select %p104, %s105, %s106
      %p110 = pneg %p104
      %p111 = scmp.eq.s32.totalorder %s10, 2
      %p112 = por %p110, %p111
      %p113 = scmp.ne.s32.totalorder %s105, %s108
      %p114 = scmp.eq.s32.totalorder %s10, 0
      %p115 = por %p113, %p114
      %p116 = scmp.ne.s32.totalorder %s105, %s108
      %p117 = scmp.eq.s32.totalorder %s15, 2
      %p118 = por %p116, %p117
      %p119 = scmp.ne.s32.totalorder %s108, %s109
      %p120 = scmp.eq.s32.totalorder %s15, 0
      %p121 = por %p119, %p120
      %p122 = scmp.ne.s32.totalorder %s108, %s109
      %p123 = scmp.eq.s32.totalorder %s16, 2
      %p124 = por %p122, %p123
      %p126 = scmp.ne.s32.totalorder %s109, %s125
      %p127 = scmp.eq.s32.totalorder %s16, 0
      %p128 = por %p126, %p127
      %s129 = ssub.s32 %s17, %s29
      %s130 = ssub.s32 %s18, %s25
      %s131 = sor.u32 %s129, %s130
      %p132 = scmp.eq.s32.totalorder %s131, 0
      %s134 = sadd.s32 %s133, 1
      %s135 = scalar_select %p132, %s133, %s134
      %p138 = pneg %p132
      %p139 = scmp.eq.s32.totalorder %s10, 2
      %p140 = por %p138, %p139
      %p141 = scmp.ne.s32.totalorder %s133, %s136
      %p142 = scmp.eq.s32.totalorder %s10, 0
      %p143 = por %p141, %p142
      %p144 = scmp.ne.s32.totalorder %s133, %s136
      %p145 = scmp.eq.s32.totalorder %s15, 2
      %p146 = por %p144, %p145
      %p147 = scmp.ne.s32.totalorder %s136, %s137
      %p148 = scmp.eq.s32.totalorder %s15, 0
      %p149 = por %p147, %p148
      %p150 = scmp.ne.s32.totalorder %s136, %s137
      %p151 = scmp.eq.s32.totalorder %s16, 2
      %p152 = por %p150, %p151
      %p154 = scmp.ne.s32.totalorder %s137, %s153
      %p155 = scmp.eq.s32.totalorder %s16, 0
      %p156 = por %p154, %p155
      %p157 = scmp.le.s32.totalorder 1, %s10
      %p158 = scmp.lt.s32.totalorder %s10, 4
      %p159 = pnand %p157, %p158
      %p160 = pneg %p159
      // Predicated region
      $region9: #{exl2_forward.11} parent=5 // pred_check
        _
      $region10: #{exl2_forward.11} parent=5 // pred_check_branch
        %162 = sbr.rel (%p159) target = $region12
      $region11: #{exl2_forward.11} parent=5 // pred_region
        %s163 = ssub.s32 %s10, 1
        // Predicated region
        $region13: #{exl2_forward.11} parent=11 // pred_check
          %p164 = pneg %p48
        $region14: #{exl2_forward.11} parent=11 // pred_check_branch
          %166 = sbr.rel (%p164) target = $region16
        $region15: #{exl2_forward.11} parent=11 // pred_region
          %s167 = smul.u32 4, %s19
          %p168 = scmp.lt.s32.totalorder %s167, 3
          %s169 = scalar_select %p168, %s167, 3
          %s170 = smul.addr %s169, 2
          %s171 = smul.addr %s170, 4
          %s172 = scalar_lea.vmem %s0, %s171
          %s173 = smul.u32 4, %s19
        $region16: #{exl2_forward.11} parent=11 // pred_fallthru
          _
        // Predicated region
        $region17: #{exl2_forward.11} parent=11 // pred_check
          %p174 = pneg %p69
        $region18: #{exl2_forward.11} parent=11 // pred_check_branch
          %176 = sbr.rel (%p174) target = $region20
        $region19: #{exl2_forward.11} parent=11 // pred_region
          _
        $region20: #{exl2_forward.11} parent=11 // pred_fallthru
          _
      $region12: #{exl2_forward.11} parent=5 // pred_fallthru
        _
      %p177 = scmp.lt.s32.totalorder %s10, 3
      // Predicated region
      $region21: #{exl2_forward.11} parent=5 // pred_check
        %p178 = pneg %p177
      $region22: #{exl2_forward.11} parent=5 // pred_check_branch
        %180 = sbr.rel (%p178) target = $region24
      $region23: #{exl2_forward.11} parent=5 // pred_region
        // Predicated region
        $region25: #{exl2_forward.11} parent=23 // pred_check
          %p181 = pneg %p89
        $region26: #{exl2_forward.11} parent=23 // pred_check_branch
          %183 = sbr.rel (%p181) target = $region28
        $region27: #{exl2_forward.11} parent=23 // pred_region
          %s184 = sand.u32 %s79, 1
          %s185 = sand.u32 %s79, 1
          %s186 = smul.addr %s185, 128
          %s187 = scalar_lea.vmem [#allocation3], %s186
          %s188 = smul.u32 2, %s18
          %s189 = smul.addr %s188, 8
          %s190 = scalar_lea.vmem %s2, %s189
          // Predicated region
          $region29: #{exl2_forward.11} parent=27 // pred_check
            _
          $region30: #{exl2_forward.11} parent=27 // pred_check_branch
            %192 = sbr.rel (0) target = $region32
          $region31: #{exl2_forward.11} parent=27 // pred_region
            // Predicated region
            $region33: #{exl2_forward.11} parent=31 // pred_check
              _
            $region34: #{exl2_forward.11} parent=31 // pred_check_branch
              %194 = sbr.rel (0) target = $region36
            $region35: #{exl2_forward.11} parent=31 // pred_region
              loop: start=0, step=1, limit=1
              $region37: #{exl2_forward.11} parent=35 // loop_pre_header
                _
              $region38: #{exl2_forward.11} parent=35 // loop_header
                %s196 = sphi 0, %s200
                %p197 = scmp.ge.s32.totalorder %s196, 1
                %s201 = sphi %s190, %s190
                %s202 = sphi %s187, %s187
              $region39: #{exl2_forward.11} parent=35 // loop_header_branch
                %199 = sbr.rel (%p197) target = $region43
              $region40: #{exl2_forward.11} parent=35 // loop_body
                %v203 = vld [vmem:[%s201] sm:$0xff]
                %204 = vst [vmem:[%s202] sm:$0xff] %v203
                %v205 = vld [vmem:[%s201 + $0x8] sm:$0xff]
                %206 = vst [vmem:[%s202 + $0x8] sm:$0xff] %v205
                %v207 = vld [vmem:[%s201 + $0x30] sm:$0xff]
                %208 = vst [vmem:[%s202 + $0x10] sm:$0xff] %v207
                %v209 = vld [vmem:[%s201 + $0x38] sm:$0xff]
                %210 = vst [vmem:[%s202 + $0x18] sm:$0xff] %v209
                %v211 = vld [vmem:[%s201 + $0x60] sm:$0xff]
                %212 = vst [vmem:[%s202 + $0x20] sm:$0xff] %v211
                %v213 = vld [vmem:[%s201 + $0x68] sm:$0xff]
                %214 = vst [vmem:[%s202 + $0x28] sm:$0xff] %v213
                %v215 = vld [vmem:[%s201 + $0x90] sm:$0xff]
                %216 = vst [vmem:[%s202 + $0x30] sm:$0xff] %v215
                %v217 = vld [vmem:[%s201 + $0x98] sm:$0xff]
                %218 = vst [vmem:[%s202 + $0x38] sm:$0xff] %v217
                %v219 = vld [vmem:[%s201 + $0xc0] sm:$0xff]
                %220 = vst [vmem:[%s202 + $0x40] sm:$0xff] %v219
                %v221 = vld [vmem:[%s201 + $0xc8] sm:$0xff]
                %222 = vst [vmem:[%s202 + $0x48] sm:$0xff] %v221
                %v223 = vld [vmem:[%s201 + $0xf0] sm:$0xff]
                %224 = vst [vmem:[%s202 + $0x50] sm:$0xff] %v223
                %v225 = vld [vmem:[%s201 + $0xf8] sm:$0xff]
                %226 = vst [vmem:[%s202 + $0x58] sm:$0xff] %v225
                %v227 = vld [vmem:[%s201 + $0x120] sm:$0xff]
                %228 = vst [vmem:[%s202 + $0x60] sm:$0xff] %v227
                %v229 = vld [vmem:[%s201 + $0x128] sm:$0xff]
                %230 = vst [vmem:[%s202 + $0x68] sm:$0xff] %v229
                %v231 = vld [vmem:[%s201 + $0x150] sm:$0xff]
                %232 = vst [vmem:[%s202 + $0x70] sm:$0xff] %v231
                %v233 = vld [vmem:[%s201 + $0x158] sm:$0xff]
                %234 = vst [vmem:[%s202 + $0x78] sm:$0xff] %v233
              $region41: #{exl2_forward.11} parent=35 // loop_footer
                %s200 = sadd.s32 1, %s196
              $region42: #{exl2_forward.11} parent=35 // loop_footer_branch
                %195 = sbr.rel target = $region38
              $region43: #{exl2_forward.11} parent=35 // loop_exit
                _
            $region36: #{exl2_forward.11} parent=31 // pred_fallthru
              _
            // Predicated region
            $region44: #{exl2_forward.11} parent=31 // pred_check
              _
            $region45: #{exl2_forward.11} parent=31 // pred_check_branch
              %236 = sbr.rel target = $region47
            $region46: #{exl2_forward.11} parent=31 // pred_region
              _
            $region47: #{exl2_forward.11} parent=31 // pred_fallthru
              _
          $region32: #{exl2_forward.11} parent=27 // pred_fallthru
            _
          %237 = vnop
        $region28: #{exl2_forward.11} parent=23 // pred_fallthru
          _
        // Predicated region
        $region48: #{exl2_forward.11} parent=23 // pred_check
          %p238 = pneg %p115
        $region49: #{exl2_forward.11} parent=23 // pred_check_branch
          %240 = sbr.rel (%p238) target = $region51
        $region50: #{exl2_forward.11} parent=23 // pred_region
          %s241 = smul.u32 2, %s18
          %p242 = scmp.lt.s32.totalorder %s241, 5
          %s243 = scalar_select %p242, %s241, 5
          %s244 = scalar_lea.vmem %s3, %s243
          %s245 = smul.u32 2, %s18
        $region51: #{exl2_forward.11} parent=23 // pred_fallthru
          _
      $region24: #{exl2_forward.11} parent=5 // pred_fallthru
        _
      %p246 = scmp.le.s32.totalorder 1, %s10
      %p247 = scmp.lt.s32.totalorder %s10, 4
      %p248 = pnand %p246, %p247
      %p249 = pneg %p248
      // Predicated region
      $region52: #{exl2_forward.11} parent=5 // pred_check
        _
      $region53: #{exl2_forward.11} parent=5 // pred_check_branch
        %251 = sbr.rel (%p248) target = $region55
      $region54: #{exl2_forward.11} parent=5 // pred_region
        %s252 = ssub.s32 %s10, 1
        %s253 = sand.u32 %s82, 1
        %s254 = sand.u32 %s82, 1
        %s255 = smul.addr %s254, 128
        %s256 = scalar_lea.vmem [#allocation3], %s255
        // Predicated region
        $region56: #{exl2_forward.11} parent=54 // pred_check
          %p257 = pneg %p95
        $region57: #{exl2_forward.11} parent=54 // pred_check_branch
          %259 = sbr.rel (%p257) target = $region59
        $region58: #{exl2_forward.11} parent=54 // pred_region
          _
        $region59: #{exl2_forward.11} parent=54 // pred_fallthru
          _
        %s260 = smul.u32 4, %s19
        %p261 = scmp.lt.s32.totalorder %s260, 3
        %s262 = scalar_select %p261, %s260, 3
        %s263 = smul.addr %s262, 2
        %s264 = smul.addr %s263, 4
        %s265 = scalar_lea.vmem %s0, %s264
        %p266 = pneg %p48
        %p267 = pneg %p45
        %p268 = pneg %p69
        %p269 = pneg %p66
        %s270 = sand.u32 %s82, 1
        %s271 = sand.u32 %s82, 1
        %s272 = smul.addr %s271, 128
        %s273 = scalar_lea.vmem [#allocation3], %s272
        %p274 = pneg %p95
        %p275 = pneg %p92
        %s276 = smul.u32 2, %s20
        %p277 = scmp.lt.s32.totalorder %s276, 5
        %s278 = scalar_select %p277, %s276, 5
        %s279 = scalar_lea.vmem %s3, %s278
        %p280 = pneg %p121
        %p281 = pneg %p118
        %p282 = pneg %p149
        %p283 = pneg %p146
        %s284 = sand.u32 %s136, 1
        %s285 = sand.u32 %s136, 1
        %s286 = smul.addr %s285, 32
        %s287 = scalar_lea.vmem [#allocation4], %s286
        %s288 = smul.u32 4, %s19
        %p289 = scmp.lt.s32.totalorder %s288, 3
        %s290 = scalar_select %p289, %s288, 3
        %s291 = smul.addr %s290, 2
        %s292 = smul.addr %s291, 4
        %s293 = scalar_lea.vmem %s0, %s292
        %s294 = smul.u32 4, %s19
        %s295 = smul.u32 2, %s20
        %s296 = smul.u32 2, %s20
        %p297 = scmp.lt.s32.totalorder %s296, 5
        %s298 = scalar_select %p297, %s296, 5
        %s299 = scalar_lea.vmem %s3, %s298
        %s300 = smul.u32 2, %s20
        %s301 = smul.u32 4, %s19
        %s302 = smul.u32 2, %s20
        %p303 = scmp.eq.s32.totalorder %s20, 0
        // Predicated region
        $region60: #{exl2_forward.11} parent=54 // pred_check
          %p304 = pneg %p303
        $region61: #{exl2_forward.11} parent=54 // pred_check_branch
          %306 = sbr.rel (%p304) target = $region63
        $region62: #{exl2_forward.11} parent=54 // pred_region
          %v307 = vld [vmem:[%s293] sm:$0xff]
          %v308 = vld [vmem:[%s293 + $0x8] sm:$0xff]
          %v309 = vld [vmem:[%s293 + $0x10] sm:$0xff]
          %v310 = vld [vmem:[%s293 + $0x18] sm:$0xff]
          %v311 = vunpack.c.l.bf16 %v307
          %v312 = vunpack.c.h.bf16 %v307
          %v313 = vunpack.c.l.bf16 %v308
          %v314 = vunpack.c.h.bf16 %v308
          %v315 = vunpack.c.l.bf16 %v309
          %v316 = vunpack.c.h.bf16 %v309
          %v317 = vunpack.c.l.bf16 %v310
          %v318 = vunpack.c.h.bf16 %v310
          %v319 = vmul.f32 %v311, %v311
          %v320 = vmul.f32 %v312, %v312
          %v321 = vmul.f32 %v313, %v313
          %v322 = vmul.f32 %v314, %v314
          %v323 = vmul.f32 %v315, %v315
          %v324 = vmul.f32 %v316, %v316
          %v325 = vmul.f32 %v317, %v317
          %v326 = vmul.f32 %v318, %v318
          %v327 = vadd.f32 %v319, %v320
          %328 = vadd.xlane.f32.xlu0 %v327
          %v329 = vpop.xlane.xlu0 %328
          %v330 = vadd.f32 %v321, %v322
          %331 = vadd.xlane.f32.xlu0 %v330
          %v332 = vpop.xlane.xlu0 %331
          %v333 = vadd.f32 %v323, %v324
          %334 = vadd.xlane.f32.xlu0 %v333
          %v335 = vpop.xlane.xlu0 %334
          %v336 = vadd.f32 %v325, %v326
          %337 = vadd.xlane.f32.xlu0 %v336
          %v338 = vpop.xlane.xlu0 %337
          %v339 = vrcp.pop 256.0
          %v340 = vmul.f32 %v329, %v339
          %v341 = vmul.f32 %v332, %v339
          %v342 = vmul.f32 %v335, %v339
          %v343 = vmul.f32 %v338, %v339
          %v344 = vadd.f32 %v340, 1e-06
          %v345 = vadd.f32 %v341, 1e-06
          %v346 = vadd.f32 %v342, 1e-06
          %v347 = vadd.f32 %v343, 1e-06
          %v348 = vrsqrt.pop %v344
          %v349 = vrsqrt.pop %v345
          %v350 = vrsqrt.pop %v346
          %v351 = vrsqrt.pop %v347
          %v352 = vmul.f32 %v311, %v348
          %v353 = vmul.f32 %v312, %v348
          %v354 = vmul.f32 %v313, %v349
          %v355 = vmul.f32 %v314, %v349
          %v356 = vmul.f32 %v315, %v350
          %v357 = vmul.f32 %v316, %v350
          %v358 = vmul.f32 %v317, %v351
          %v359 = vmul.f32 %v318, %v351
          %v360 = vld [vmem:[%s1] sm:$0x3]
          %v361 = vunpack.c.l.bf16 %v360
          %v363 = vlaneseq
          %v364 = vshrl.u32 %v363, 7
          %v365 = vsub.s32 0, %v364
          %v366 = vrot.slane %v361, %v365
          %v367 = vlaneseq
          %v368 = vshrl.u32 %v367, 7
          %v369 = vsub.s32 2, %v368
          %v370 = vrot.slane %v361, %v369
          %v373 = vlaneseq
          %v374 = vshrl.u32 %v373, 7
          %v375 = vsub.s32 0, %v374
          %v376 = vrot.slane %v366, %v375
          %v377 = vlaneseq
          %v378 = vshrl.u32 %v377, 7
          %v379 = vsub.s32 0, %v378
          %v380 = vrot.slane %v370, %v379
          %v381 = vmul.f32 %v352, %v376
          %v382 = vmul.f32 %v353, %v380
          %v383 = vmul.f32 %v354, %v376
          %v384 = vmul.f32 %v355, %v380
          %v385 = vmul.f32 %v356, %v376
          %v386 = vmul.f32 %v357, %v380
          %v387 = vmul.f32 %v358, %v376
          %v388 = vmul.f32 %v359, %v380
          %v389 = vpack.c.bf16 %v383, %v381
          %v390 = vpack.c.bf16 %v384, %v382
          %v391 = vpack.c.bf16 %v387, %v385
          %v392 = vpack.c.bf16 %v388, %v386
          %v397 = vunpack.c.l.b16 %v389
          %v398 = vunpack.c.l.b16 %v390
          %v399 = vunpack.c.h.b16 %v389
          %v400 = vunpack.c.h.b16 %v390
          %v401 = vunpack.c.l.b16 %v391
          %v402 = vunpack.c.l.b16 %v392
          %v403 = vunpack.c.h.b16 %v391
          %v404 = vunpack.c.h.b16 %v392
          %v405 = vpack.c.b16 %v398, %v397
          %v406 = vpack.c.b16 %v400, %v399
          %v407 = vpack.c.b16 %v402, %v401
          %v408 = vpack.c.b16 %v404, %v403
          %413 = vst [vmem:[#allocation2] sm:$0xff] %v405
          %414 = vst [vmem:[#allocation2 + $0x8] sm:$0xff] %v406
          %415 = vst [vmem:[#allocation2 + $0x10] sm:$0xff] %v407
          %416 = vst [vmem:[#allocation2 + $0x18] sm:$0xff] %v408
        $region63: #{exl2_forward.11} parent=54 // pred_fallthru
          _
        %v417 = vld [vmem:[%s256] sm:$0xff]
        %v418 = vld [vmem:[%s256 + $0x8] sm:$0xff]
        %v419 = vld [vmem:[%s256 + $0x10] sm:$0xff]
        %v420 = vld [vmem:[%s256 + $0x18] sm:$0xff]
        %v421 = vld [vmem:[%s256 + $0x20] sm:$0xff]
        %v422 = vld [vmem:[%s256 + $0x28] sm:$0xff]
        %v423 = vld [vmem:[%s256 + $0x30] sm:$0xff]
        %v424 = vld [vmem:[%s256 + $0x38] sm:$0xff]
        %v425 = vld [vmem:[%s256 + $0x40] sm:$0xff]
        %v426 = vld [vmem:[%s256 + $0x48] sm:$0xff]
        %v427 = vld [vmem:[%s256 + $0x50] sm:$0xff]
        %v428 = vld [vmem:[%s256 + $0x58] sm:$0xff]
        %v429 = vld [vmem:[%s256 + $0x60] sm:$0xff]
        %v430 = vld [vmem:[%s256 + $0x68] sm:$0xff]
        %v431 = vld [vmem:[%s256 + $0x70] sm:$0xff]
        %v432 = vld [vmem:[%s256 + $0x78] sm:$0xff]
        %v433 = vunpack.c.l.s8.bf16 %v417
        %v434 = vunpack.c.l.s8.bf16 %v418
        %v435 = vunpack.c.h.s8.bf16 %v417
        %v436 = vunpack.c.h.s8.bf16 %v418
        %v437 = vunpack.c.l.s8.bf16 %v419
        %v438 = vunpack.c.l.s8.bf16 %v420
        %v439 = vunpack.c.h.s8.bf16 %v419
        %v440 = vunpack.c.h.s8.bf16 %v420
        %v441 = vunpack.c.l.s8.bf16 %v421
        %v442 = vunpack.c.l.s8.bf16 %v422
        %v443 = vunpack.c.h.s8.bf16 %v421
        %v444 = vunpack.c.h.s8.bf16 %v422
        %v445 = vunpack.c.l.s8.bf16 %v423
        %v446 = vunpack.c.l.s8.bf16 %v424
        %v447 = vunpack.c.h.s8.bf16 %v423
        %v448 = vunpack.c.h.s8.bf16 %v424
        %v449 = vunpack.c.l.s8.bf16 %v425
        %v450 = vunpack.c.l.s8.bf16 %v426
        %v451 = vunpack.c.h.s8.bf16 %v425
        %v452 = vunpack.c.h.s8.bf16 %v426
        %v453 = vunpack.c.l.s8.bf16 %v427
        %v454 = vunpack.c.l.s8.bf16 %v428
        %v455 = vunpack.c.h.s8.bf16 %v427
        %v456 = vunpack.c.h.s8.bf16 %v428
        %v457 = vunpack.c.l.s8.bf16 %v429
        %v458 = vunpack.c.l.s8.bf16 %v430
        %v459 = vunpack.c.h.s8.bf16 %v429
        %v460 = vunpack.c.h.s8.bf16 %v430
        %v461 = vunpack.c.l.s8.bf16 %v431
        %v462 = vunpack.c.l.s8.bf16 %v432
        %v463 = vunpack.c.h.s8.bf16 %v431
        %v464 = vunpack.c.h.s8.bf16 %v432
        %v465 = vld [vmem:[#allocation2] sm:$0xff]
        %v466 = vld [vmem:[#allocation2 + $0x8] sm:$0xff]
        %v467 = vld [vmem:[#allocation2 + $0x10] sm:$0xff]
        %v468 = vld [vmem:[#allocation2 + $0x18] sm:$0xff]
        %v473 = vunpack.c.l.b16 %v465
        %v474 = vunpack.c.h.b16 %v465
        %v475 = vunpack.c.l.b16 %v466
        %v476 = vunpack.c.h.b16 %v466
        %v477 = vunpack.c.l.b16 %v467
        %v478 = vunpack.c.h.b16 %v467
        %v479 = vunpack.c.l.b16 %v468
        %v480 = vunpack.c.h.b16 %v468
        %v481 = vpack.c.b16 %v475, %v473
        %v482 = vpack.c.b16 %v476, %v474
        %v483 = vpack.c.b16 %v479, %v477
        %v484 = vpack.c.b16 %v480, %v478
        %489 = vmatprep.subr.bf16.mxu0 %v448
        %490 = vmatpush1.bf16.msra.mxu0 %v447
        %491 = vmatprep.subr.bf16.mxu0 %v446
        %492 = vmatpush1.bf16.msra.mxu0 %v445
        %493 = vmatprep.subr.bf16.mxu0 %v444
        %494 = vmatpush1.bf16.msra.mxu0 %v443
        %495 = vmatprep.subr.bf16.mxu0 %v442
        %496 = vmatpush1.bf16.msra.mxu0 %v441
        %497 = vmatprep.subr.bf16.mxu0 %v440
        %498 = vmatpush1.bf16.msra.mxu0 %v439
        %499 = vmatprep.subr.bf16.mxu0 %v438
        %500 = vmatpush1.bf16.msra.mxu0 %v437
        %501 = vmatprep.subr.bf16.mxu0 %v436
        %502 = vmatpush1.bf16.msra.mxu0 %v435
        %503 = vmatprep.subr.bf16.mxu0 %v434
        %504 = vmatpush1.bf16.msra.mxu0 %v433
        %505 = vmatprep.subr.bf16.mxu0 %v464
        %506 = vmatpush2.bf16.msra.mxu0 %v463
        %507 = vmatprep.subr.bf16.mxu0 %v462
        %508 = vmatpush2.bf16.msra.mxu0 %v461
        %509 = vmatprep.subr.bf16.mxu0 %v460
        %510 = vmatpush2.bf16.msra.mxu0 %v459
        %511 = vmatprep.subr.bf16.mxu0 %v458
        %512 = vmatpush2.bf16.msra.mxu0 %v457
        %513 = vmatprep.subr.bf16.mxu0 %v456
        %514 = vmatpush2.bf16.msra.mxu0 %v455
        %515 = vmatprep.subr.bf16.mxu0 %v454
        %516 = vmatpush2.bf16.msra.mxu0 %v453
        %517 = vmatprep.subr.bf16.mxu0 %v452
        %518 = vmatpush2.bf16.msra.mxu0 %v451
        %519 = vmatprep.subr.bf16.mxu0 %v450
        %520 = vmatpush2.bf16.msra.mxu0 %v449
        %521 = vmatprep.mubr.bf16.mxu0 %v482
        %522 = vmatmul.mubr.bf16.gmra.mxu0 %v481
        %v523 = vpop.f32.mrf.mxu0
        %v524 = vadd.f32 0.0, %v523
        %v525 = vpop.f32.mrf.mxu0
        %v526 = vadd.f32 0.0, %v525
        %v527 = vpop.f32.mrf.mxu0
        %v528 = vadd.f32 0.0, %v527
        %v529 = vpop.f32.mrf.mxu0
        %v530 = vadd.f32 0.0, %v529
        %531 = vmatprep.mubr.bf16.mxu0 %v484
        %532 = vmatmul.mubr.bf16.gmra.mxu0 %v483
        %v533 = vpop.f32.mrf.mxu0
        %v534 = vadd.f32 0.0, %v533
        %v535 = vpop.f32.mrf.mxu0
        %v536 = vadd.f32 0.0, %v535
        %v537 = vpop.f32.mrf.mxu0
        %v538 = vadd.f32 0.0, %v537
        %v539 = vpop.f32.mrf.mxu0
        %v540 = vadd.f32 0.0, %v539
        %541 = vdwg.mxu0
        %v542 = vld [vmem:[%s299] sm:$0x3]
        %v544 = vlaneseq
        %v545 = vshrl.u32 %v544, 7
        %v546 = vsub.s32 0, %v545
        %v547 = vrot.slane %v542, %v546
        %v548 = vlaneseq
        %v549 = vshrl.u32 %v548, 7
        %v550 = vsub.s32 1, %v549
        %v551 = vrot.slane %v542, %v550
        %v554 = vmul.f32 %v524, %v547
        %v555 = vmul.f32 %v526, %v551
        %v556 = vmul.f32 %v528, %v547
        %v557 = vmul.f32 %v530, %v551
        %v558 = vmul.f32 %v534, %v547
        %v559 = vmul.f32 %v536, %v551
        %v560 = vmul.f32 %v538, %v547
        %v561 = vmul.f32 %v540, %v551
        %v562 = vpack.c.bf16 %v556, %v554
        %v563 = vpack.c.bf16 %v557, %v555
        %v564 = vpack.c.bf16 %v560, %v558
        %v565 = vpack.c.bf16 %v561, %v559
        %v570 = vunpack.c.l.b16 %v562
        %v571 = vunpack.c.l.b16 %v563
        %v572 = vunpack.c.h.b16 %v562
        %v573 = vunpack.c.h.b16 %v563
        %v574 = vunpack.c.l.b16 %v564
        %v575 = vunpack.c.l.b16 %v565
        %v576 = vunpack.c.h.b16 %v564
        %v577 = vunpack.c.h.b16 %v565
        %v578 = vpack.c.b16 %v571, %v570
        %v579 = vpack.c.b16 %v573, %v572
        %v580 = vpack.c.b16 %v575, %v574
        %v581 = vpack.c.b16 %v577, %v576
        %586 = vst [vmem:[%s287] sm:$0xff] %v578
        %587 = vst [vmem:[%s287 + $0x8] sm:$0xff] %v579
        %588 = vst [vmem:[%s287 + $0x10] sm:$0xff] %v580
        %589 = vst [vmem:[%s287 + $0x18] sm:$0xff] %v581
        %s590 = sand.u32 %s136, 1
        %s591 = sand.u32 %s136, 1
        %s592 = smul.addr %s591, 32
        %s593 = scalar_lea.vmem [#allocation4], %s592
        // Predicated region
        $region64: #{exl2_forward.11} parent=54 // pred_check
          %p594 = pneg %p146
        $region65: #{exl2_forward.11} parent=54 // pred_check_branch
          %596 = sbr.rel (%p594) target = $region67
        $region66: #{exl2_forward.11} parent=54 // pred_region
          %s597 = smul.u32 4, %s19
          %s598 = smul.u32 2, %s20
          %s599 = smul.addr %s597, 6
          %s600 = sadd.s32 %s598, %s599
          %s601 = smul.addr %s600, 4
          %s602 = scalar_lea.vmem %s4, %s601
          // Predicated region
          $region68: #{exl2_forward.11} parent=66 // pred_check
            _
          $region69: #{exl2_forward.11} parent=66 // pred_check_branch
            %604 = sbr.rel (0) target = $region71
          $region70: #{exl2_forward.11} parent=66 // pred_region
            // Predicated region
            $region72: #{exl2_forward.11} parent=70 // pred_check
              _
            $region73: #{exl2_forward.11} parent=70 // pred_check_branch
              %606 = sbr.rel (0) target = $region75
            $region74: #{exl2_forward.11} parent=70 // pred_region
              // Predicated region
              $region87: #{exl2_forward.11} parent=74 // pred_check
                _
              $region88: #{exl2_forward.11} parent=74 // pred_check_branch
                %628 = sbr.rel (0) target = $region90
              $region89: #{exl2_forward.11} parent=74 // pred_region
                loop: start=0, step=1, limit=1
                $region91: #{exl2_forward.11} parent=89 // loop_pre_header
                  _
                $region92: #{exl2_forward.11} parent=89 // loop_header
                  %s630 = sphi 0, %s634
                  %p631 = scmp.ge.s32.totalorder %s630, 1
                  %s635 = sphi %s593, %s593
                  %s636 = sphi %s602, %s602
                $region93: #{exl2_forward.11} parent=89 // loop_header_branch
                  %633 = sbr.rel (%p631) target = $region97
                $region94: #{exl2_forward.11} parent=89 // loop_body
                  %v637 = vld [vmem:[%s635] sm:$0xff]
                  %638 = vst [vmem:[%s636] sm:$0xff] %v637
                  %v639 = vld [vmem:[%s635 + $0x8] sm:$0xff]
                  %640 = vst [vmem:[%s636 + $0x18] sm:$0xff] %v639
                  %v641 = vld [vmem:[%s635 + $0x10] sm:$0xff]
                  %642 = vst [vmem:[%s636 + $0x30] sm:$0xff] %v641
                  %v643 = vld [vmem:[%s635 + $0x18] sm:$0xff]
                  %644 = vst [vmem:[%s636 + $0x48] sm:$0xff] %v643
                $region95: #{exl2_forward.11} parent=89 // loop_footer
                  %s634 = sadd.s32 1, %s630
                $region96: #{exl2_forward.11} parent=89 // loop_footer_branch
                  %629 = sbr.rel target = $region92
                $region97: #{exl2_forward.11} parent=89 // loop_exit
                  _
              $region90: #{exl2_forward.11} parent=74 // pred_fallthru
                _
              // Predicated region
              $region98: #{exl2_forward.11} parent=74 // pred_check
                _
              $region99: #{exl2_forward.11} parent=74 // pred_check_branch
                %646 = sbr.rel target = $region101
              $region100: #{exl2_forward.11} parent=74 // pred_region
                _
              $region101: #{exl2_forward.11} parent=74 // pred_fallthru
                _
            $region75: #{exl2_forward.11} parent=70 // pred_fallthru
              _
            // Predicated region
            $region76: #{exl2_forward.11} parent=70 // pred_check
              _
            $region77: #{exl2_forward.11} parent=70 // pred_check_branch
              %608 = sbr.rel target = $region79
            $region78: #{exl2_forward.11} parent=70 // pred_region
              %s610 = ssub.s32 256, 1
              loop: start=0, step=1, limit=1
              $region80: #{exl2_forward.11} parent=78 // loop_pre_header
                _
              $region81: #{exl2_forward.11} parent=78 // loop_header
                %s612 = sphi 0, %s616
                %p613 = scmp.ge.s32.totalorder %s612, 1
                %s617 = sphi %s593, %s593
                %s618 = sphi %s602, %s602
              $region82: #{exl2_forward.11} parent=78 // loop_header_branch
                %615 = sbr.rel (%p613) target = $region86
              $region83: #{exl2_forward.11} parent=78 // loop_body
                %v619 = vld [vmem:[%s617] sm:%s610]
                %620 = vst [vmem:[%s618] sm:%s610] %v619
                %v621 = vld [vmem:[%s617 + $0x8] sm:%s610]
                %622 = vst [vmem:[%s618 + $0x18] sm:%s610] %v621
                %v623 = vld [vmem:[%s617 + $0x10] sm:%s610]
                %624 = vst [vmem:[%s618 + $0x30] sm:%s610] %v623
                %v625 = vld [vmem:[%s617 + $0x18] sm:%s610]
                %626 = vst [vmem:[%s618 + $0x48] sm:%s610] %v625
              $region84: #{exl2_forward.11} parent=78 // loop_footer
                %s616 = sadd.s32 1, %s612
              $region85: #{exl2_forward.11} parent=78 // loop_footer_branch
                %611 = sbr.rel target = $region81
              $region86: #{exl2_forward.11} parent=78 // loop_exit
                _
            $region79: #{exl2_forward.11} parent=70 // pred_fallthru
              _
          $region71: #{exl2_forward.11} parent=66 // pred_fallthru
            _
          %647 = vnop
        $region67: #{exl2_forward.11} parent=54 // pred_fallthru
          _
      $region55: #{exl2_forward.11} parent=5 // pred_fallthru
        _
      %p648 = scmp.le.s32.totalorder 2, %s10
      // Predicated region
      $region102: #{exl2_forward.11} parent=5 // pred_check
        %p649 = pneg %p648
      $region103: #{exl2_forward.11} parent=5 // pred_check_branch
        %651 = sbr.rel (%p649) target = $region105
      $region104: #{exl2_forward.11} parent=5 // pred_region
        %s652 = ssub.s32 %s10, 2
        // Predicated region
        $region106: #{exl2_forward.11} parent=104 // pred_check
          %p653 = pneg %p152
        $region107: #{exl2_forward.11} parent=104 // pred_check_branch
          %655 = sbr.rel (%p653) target = $region109
        $region108: #{exl2_forward.11} parent=104 // pred_region
          %s656 = sand.u32 %s137, 1
          %s657 = sand.u32 %s137, 1
          %s658 = smul.addr %s657, 32
          %s659 = scalar_lea.vmem [#allocation4], %s658
        $region109: #{exl2_forward.11} parent=104 // pred_fallthru
          _
      $region105: #{exl2_forward.11} parent=5 // pred_fallthru
        _
    $region6: #{exl2_forward.11} parent=1 // loop_footer
      %s14 = sadd.s32 1, %s10
    $region7: #{exl2_forward.11} parent=1 // loop_footer_branch
      %9 = sbr.rel target = $region3
    $region8: #{exl2_forward.11} parent=1 // loop_exit
      _

// kernel: exl2_forward.12
$region0: #{exl2_forward.12}
  #allocation0 [shape = 'u32[]', space=smem, size = 0x4, offset = 0x4, fixed_abs, tag = 'smem constant byte address 0x4 - core index']
  #allocation1 [shape = 'u32[144,128]{1,0:T(1,128)}', space=vmem, size = 0x12000, scoped, tag = 'internal scratch']
  #allocation2 [shape = 'bf16[16,128]{1,0:T(8,128)(2,1)}', space=vmem, size = 0x1000, scoped, tag = 'scratch operand']
  #allocation3 [shape = 'f32[16,1]{1,0:T(8,128)}', space=vmem, size = 0x2000, scoped, tag = 'scratch operand']
  #allocation4 [shape = 'f32[16,1]{1,0:T(8,128)}', space=vmem, size = 0x2000, scoped, tag = 'scratch operand']
  #allocation5 [shape = 'f32[16,128]{1,0:T(8,128)}', space=vmem, size = 0x2000, scoped, tag = 'scratch operand']
  %s0 = inlined_call_operand.vmem [shape: bf16[32,768], index: 0, kind: input, shape index: {}, may-alias: {0,1,2}]
  %s1 = inlined_call_operand.vmem [shape: bf16[32,768], index: 1, kind: input, shape index: {}, may-alias: {0,1,2}]
  %s2 = inlined_call_operand.vmem [shape: bf16[32,768], index: 2, kind: input, shape index: {}, may-alias: {0,1,2}]
  %s3 = inlined_call_operand.vmem [shape: bf16[32,256], index: 3, kind: output, shape index: {}]
  %s4 = sld [smem:[#allocation0]]
  $region221: #{exl2_forward.12} parent=0
    _
  %s6 = ssub.s32 1, %s4
  %s7 = scalar_select 0, %s6, %s4
  $region1: #{exl2_forward.12} parent=0
    #allocation6 [shape = 'u8[8192]{0}', space=vmem, size = 0x2000, scoped, tag = 'input window, operand 0']
    #allocation7 [shape = 'u8[8192]{0}', space=vmem, size = 0x2000, scoped, tag = 'input window, operand 1']
    #allocation8 [shape = 'u8[8192]{0}', space=vmem, size = 0x2000, scoped, tag = 'input window, operand 2']
    #allocation9 [shape = 'u8[8192]{0}', space=vmem, size = 0x2000, scoped, tag = 'output window, operand 0']
    loop: start=0, step=1, limit=6
    $region2: #{exl2_forward.12} parent=1 // loop_pre_header
      _
    $region3: #{exl2_forward.12} parent=1 // loop_header
      %s9 = sphi 0, %s13
      %p10 = scmp.ge.s32.totalorder %s9, 6
      %s16 = sphi 0, %s42
      %s17 = sphi 0, %s38
      %s18 = sphi 0, %s34
      %s19 = sphi 0, %s30
      %s20 = sphi 0, %s16
      %s21 = sphi 0, %s17
      %s22 = sphi 0, %s18
      %s23 = sphi 0, %s19
      %s24 = sphi 0, %s20
      %s25 = sphi 0, %s21
      %s26 = sphi 0, %s22
      %s27 = sphi 0, %s23
      %s49 = sphi 0, %s51
      %s52 = sphi 0, %s49
      %s53 = sphi 0, %s52
      %s69 = sphi 0, %s53
      %s85 = sphi 0, %s87
      %s88 = sphi 0, %s85
      %s89 = sphi 0, %s88
      %s105 = sphi 0, %s89
      %s121 = sphi 0, %s123
      %s124 = sphi 0, %s121
      %s125 = sphi 0, %s124
      %s141 = sphi 0, %s125
      %s151 = sphi 0, %s153
      %s154 = sphi 0, %s151
      %s155 = sphi 0, %s154
      %s171 = sphi 0, %s155
    $region4: #{exl2_forward.12} parent=1 // loop_header_branch
      %12 = sbr.rel (%p10) target = $region8
    $region5: #{exl2_forward.12} parent=1 // loop_body
      %s14 = ssub.s32 %s9, 1
      %s15 = ssub.s32 %s9, 2
      %s28 = sadd.s32 1, %s19
      %p29 = scmp.ge.s32.totalorder %s28, 1
      %s30 = scalar_select %p29, 0, %s28
      %s31 = sadd.s32 1, %s18
      %s32 = scalar_select %p29, %s31, %s18
      %p33 = scmp.ge.s32.totalorder %s32, 1
      %s34 = scalar_select %p33, 0, %s32
      %s35 = sadd.s32 1, %s17
      %s36 = scalar_select %p33, %s35, %s17
      %p37 = scmp.ge.s32.totalorder %s36, 2
      %s38 = scalar_select %p37, 0, %s36
      %s39 = sadd.s32 1, %s16
      %s40 = scalar_select %p37, %s39, %s16
      %p41 = scmp.ge.s32.totalorder %s40, 2
      %s42 = scalar_select %p41, 0, %s40
      %s43 = sadd.s32 %s17, %s18
      %s44 = sadd.s32 %s38, %s34
      %s45 = ssub.s32 %s43, %s44
      %s46 = ssub.s32 %s16, %s42
      %s47 = sor.u32 %s45, %s46
      %p48 = scmp.eq.s32.totalorder %s47, 0
      %s50 = sadd.s32 %s49, 1
      %s51 = scalar_select %p48, %s49, %s50
      %p54 = pneg %p48
      %p55 = scmp.eq.s32.totalorder %s9, 3
      %p56 = por %p54, %p55
      %p57 = scmp.ne.s32.totalorder %s49, %s52
      %p58 = scmp.eq.s32.totalorder %s9, 0
      %p59 = por %p57, %p58
      %p60 = scmp.ne.s32.totalorder %s49, %s52
      %p61 = scmp.eq.s32.totalorder %s14, 3
      %p62 = por %p60, %p61
      %p63 = scmp.ne.s32.totalorder %s52, %s53
      %p64 = scmp.eq.s32.totalorder %s14, 0
      %p65 = por %p63, %p64
      %p66 = scmp.ne.s32.totalorder %s52, %s53
      %p67 = scmp.eq.s32.totalorder %s15, 3
      %p68 = por %p66, %p67
      %p70 = scmp.ne.s32.totalorder %s53, %s69
      %p71 = scmp.eq.s32.totalorder %s15, 0
      %p72 = por %p70, %p71
      %p73 = scmp.lt.s32.totalorder %s19, %s18
      %s74 = scalar_select %p73, %s19, %s18
      %s75 = sadd.s32 %s17, %s74
      %s76 = sadd.s32 %s16, 2
      %p77 = scmp.lt.s32.totalorder %s30, %s34
      %s78 = scalar_select %p77, %s30, %s34
      %s79 = sadd.s32 %s38, %s78
      %s80 = sadd.s32 %s42, 2
      %s81 = ssub.s32 %s75, %s79
      %s82 = ssub.s32 %s76, %s80
      %s83 = sor.u32 %s81, %s82
      %p84 = scmp.eq.s32.totalorder %s83, 0
      %s86 = sadd.s32 %s85, 1
      %s87 = scalar_select %p84, %s85, %s86
      %p90 = pneg %p84
      %p91 = scmp.eq.s32.totalorder %s9, 3
      %p92 = por %p90, %p91
      %p93 = scmp.ne.s32.totalorder %s85, %s88
      %p94 = scmp.eq.s32.totalorder %s9, 0
      %p95 = por %p93, %p94
      %p96 = scmp.ne.s32.totalorder %s85, %s88
      %p97 = scmp.eq.s32.totalorder %s14, 3
      %p98 = por %p96, %p97
      %p99 = scmp.ne.s32.totalorder %s88, %s89
      %p100 = scmp.eq.s32.totalorder %s14, 0
      %p101 = por %p99, %p100
      %p102 = scmp.ne.s32.totalorder %s88, %s89
      %p103 = scmp.eq.s32.totalorder %s15, 3
      %p104 = por %p102, %p103
      %p106 = scmp.ne.s32.totalorder %s89, %s105
      %p107 = scmp.eq.s32.totalorder %s15, 0
      %p108 = por %p106, %p107
      %p109 = scmp.lt.s32.totalorder %s19, %s18
      %s110 = scalar_select %p109, %s19, %s18
      %s111 = sadd.s32 %s17, %s110
      %s112 = sadd.s32 %s16, 4
      %p113 = scmp.lt.s32.totalorder %s30, %s34
      %s114 = scalar_select %p113, %s30, %s34
      %s115 = sadd.s32 %s38, %s114
      %s116 = sadd.s32 %s42, 4
      %s117 = ssub.s32 %s111, %s115
      %s118 = ssub.s32 %s112, %s116
      %s119 = sor.u32 %s117, %s118
      %p120 = scmp.eq.s32.totalorder %s119, 0
      %s122 = sadd.s32 %s121, 1
      %s123 = scalar_select %p120, %s121, %s122
      %p126 = pneg %p120
      %p127 = scmp.eq.s32.totalorder %s9, 3
      %p128 = por %p126, %p127
      %p129 = scmp.ne.s32.totalorder %s121, %s124
      %p130 = scmp.eq.s32.totalorder %s9, 0
      %p131 = por %p129, %p130
      %p132 = scmp.ne.s32.totalorder %s121, %s124
      %p133 = scmp.eq.s32.totalorder %s14, 3
      %p134 = por %p132, %p133
      %p135 = scmp.ne.s32.totalorder %s124, %s125
      %p136 = scmp.eq.s32.totalorder %s14, 0
      %p137 = por %p135, %p136
      %p138 = scmp.ne.s32.totalorder %s124, %s125
      %p139 = scmp.eq.s32.totalorder %s15, 3
      %p140 = por %p138, %p139
      %p142 = scmp.ne.s32.totalorder %s125, %s141
      %p143 = scmp.eq.s32.totalorder %s15, 0
      %p144 = por %p142, %p143
      %s145 = sadd.s32 %s17, %s18
      %s146 = sadd.s32 %s38, %s34
      %s147 = ssub.s32 %s145, %s146
      %s148 = ssub.s32 %s16, %s42
      %s149 = sor.u32 %s147, %s148
      %p150 = scmp.eq.s32.totalorder %s149, 0
      %s152 = sadd.s32 %s151, 1
      %s153 = scalar_select %p150, %s151, %s152
      %p156 = pneg %p150
      %p157 = scmp.eq.s32.totalorder %s9, 3
      %p158 = por %p156, %p157
      %p159 = scmp.ne.s32.totalorder %s151, %s154
      %p160 = scmp.eq.s32.totalorder %s9, 0
      %p161 = por %p159, %p160
      %p162 = scmp.ne.s32.totalorder %s151, %s154
      %p163 = scmp.eq.s32.totalorder %s14, 3
      %p164 = por %p162, %p163
      %p165 = scmp.ne.s32.totalorder %s154, %s155
      %p166 = scmp.eq.s32.totalorder %s14, 0
      %p167 = por %p165, %p166
      %p168 = scmp.ne.s32.totalorder %s154, %s155
      %p169 = scmp.eq.s32.totalorder %s15, 3
      %p170 = por %p168, %p169
      %p172 = scmp.ne.s32.totalorder %s155, %s171
      %p173 = scmp.eq.s32.totalorder %s15, 0
      %p174 = por %p172, %p173
      %p175 = scmp.le.s32.totalorder 1, %s9
      %p176 = scmp.lt.s32.totalorder %s9, 5
      %p177 = pnand %p175, %p176
      %p178 = pneg %p177
      // Predicated region
      $region9: #{exl2_forward.12} parent=5 // pred_check
        _
      $region10: #{exl2_forward.12} parent=5 // pred_check_branch
        %180 = sbr.rel (%p177) target = $region12
      $region11: #{exl2_forward.12} parent=5 // pred_region
        %s181 = ssub.s32 %s9, 1
      $region12: #{exl2_forward.12} parent=5 // pred_fallthru
        _
      %p182 = scmp.lt.s32.totalorder %s9, 4
      // Predicated region
      $region13: #{exl2_forward.12} parent=5 // pred_check
        %p183 = pneg %p182
      $region14: #{exl2_forward.12} parent=5 // pred_check_branch
        %185 = sbr.rel (%p183) target = $region16
      $region15: #{exl2_forward.12} parent=5 // pred_region
        // Predicated region
        $region17: #{exl2_forward.12} parent=15 // pred_check
          %p186 = pneg %p59
        $region18: #{exl2_forward.12} parent=15 // pred_check_branch
          %188 = sbr.rel (%p186) target = $region20
        $region19: #{exl2_forward.12} parent=15 // pred_region
          %s189 = sand.u32 %s49, 1
          %s190 = sand.u32 %s49, 1
          %s191 = smul.addr %s190, 8
          %s192 = scalar_lea.vmem [#allocation6], %s191
          %s193 = sadd.s32 %s17, %s18
          %s194 = smul.u32 2, %s193
          %s195 = smul.addr %s194, 6
          %s196 = sadd.s32 %s16, %s195
          %s197 = smul.addr %s196, 4
          %s198 = scalar_lea.vmem %s0, %s197
          // Predicated region
          $region21: #{exl2_forward.12} parent=19 // pred_check
            _
          $region22: #{exl2_forward.12} parent=19 // pred_check_branch
            %200 = sbr.rel (0) target = $region24
          $region23: #{exl2_forward.12} parent=19 // pred_region
            // Predicated region
            $region25: #{exl2_forward.12} parent=23 // pred_check
              _
            $region26: #{exl2_forward.12} parent=23 // pred_check_branch
              %202 = sbr.rel target = $region28
            $region27: #{exl2_forward.12} parent=23 // pred_region
              // Predicated region
              $region40: #{exl2_forward.12} parent=27 // pred_check
                _
              $region41: #{exl2_forward.12} parent=27 // pred_check_branch
                %220 = sbr.rel (0) target = $region43
              $region42: #{exl2_forward.12} parent=27 // pred_region
                loop: start=0, step=1, limit=1
                $region44: #{exl2_forward.12} parent=42 // loop_pre_header
                  _
                $region45: #{exl2_forward.12} parent=42 // loop_header
                  %s222 = sphi 0, %s226
                  %p223 = scmp.ge.s32.totalorder %s222, 1
                  %s227 = sphi %s198, %s198
                  %s228 = sphi %s192, %s192
                $region46: #{exl2_forward.12} parent=42 // loop_header_branch
                  %225 = sbr.rel (%p223) target = $region50
                $region47: #{exl2_forward.12} parent=42 // loop_body
                  _
                $region48: #{exl2_forward.12} parent=42 // loop_footer
                  %s226 = sadd.s32 1, %s222
                $region49: #{exl2_forward.12} parent=42 // loop_footer_branch
                  %221 = sbr.rel target = $region45
                $region50: #{exl2_forward.12} parent=42 // loop_exit
                  _
                %s230 = ssub.s32 16, 1
                loop: start=0, step=1, limit=1
                $region51: #{exl2_forward.12} parent=42 // loop_pre_header
                  _
                $region52: #{exl2_forward.12} parent=42 // loop_header
                  %s232 = sphi 0, %s236
                  %p233 = scmp.ge.s32.totalorder %s232, 1
                  %s237 = sphi %s198, %s198
                  %s238 = sphi %s192, %s192
                $region53: #{exl2_forward.12} parent=42 // loop_header_branch
                  %235 = sbr.rel (%p233) target = $region57
                $region54: #{exl2_forward.12} parent=42 // loop_body
                  %v239 = vld [vmem:[%s237] sm:%s230]
                  %240 = vst [vmem:[%s238] sm:%s230] %v239
                  %v241 = vld [vmem:[%s237 + $0x18] sm:%s230]
                  %242 = vst [vmem:[%s238 + $0x4] sm:%s230] %v241
                $region55: #{exl2_forward.12} parent=42 // loop_footer
                  %s236 = sadd.s32 1, %s232
                $region56: #{exl2_forward.12} parent=42 // loop_footer_branch
                  %231 = sbr.rel target = $region52
                $region57: #{exl2_forward.12} parent=42 // loop_exit
                  _
              $region43: #{exl2_forward.12} parent=27 // pred_fallthru
                _
            $region28: #{exl2_forward.12} parent=23 // pred_fallthru
              _
            // Predicated region
            $region29: #{exl2_forward.12} parent=23 // pred_check
              _
            $region30: #{exl2_forward.12} parent=23 // pred_check_branch
              %204 = sbr.rel (0) target = $region32
            $region31: #{exl2_forward.12} parent=23 // pred_region
              %s206 = ssub.s32 16, 1
              loop: start=0, step=1, limit=1
              $region33: #{exl2_forward.12} parent=31 // loop_pre_header
                _
              $region34: #{exl2_forward.12} parent=31 // loop_header
                %s208 = sphi 0, %s212
                %p209 = scmp.ge.s32.totalorder %s208, 1
                %s213 = sphi %s198, %s198
                %s214 = sphi %s192, %s192
              $region35: #{exl2_forward.12} parent=31 // loop_header_branch
                %211 = sbr.rel (%p209) target = $region39
              $region36: #{exl2_forward.12} parent=31 // loop_body
                %v215 = vld [vmem:[%s213] sm:%s206]
                %216 = vst [vmem:[%s214] sm:%s206] %v215
                %v217 = vld [vmem:[%s213 + $0x18] sm:%s206]
                %218 = vst [vmem:[%s214 + $0x4] sm:%s206] %v217
              $region37: #{exl2_forward.12} parent=31 // loop_footer
                %s212 = sadd.s32 1, %s208
              $region38: #{exl2_forward.12} parent=31 // loop_footer_branch
                %207 = sbr.rel target = $region34
              $region39: #{exl2_forward.12} parent=31 // loop_exit
                _
            $region32: #{exl2_forward.12} parent=23 // pred_fallthru
              _
          $region24: #{exl2_forward.12} parent=19 // pred_fallthru
            _
          %243 = vnop
        $region20: #{exl2_forward.12} parent=15 // pred_fallthru
          _
        // Predicated region
        $region58: #{exl2_forward.12} parent=15 // pred_check
          %p244 = pneg %p95
        $region59: #{exl2_forward.12} parent=15 // pred_check_branch
          %246 = sbr.rel (%p244) target = $region61
        $region60: #{exl2_forward.12} parent=15 // pred_region
          %s247 = sand.u32 %s85, 1
          %s248 = sand.u32 %s85, 1
          %s249 = smul.addr %s248, 8
          %s250 = scalar_lea.vmem [#allocation7], %s249
          %p251 = scmp.lt.s32.totalorder %s19, %s18
          %s252 = scalar_select %p251, %s19, %s18
          %s253 = sadd.s32 %s17, %s252
          %s254 = sadd.s32 %s16, 2
          %s255 = smul.u32 2, %s253
          %s256 = smul.addr %s255, 6
          %s257 = sadd.s32 %s254, %s256
          %s258 = smul.addr %s257, 4
          %s259 = scalar_lea.vmem %s1, %s258
          // Predicated region
          $region62: #{exl2_forward.12} parent=60 // pred_check
            _
          $region63: #{exl2_forward.12} parent=60 // pred_check_branch
            %261 = sbr.rel (0) target = $region65
          $region64: #{exl2_forward.12} parent=60 // pred_region
            // Predicated region
            $region66: #{exl2_forward.12} parent=64 // pred_check
              _
            $region67: #{exl2_forward.12} parent=64 // pred_check_branch
              %263 = sbr.rel target = $region69
            $region68: #{exl2_forward.12} parent=64 // pred_region
              // Predicated region
              $region81: #{exl2_forward.12} parent=68 // pred_check
                _
              $region82: #{exl2_forward.12} parent=68 // pred_check_branch
                %281 = sbr.rel (0) target = $region84
              $region83: #{exl2_forward.12} parent=68 // pred_region
                loop: start=0, step=1, limit=1
                $region85: #{exl2_forward.12} parent=83 // loop_pre_header
                  _
                $region86: #{exl2_forward.12} parent=83 // loop_header
                  %s283 = sphi 0, %s287
                  %p284 = scmp.ge.s32.totalorder %s283, 1
                  %s288 = sphi %s259, %s259
                  %s289 = sphi %s250, %s250
                $region87: #{exl2_forward.12} parent=83 // loop_header_branch
                  %286 = sbr.rel (%p284) target = $region91
                $region88: #{exl2_forward.12} parent=83 // loop_body
                  _
                $region89: #{exl2_forward.12} parent=83 // loop_footer
                  %s287 = sadd.s32 1, %s283
                $region90: #{exl2_forward.12} parent=83 // loop_footer_branch
                  %282 = sbr.rel target = $region86
                $region91: #{exl2_forward.12} parent=83 // loop_exit
                  _
                %s291 = ssub.s32 16, 1
                loop: start=0, step=1, limit=1
                $region92: #{exl2_forward.12} parent=83 // loop_pre_header
                  _
                $region93: #{exl2_forward.12} parent=83 // loop_header
                  %s293 = sphi 0, %s297
                  %p294 = scmp.ge.s32.totalorder %s293, 1
                  %s298 = sphi %s259, %s259
                  %s299 = sphi %s250, %s250
                $region94: #{exl2_forward.12} parent=83 // loop_header_branch
                  %296 = sbr.rel (%p294) target = $region98
                $region95: #{exl2_forward.12} parent=83 // loop_body
                  %v300 = vld [vmem:[%s298] sm:%s291]
                  %301 = vst [vmem:[%s299] sm:%s291] %v300
                  %v302 = vld [vmem:[%s298 + $0x18] sm:%s291]
                  %303 = vst [vmem:[%s299 + $0x4] sm:%s291] %v302
                $region96: #{exl2_forward.12} parent=83 // loop_footer
                  %s297 = sadd.s32 1, %s293
                $region97: #{exl2_forward.12} parent=83 // loop_footer_branch
                  %292 = sbr.rel target = $region93
                $region98: #{exl2_forward.12} parent=83 // loop_exit
                  _
              $region84: #{exl2_forward.12} parent=68 // pred_fallthru
                _
            $region69: #{exl2_forward.12} parent=64 // pred_fallthru
              _
            // Predicated region
            $region70: #{exl2_forward.12} parent=64 // pred_check
              _
            $region71: #{exl2_forward.12} parent=64 // pred_check_branch
              %265 = sbr.rel (0) target = $region73
            $region72: #{exl2_forward.12} parent=64 // pred_region
              %s267 = ssub.s32 16, 1
              loop: start=0, step=1, limit=1
              $region74: #{exl2_forward.12} parent=72 // loop_pre_header
                _
              $region75: #{exl2_forward.12} parent=72 // loop_header
                %s269 = sphi 0, %s273
                %p270 = scmp.ge.s32.totalorder %s269, 1
                %s274 = sphi %s259, %s259
                %s275 = sphi %s250, %s250
              $region76: #{exl2_forward.12} parent=72 // loop_header_branch
                %272 = sbr.rel (%p270) target = $region80
              $region77: #{exl2_forward.12} parent=72 // loop_body
                %v276 = vld [vmem:[%s274] sm:%s267]
                %277 = vst [vmem:[%s275] sm:%s267] %v276
                %v278 = vld [vmem:[%s274 + $0x18] sm:%s267]
                %279 = vst [vmem:[%s275 + $0x4] sm:%s267] %v278
              $region78: #{exl2_forward.12} parent=72 // loop_footer
                %s273 = sadd.s32 1, %s269
              $region79: #{exl2_forward.12} parent=72 // loop_footer_branch
                %268 = sbr.rel target = $region75
              $region80: #{exl2_forward.12} parent=72 // loop_exit
                _
            $region73: #{exl2_forward.12} parent=64 // pred_fallthru
              _
          $region65: #{exl2_forward.12} parent=60 // pred_fallthru
            _
          %304 = vnop
        $region61: #{exl2_forward.12} parent=15 // pred_fallthru
          _
        // Predicated region
        $region99: #{exl2_forward.12} parent=15 // pred_check
          %p305 = pneg %p131
        $region100: #{exl2_forward.12} parent=15 // pred_check_branch
          %307 = sbr.rel (%p305) target = $region102
        $region101: #{exl2_forward.12} parent=15 // pred_region
          %s308 = sand.u32 %s121, 1
          %s309 = sand.u32 %s121, 1
          %s310 = smul.addr %s309, 8
          %s311 = scalar_lea.vmem [#allocation8], %s310
          %p312 = scmp.lt.s32.totalorder %s19, %s18
          %s313 = scalar_select %p312, %s19, %s18
          %s314 = sadd.s32 %s17, %s313
          %s315 = sadd.s32 %s16, 4
          %s316 = smul.u32 2, %s314
          %s317 = smul.addr %s316, 6
          %s318 = sadd.s32 %s315, %s317
          %s319 = smul.addr %s318, 4
          %s320 = scalar_lea.vmem %s2, %s319
          // Predicated region
          $region103: #{exl2_forward.12} parent=101 // pred_check
            _
          $region104: #{exl2_forward.12} parent=101 // pred_check_branch
            %322 = sbr.rel (0) target = $region106
          $region105: #{exl2_forward.12} parent=101 // pred_region
            // Predicated region
            $region107: #{exl2_forward.12} parent=105 // pred_check
              _
            $region108: #{exl2_forward.12} parent=105 // pred_check_branch
              %324 = sbr.rel target = $region110
            $region109: #{exl2_forward.12} parent=105 // pred_region
              // Predicated region
              $region122: #{exl2_forward.12} parent=109 // pred_check
                _
              $region123: #{exl2_forward.12} parent=109 // pred_check_branch
                %342 = sbr.rel (0) target = $region125
              $region124: #{exl2_forward.12} parent=109 // pred_region
                loop: start=0, step=1, limit=1
                $region126: #{exl2_forward.12} parent=124 // loop_pre_header
                  _
                $region127: #{exl2_forward.12} parent=124 // loop_header
                  %s344 = sphi 0, %s348
                  %p345 = scmp.ge.s32.totalorder %s344, 1
                  %s349 = sphi %s320, %s320
                  %s350 = sphi %s311, %s311
                $region128: #{exl2_forward.12} parent=124 // loop_header_branch
                  %347 = sbr.rel (%p345) target = $region132
                $region129: #{exl2_forward.12} parent=124 // loop_body
                  _
                $region130: #{exl2_forward.12} parent=124 // loop_footer
                  %s348 = sadd.s32 1, %s344
                $region131: #{exl2_forward.12} parent=124 // loop_footer_branch
                  %343 = sbr.rel target = $region127
                $region132: #{exl2_forward.12} parent=124 // loop_exit
                  _
                %s352 = ssub.s32 16, 1
                loop: start=0, step=1, limit=1
                $region133: #{exl2_forward.12} parent=124 // loop_pre_header
                  _
                $region134: #{exl2_forward.12} parent=124 // loop_header
                  %s354 = sphi 0, %s358
                  %p355 = scmp.ge.s32.totalorder %s354, 1
                  %s359 = sphi %s320, %s320
                  %s360 = sphi %s311, %s311
                $region135: #{exl2_forward.12} parent=124 // loop_header_branch
                  %357 = sbr.rel (%p355) target = $region139
                $region136: #{exl2_forward.12} parent=124 // loop_body
                  %v361 = vld [vmem:[%s359] sm:%s352]
                  %362 = vst [vmem:[%s360] sm:%s352] %v361
                  %v363 = vld [vmem:[%s359 + $0x18] sm:%s352]
                  %364 = vst [vmem:[%s360 + $0x4] sm:%s352] %v363
                $region137: #{exl2_forward.12} parent=124 // loop_footer
                  %s358 = sadd.s32 1, %s354
                $region138: #{exl2_forward.12} parent=124 // loop_footer_branch
                  %353 = sbr.rel target = $region134
                $region139: #{exl2_forward.12} parent=124 // loop_exit
                  _
              $region125: #{exl2_forward.12} parent=109 // pred_fallthru
                _
            $region110: #{exl2_forward.12} parent=105 // pred_fallthru
              _
            // Predicated region
            $region111: #{exl2_forward.12} parent=105 // pred_check
              _
            $region112: #{exl2_forward.12} parent=105 // pred_check_branch
              %326 = sbr.rel (0) target = $region114
            $region113: #{exl2_forward.12} parent=105 // pred_region
              %s328 = ssub.s32 16, 1
              loop: start=0, step=1, limit=1
              $region115: #{exl2_forward.12} parent=113 // loop_pre_header
                _
              $region116: #{exl2_forward.12} parent=113 // loop_header
                %s330 = sphi 0, %s334
                %p331 = scmp.ge.s32.totalorder %s330, 1
                %s335 = sphi %s320, %s320
                %s336 = sphi %s311, %s311
              $region117: #{exl2_forward.12} parent=113 // loop_header_branch
                %333 = sbr.rel (%p331) target = $region121
              $region118: #{exl2_forward.12} parent=113 // loop_body
                %v337 = vld [vmem:[%s335] sm:%s328]
                %338 = vst [vmem:[%s336] sm:%s328] %v337
                %v339 = vld [vmem:[%s335 + $0x18] sm:%s328]
                %340 = vst [vmem:[%s336 + $0x4] sm:%s328] %v339
              $region119: #{exl2_forward.12} parent=113 // loop_footer
                %s334 = sadd.s32 1, %s330
              $region120: #{exl2_forward.12} parent=113 // loop_footer_branch
                %329 = sbr.rel target = $region116
              $region121: #{exl2_forward.12} parent=113 // loop_exit
                _
            $region114: #{exl2_forward.12} parent=105 // pred_fallthru
              _
          $region106: #{exl2_forward.12} parent=101 // pred_fallthru
            _
          %365 = vnop
        $region102: #{exl2_forward.12} parent=15 // pred_fallthru
          _
      $region16: #{exl2_forward.12} parent=5 // pred_fallthru
        _
      %p366 = scmp.le.s32.totalorder 1, %s9
      %p367 = scmp.lt.s32.totalorder %s9, 5
      %p368 = pnand %p366, %p367
      %p369 = pneg %p368
      // Predicated region
      $region140: #{exl2_forward.12} parent=5 // pred_check
        _
      $region141: #{exl2_forward.12} parent=5 // pred_check_branch
        %371 = sbr.rel (%p368) target = $region143
      $region142: #{exl2_forward.12} parent=5 // pred_region
        %s372 = ssub.s32 %s9, 1
        %s373 = sand.u32 %s52, 1
        %s374 = sand.u32 %s52, 1
        %s375 = smul.addr %s374, 8
        %s376 = scalar_lea.vmem [#allocation6], %s375
        // Predicated region
        $region144: #{exl2_forward.12} parent=142 // pred_check
          %p377 = pneg %p65
        $region145: #{exl2_forward.12} parent=142 // pred_check_branch
          %379 = sbr.rel (%p377) target = $region147
        $region146: #{exl2_forward.12} parent=142 // pred_region
          _
        $region147: #{exl2_forward.12} parent=142 // pred_fallthru
          _
        %s380 = sand.u32 %s88, 1
        %s381 = sand.u32 %s88, 1
        %s382 = smul.addr %s381, 8
        %s383 = scalar_lea.vmem [#allocation7], %s382
        // Predicated region
        $region148: #{exl2_forward.12} parent=142 // pred_check
          %p384 = pneg %p101
        $region149: #{exl2_forward.12} parent=142 // pred_check_branch
          %386 = sbr.rel (%p384) target = $region151
        $region150: #{exl2_forward.12} parent=142 // pred_region
          _
        $region151: #{exl2_forward.12} parent=142 // pred_fallthru
          _
        %s387 = sand.u32 %s124, 1
        %s388 = sand.u32 %s124, 1
        %s389 = smul.addr %s388, 8
        %s390 = scalar_lea.vmem [#allocation8], %s389
        // Predicated region
        $region152: #{exl2_forward.12} parent=142 // pred_check
          %p391 = pneg %p137
        $region153: #{exl2_forward.12} parent=142 // pred_check_branch
          %393 = sbr.rel (%p391) target = $region155
        $region154: #{exl2_forward.12} parent=142 // pred_region
          _
        $region155: #{exl2_forward.12} parent=142 // pred_fallthru
          _
        %s394 = sand.u32 %s52, 1
        %s395 = sand.u32 %s52, 1
        %s396 = smul.addr %s395, 8
        %s397 = scalar_lea.vmem [#allocation6], %s396
        %p398 = pneg %p65
        %p399 = pneg %p62
        %s400 = sand.u32 %s88, 1
        %s401 = sand.u32 %s88, 1
        %s402 = smul.addr %s401, 8
        %s403 = scalar_lea.vmem [#allocation7], %s402
        %p404 = pneg %p101
        %p405 = pneg %p98
        %s406 = sand.u32 %s124, 1
        %s407 = sand.u32 %s124, 1
        %s408 = smul.addr %s407, 8
        %s409 = scalar_lea.vmem [#allocation8], %s408
        %p410 = pneg %p137
        %p411 = pneg %p134
        %p412 = pneg %p167
        %p413 = pneg %p164
        %s414 = sand.u32 %s154, 1
        %s415 = sand.u32 %s154, 1
        %s416 = smul.addr %s415, 8
        %s417 = scalar_lea.vmem [#allocation9], %s416
        %s418 = sadd.s32 %s21, %s22
        %s419 = smul.u32 2, %s418
        %p420 = scmp.lt.s32.totalorder %s23, %s22
        %s421 = scalar_select %p420, %s23, %s22
        %s422 = sadd.s32 %s21, %s421
        %s423 = sadd.s32 %s20, 2
        %s424 = smul.u32 2, %s422
        %p425 = scmp.lt.s32.totalorder %s23, %s22
        %s426 = scalar_select %p425, %s23, %s22
        %s427 = sadd.s32 %s21, %s426
        %s428 = sadd.s32 %s20, 4
        %s429 = smul.u32 2, %s427
        %s430 = sadd.s32 %s21, %s22
        %s431 = smul.u32 2, %s430
        %p433 = scmp.eq.s32.totalorder %s23, 0
        // Predicated region
        $region156: #{exl2_forward.12} parent=142 // pred_check
          %p434 = pneg %p433
        $region157: #{exl2_forward.12} parent=142 // pred_check_branch
          %436 = sbr.rel (%p434) target = $region159
        $region158: #{exl2_forward.12} parent=142 // pred_region
          %v437 = vld [vmem:[%s376] sm:$0xf]
          %v438 = vld [vmem:[%s376 + $0x4] sm:$0xf]
          %v439 = vunpack.c.l.bf16 %v437
          %v440 = vunpack.c.l.bf16 %v438
          %v441 = vmul.f32 %v439, 0.088388346
          %v442 = vmul.f32 %v440, 0.088388346
          %v443 = vpack.c.bf16 %v442, %v441
          %v445 = vunpack.c.l.b16 %v443
          %v446 = vunpack.c.h.b16 %v443
          %v447 = vpack.c.b16 %v445, %v445
          %v448 = vpack.c.b16 %v446, %v446
          %451 = vst [vmem:[#allocation2] sm:$0xf] %v447
          %452 = vst [vmem:[#allocation2 + $0x4] sm:$0xf] %v448
          %vm453 = vcmask 7168
          %454 = vst.msk [vmem:[#allocation3] sm:$0xff] %vm453, -inf
          %455 = vst.msk [vmem:[#allocation3 + $0x8] sm:$0xff] %vm453, -inf
          %456 = vst.msk [vmem:[#allocation4] sm:$0xff] %vm453, 0.0
          %457 = vst.msk [vmem:[#allocation4 + $0x8] sm:$0xff] %vm453, 0.0
          %458 = vst [vmem:[#allocation5] sm:$0xff] 0.0
          %459 = vst [vmem:[#allocation5 + $0x8] sm:$0xff] 0.0
        $region159: #{exl2_forward.12} parent=142 // pred_fallthru
          _
        %p460 = scmp.lt.s32.totalorder %s23, %s22
        // Predicated region
        $region160: #{exl2_forward.12} parent=142 // pred_check
          %p461 = pneg %p460
        $region161: #{exl2_forward.12} parent=142 // pred_check_branch
          %463 = sbr.rel (%p461) target = $region163
        $region162: #{exl2_forward.12} parent=142 // pred_region
          %v464 = vld [vmem:[#allocation2] sm:$0xf]
          %v465 = vld [vmem:[#allocation2 + $0x4] sm:$0xf]
          %v466 = vld [vmem:[%s383] sm:$0xf]
          %v467 = vld [vmem:[%s383 + $0x4] sm:$0xf]
          %v470 = vunpack.c.l.b16 %v464
          %v471 = vunpack.c.l.b16 %v465
          %v472 = vpack.c.b16 %v471, %v470
          %v476 = vunpack.c.l.b16 %v466
          %v477 = vunpack.c.l.b16 %v467
          %v478 = vpack.c.b16 %v477, %v476
          %480 = vmatprep.subr.bf16.mxu0 0
          %481 = vmatpush1.bf16.xpose.msra.mxu0 0
          %482 = vmatprep.subr.bf16.mxu0 0
          %483 = vmatpush1.bf16.xpose.msra.mxu0 0
          %484 = vmatprep.subr.bf16.mxu0 0
          %485 = vmatpush1.bf16.xpose.msra.mxu0 0
          %486 = vmatprep.subr.bf16.mxu0 0
          %487 = vmatpush1.bf16.xpose.msra.mxu0 0
          %488 = vmatprep.subr.bf16.mxu0 0
          %489 = vmatpush1.bf16.xpose.msra.mxu0 0
          %490 = vmatprep.subr.bf16.mxu0 0
          %491 = vmatpush1.bf16.xpose.msra.mxu0 0
          %492 = vmatprep.subr.bf16.mxu0 0
          %493 = vmatpush1.bf16.xpose.msra.mxu0 0
          %494 = vmatprep.subr.bf16.mxu0 0
          %495 = vmatpush1.bf16.xpose.msra.mxu0 %v478
          %496 = vmatprep.subr.bf16.mxu0 0
          %497 = vmatpush2.bf16.xpose.msra.mxu0 0
          %498 = vmatprep.subr.bf16.mxu0 0
          %499 = vmatpush2.bf16.xpose.msra.mxu0 0
          %500 = vmatprep.subr.bf16.mxu0 0
          %501 = vmatpush2.bf16.xpose.msra.mxu0 0
          %502 = vmatprep.subr.bf16.mxu0 0
          %503 = vmatpush2.bf16.xpose.msra.mxu0 0
          %504 = vmatprep.subr.bf16.mxu0 0
          %505 = vmatpush2.bf16.xpose.msra.mxu0 0
          %506 = vmatprep.subr.bf16.mxu0 0
          %507 = vmatpush2.bf16.xpose.msra.mxu0 0
          %508 = vmatprep.subr.bf16.mxu0 0
          %509 = vmatpush2.bf16.xpose.msra.mxu0 0
          %510 = vmatprep.subr.bf16.mxu0 0
          %511 = vmatpush2.bf16.xpose.msra.mxu0 0
          %512 = vmatprep.mubr.bf16.mxu0 0
          %513 = vmatmul.mubr.bf16.gmra.mxu0 %v472
          %v514 = vpop.f32.mrf.mxu0
          %v515 = vadd.f32 0.0, %v514
          %v516 = vpop.f32.mrf.mxu0
          %v517 = vpop.f32.mrf.mxu0
          %v518 = vadd.f32 0.0, %v517
          %v519 = vpop.f32.mrf.mxu0
          %520 = vdwg.mxu0
          %v521 = vld [vmem:[#allocation3] sm:$0xff]
          %v522 = vld [vmem:[#allocation3 + $0x8] sm:$0xff]
          %vm523 = vcmask 130048
          %v524 = vsel %vm523, %v515, -inf
          %525 = vmax.xlane.f32.xlu0 %v524
          %v526 = vpop.xlane.xlu0 %525
          %v527 = vsel %vm523, %v518, -inf
          %528 = vmax.xlane.f32.xlu0 %v527
          %v529 = vpop.xlane.xlu0 %528
          %v530 = vmax.f32 %v521, %v526
          %v531 = vmax.f32 %v522, %v529
          %v532 = vsub.f32 %v521, %v530
          %v533 = vsub.f32 %v522, %v531
          %v534 = vmul.f32 %v532, 1.442695
          %v535 = vpow.pop %v534
          %v536 = vmul.f32 %v533, 1.442695
          %v537 = vpow.pop %v536
          %539 = vset.pattern.permute.xlu0 0
          %540 = vperm.xlu0 %539, %v530
          %v541 = vpop.permute.xlu0 %540
          %544 = vset.pattern.permute.xlu0 0
          %545 = vperm.xlu0 %544, %v531
          %v546 = vpop.permute.xlu0 %545
          %v548 = vsub.f32 %v515, %v541
          %v549 = vsub.f32 %v518, %v546
          %v550 = vmul.f32 %v548, 1.442695
          %v551 = vpow.pop %v550
          %v552 = vmul.f32 %v549, 1.442695
          %v553 = vpow.pop %v552
          %v554 = vld [vmem:[#allocation4] sm:$0xff]
          %v555 = vld [vmem:[#allocation4 + $0x8] sm:$0xff]
          %v556 = vmul.f32 %v535, %v554
          %v557 = vmul.f32 %v537, %v555
          %v558 = vsel %vm523, %v551, 0.0
          %559 = vadd.xlane.f32.xlu0 %v558
          %v560 = vpop.xlane.xlu0 %559
          %v561 = vsel %vm523, %v553, 0.0
          %562 = vadd.xlane.f32.xlu0 %v561
          %v563 = vpop.xlane.xlu0 %562
          %v564 = vadd.f32 %v556, %v560
          %v565 = vadd.f32 %v557, %v563
          %vm566 = vcmask 7168
          %567 = vst.msk [vmem:[#allocation4] sm:$0xff] %vm566, %v564
          %568 = vst.msk [vmem:[#allocation4 + $0x8] sm:$0xff] %vm566, %v565
          %v569 = vld [vmem:[#allocation5] sm:$0xff]
          %v570 = vld [vmem:[#allocation5 + $0x8] sm:$0xff]
          %572 = vset.pattern.permute.xlu0 0
          %573 = vperm.xlu0 %572, %v535
          %v574 = vpop.permute.xlu0 %573
          %577 = vset.pattern.permute.xlu0 0
          %578 = vperm.xlu0 %577, %v537
          %v579 = vpop.permute.xlu0 %578
          %v581 = vmul.f32 %v574, %v569
          %v582 = vmul.f32 %v579, %v570
          %v583 = vpack.c.bf16 %v553, %v551
          %v584 = vld [vmem:[%s390] sm:$0xf]
          %v585 = vld [vmem:[%s390 + $0x4] sm:$0xf]
          %v588 = vunpack.c.l.b16 %v584
          %v589 = vunpack.c.l.b16 %v585
          %v590 = vpack.c.b16 %v589, %v588
          %v593 = vsel %vm523, %v583, 0
          %595 = vmatprep.subr.bf16.mxu0 0
          %596 = vmatpush1.bf16.msra.mxu0 0
          %597 = vmatprep.subr.bf16.mxu0 0
          %598 = vmatpush1.bf16.msra.mxu0 0
          %599 = vmatprep.subr.bf16.mxu0 0
          %600 = vmatpush1.bf16.msra.mxu0 0
          %601 = vmatprep.subr.bf16.mxu0 0
          %602 = vmatpush1.bf16.msra.mxu0 0
          %603 = vmatprep.subr.bf16.mxu0 0
          %604 = vmatpush1.bf16.msra.mxu0 0
          %605 = vmatprep.subr.bf16.mxu0 0
          %606 = vmatpush1.bf16.msra.mxu0 0
          %607 = vmatprep.subr.bf16.mxu0 0
          %608 = vmatpush1.bf16.msra.mxu0 0
          %609 = vmatprep.subr.bf16.mxu0 0
          %610 = vmatpush1.bf16.msra.mxu0 %v590
          %611 = vmatprep.subr.bf16.mxu0 0
          %612 = vmatpush2.bf16.msra.mxu0 0
          %613 = vmatprep.subr.bf16.mxu0 0
          %614 = vmatpush2.bf16.msra.mxu0 0
          %615 = vmatprep.subr.bf16.mxu0 0
          %616 = vmatpush2.bf16.msra.mxu0 0
          %617 = vmatprep.subr.bf16.mxu0 0
          %618 = vmatpush2.bf16.msra.mxu0 0
          %619 = vmatprep.subr.bf16.mxu0 0
          %620 = vmatpush2.bf16.msra.mxu0 0
          %621 = vmatprep.subr.bf16.mxu0 0
          %622 = vmatpush2.bf16.msra.mxu0 0
          %623 = vmatprep.subr.bf16.mxu0 0
          %624 = vmatpush2.bf16.msra.mxu0 0
          %625 = vmatprep.subr.bf16.mxu0 0
          %626 = vmatpush2.bf16.msra.mxu0 0
          %627 = vmatprep.mubr.bf16.mxu0 0
          %628 = vmatmul.mubr.bf16.gmra.mxu0 %v593
          %v629 = vpop.f32.mrf.mxu0
          %v630 = vadd.f32 0.0, %v629
          %v631 = vpop.f32.mrf.mxu0
          %v632 = vpop.f32.mrf.mxu0
          %v633 = vadd.f32 0.0, %v632
          %v634 = vpop.f32.mrf.mxu0
          %635 = vdwg.mxu0
          %v636 = vadd.f32 %v581, %v630
          %v637 = vadd.f32 %v582, %v633
          %638 = vst [vmem:[#allocation5] sm:$0xff] %v636
          %639 = vst [vmem:[#allocation5 + $0x8] sm:$0xff] %v637
          %640 = vst.msk [vmem:[#allocation3] sm:$0xff] %vm566, %v530
          %641 = vst.msk [vmem:[#allocation3 + $0x8] sm:$0xff] %vm566, %v531
        $region163: #{exl2_forward.12} parent=142 // pred_fallthru
          _
        %p642 = scmp.eq.s32.totalorder %s23, %s22
        // Predicated region
        $region164: #{exl2_forward.12} parent=142 // pred_check
          %p643 = pneg %p642
        $region165: #{exl2_forward.12} parent=142 // pred_check_branch
          %645 = sbr.rel (%p643) target = $region167
        $region166: #{exl2_forward.12} parent=142 // pred_region
          %v646 = vld [vmem:[#allocation2] sm:$0xf]
          %v647 = vld [vmem:[#allocation2 + $0x4] sm:$0xf]
          %v648 = vld [vmem:[%s383] sm:$0xf]
          %v649 = vld [vmem:[%s383 + $0x4] sm:$0xf]
          %v652 = vunpack.c.l.b16 %v646
          %v653 = vunpack.c.l.b16 %v647
          %v654 = vpack.c.b16 %v653, %v652
          %v658 = vunpack.c.l.b16 %v648
          %v659 = vunpack.c.l.b16 %v649
          %v660 = vpack.c.b16 %v659, %v658
          %662 = vmatprep.subr.bf16.mxu0 0
          %663 = vmatpush1.bf16.xpose.msra.mxu0 0
          %664 = vmatprep.subr.bf16.mxu0 0
          %665 = vmatpush1.bf16.xpose.msra.mxu0 0
          %666 = vmatprep.subr.bf16.mxu0 0
          %667 = vmatpush1.bf16.xpose.msra.mxu0 0
          %668 = vmatprep.subr.bf16.mxu0 0
          %669 = vmatpush1.bf16.xpose.msra.mxu0 0
          %670 = vmatprep.subr.bf16.mxu0 0
          %671 = vmatpush1.bf16.xpose.msra.mxu0 0
          %672 = vmatprep.subr.bf16.mxu0 0
          %673 = vmatpush1.bf16.xpose.msra.mxu0 0
          %674 = vmatprep.subr.bf16.mxu0 0
          %675 = vmatpush1.bf16.xpose.msra.mxu0 0
          %676 = vmatprep.subr.bf16.mxu0 0
          %677 = vmatpush1.bf16.xpose.msra.mxu0 %v660
          %678 = vmatprep.subr.bf16.mxu0 0
          %679 = vmatpush2.bf16.xpose.msra.mxu0 0
          %680 = vmatprep.subr.bf16.mxu0 0
          %681 = vmatpush2.bf16.xpose.msra.mxu0 0
          %682 = vmatprep.subr.bf16.mxu0 0
          %683 = vmatpush2.bf16.xpose.msra.mxu0 0
          %684 = vmatprep.subr.bf16.mxu0 0
          %685 = vmatpush2.bf16.xpose.msra.mxu0 0
          %686 = vmatprep.subr.bf16.mxu0 0
          %687 = vmatpush2.bf16.xpose.msra.mxu0 0
          %688 = vmatprep.subr.bf16.mxu0 0
          %689 = vmatpush2.bf16.xpose.msra.mxu0 0
          %690 = vmatprep.subr.bf16.mxu0 0
          %691 = vmatpush2.bf16.xpose.msra.mxu0 0
          %692 = vmatprep.subr.bf16.mxu0 0
          %693 = vmatpush2.bf16.xpose.msra.mxu0 0
          %694 = vmatprep.mubr.bf16.mxu0 0
          %695 = vmatmul.mubr.bf16.gmra.mxu0 %v654
          %v696 = vpop.f32.mrf.mxu0
          %v697 = vadd.f32 0.0, %v696
          %v698 = vpop.f32.mrf.mxu0
          %v699 = vpop.f32.mrf.mxu0
          %v700 = vadd.f32 0.0, %v699
          %v701 = vpop.f32.mrf.mxu0
          %702 = vdwg.mxu0
          %v703 = vlaneseq
          %v704 = vshrl.u32 %v703, 7
          %v705 = vadd.s32 %v704, 8
          %v706 = vlaneseq
          %v707 = vand.u32 %v706, 127
          %vm708 = vcmp.le.s32.totalorder %v707, %v704
          %vm709 = vcmp.le.s32.totalorder %v707, %v705
          %v710 = vsel %vm708, %v697, -1e+30
          %v711 = vsel %vm709, %v700, -1e+30
          %v712 = vld [vmem:[#allocation3] sm:$0xff]
          %v713 = vld [vmem:[#allocation3 + $0x8] sm:$0xff]
          %vm714 = vcmask 130048
          %v715 = vsel %vm714, %v710, -inf
          %716 = vmax.xlane.f32.xlu0 %v715
          %v717 = vpop.xlane.xlu0 %716
          %v718 = vsel %vm714, %v711, -inf
          %719 = vmax.xlane.f32.xlu0 %v718
          %v720 = vpop.xlane.xlu0 %719
          %v721 = vmax.f32 %v712, %v717
          %v722 = vmax.f32 %v713, %v720
          %v723 = vsub.f32 %v712, %v721
          %v724 = vsub.f32 %v713, %v722
          %v725 = vmul.f32 %v723, 1.442695
          %v726 = vpow.pop %v725
          %v727 = vmul.f32 %v724, 1.442695
          %v728 = vpow.pop %v727
          %730 = vset.pattern.permute.xlu0 0
          %731 = vperm.xlu0 %730, %v721
          %v732 = vpop.permute.xlu0 %731
          %735 = vset.pattern.permute.xlu0 0
          %736 = vperm.xlu0 %735, %v722
          %v737 = vpop.permute.xlu0 %736
          %v739 = vsub.f32 %v710, %v732
          %v740 = vsub.f32 %v711, %v737
          %v741 = vmul.f32 %v739, 1.442695
          %v742 = vpow.pop %v741
          %v743 = vmul.f32 %v740, 1.442695
          %v744 = vpow.pop %v743
          %v745 = vld [vmem:[#allocation4] sm:$0xff]
          %v746 = vld [vmem:[#allocation4 + $0x8] sm:$0xff]
          %v747 = vmul.f32 %v726, %v745
          %v748 = vmul.f32 %v728, %v746
          %v749 = vsel %vm714, %v742, 0.0
          %750 = vadd.xlane.f32.xlu0 %v749
          %v751 = vpop.xlane.xlu0 %750
          %v752 = vsel %vm714, %v744, 0.0
          %753 = vadd.xlane.f32.xlu0 %v752
          %v754 = vpop.xlane.xlu0 %753
          %v755 = vadd.f32 %v747, %v751
          %v756 = vadd.f32 %v748, %v754
          %vm757 = vcmask 7168
          %758 = vst.msk [vmem:[#allocation4] sm:$0xff] %vm757, %v755
          %759 = vst.msk [vmem:[#allocation4 + $0x8] sm:$0xff] %vm757, %v756
          %v760 = vld [vmem:[#allocation5] sm:$0xff]
          %v761 = vld [vmem:[#allocation5 + $0x8] sm:$0xff]
          %763 = vset.pattern.permute.xlu0 0
          %764 = vperm.xlu0 %763, %v726
          %v765 = vpop.permute.xlu0 %764
          %768 = vset.pattern.permute.xlu0 0
          %769 = vperm.xlu0 %768, %v728
          %v770 = vpop.permute.xlu0 %769
          %v772 = vmul.f32 %v765, %v760
          %v773 = vmul.f32 %v770, %v761
          %v774 = vpack.c.bf16 %v744, %v742
          %v775 = vld [vmem:[%s390] sm:$0xf]
          %v776 = vld [vmem:[%s390 + $0x4] sm:$0xf]
          %v779 = vunpack.c.l.b16 %v775
          %v780 = vunpack.c.l.b16 %v776
          %v781 = vpack.c.b16 %v780, %v779
          %v784 = vsel %vm714, %v774, 0
          %786 = vmatprep.subr.bf16.mxu0 0
          %787 = vmatpush1.bf16.msra.mxu0 0
          %788 = vmatprep.subr.bf16.mxu0 0
          %789 = vmatpush1.bf16.msra.mxu0 0
          %790 = vmatprep.subr.bf16.mxu0 0
          %791 = vmatpush1.bf16.msra.mxu0 0
          %792 = vmatprep.subr.bf16.mxu0 0
          %793 = vmatpush1.bf16.msra.mxu0 0
          %794 = vmatprep.subr.bf16.mxu0 0
          %795 = vmatpush1.bf16.msra.mxu0 0
          %796 = vmatprep.subr.bf16.mxu0 0
          %797 = vmatpush1.bf16.msra.mxu0 0
          %798 = vmatprep.subr.bf16.mxu0 0
          %799 = vmatpush1.bf16.msra.mxu0 0
          %800 = vmatprep.subr.bf16.mxu0 0
          %801 = vmatpush1.bf16.msra.mxu0 %v781
          %802 = vmatprep.subr.bf16.mxu0 0
          %803 = vmatpush2.bf16.msra.mxu0 0
          %804 = vmatprep.subr.bf16.mxu0 0
          %805 = vmatpush2.bf16.msra.mxu0 0
          %806 = vmatprep.subr.bf16.mxu0 0
          %807 = vmatpush2.bf16.msra.mxu0 0
          %808 = vmatprep.subr.bf16.mxu0 0
          %809 = vmatpush2.bf16.msra.mxu0 0
          %810 = vmatprep.subr.bf16.mxu0 0
          %811 = vmatpush2.bf16.msra.mxu0 0
          %812 = vmatprep.subr.bf16.mxu0 0
          %813 = vmatpush2.bf16.msra.mxu0 0
          %814 = vmatprep.subr.bf16.mxu0 0
          %815 = vmatpush2.bf16.msra.mxu0 0
          %816 = vmatprep.subr.bf16.mxu0 0
          %817 = vmatpush2.bf16.msra.mxu0 0
          %818 = vmatprep.mubr.bf16.mxu0 0
          %819 = vmatmul.mubr.bf16.gmra.mxu0 %v784
          %v820 = vpop.f32.mrf.mxu0
          %v821 = vadd.f32 0.0, %v820
          %v822 = vpop.f32.mrf.mxu0
          %v823 = vpop.f32.mrf.mxu0
          %v824 = vadd.f32 0.0, %v823
          %v825 = vpop.f32.mrf.mxu0
          %826 = vdwg.mxu0
          %v827 = vadd.f32 %v772, %v821
          %v828 = vadd.f32 %v773, %v824
          %829 = vst [vmem:[#allocation5] sm:$0xff] %v827
          %830 = vst [vmem:[#allocation5 + $0x8] sm:$0xff] %v828
          %831 = vst.msk [vmem:[#allocation3] sm:$0xff] %vm757, %v721
          %832 = vst.msk [vmem:[#allocation3 + $0x8] sm:$0xff] %vm757, %v722
        $region167: #{exl2_forward.12} parent=142 // pred_fallthru
          _
        // Predicated region
        $region168: #{exl2_forward.12} parent=142 // pred_check
          %p833 = pneg %p433
        $region169: #{exl2_forward.12} parent=142 // pred_check_branch
          %835 = sbr.rel (%p833) target = $region171
        $region170: #{exl2_forward.12} parent=142 // pred_region
          %v836 = vld [vmem:[#allocation5] sm:$0xff]
          %v837 = vld [vmem:[#allocation5 + $0x8] sm:$0xff]
          %v838 = vld [vmem:[#allocation4] sm:$0xff]
          %v839 = vld [vmem:[#allocation4 + $0x8] sm:$0xff]
          %v840 = vrcp.pop %v838
          %v841 = vrcp.pop %v839
          %843 = vset.pattern.permute.xlu0 0
          %844 = vperm.xlu0 %843, %v840
          %v845 = vpop.permute.xlu0 %844
          %848 = vset.pattern.permute.xlu0 0
          %849 = vperm.xlu0 %848, %v841
          %v850 = vpop.permute.xlu0 %849
          %v852 = vmul.f32 %v836, %v845
          %v853 = vmul.f32 %v837, %v850
          %v854 = vpack.c.bf16 %v853, %v852
          %v856 = vunpack.c.l.b16 %v854
          %v857 = vunpack.c.h.b16 %v854
          %v858 = vpack.c.b16 %v856, %v856
          %v859 = vpack.c.b16 %v857, %v857
          %862 = vst [vmem:[%s417] sm:$0xf] %v858
          %863 = vst [vmem:[%s417 + $0x4] sm:$0xf] %v859
        $region171: #{exl2_forward.12} parent=142 // pred_fallthru
          _
        %s864 = sand.u32 %s154, 1
        %s865 = sand.u32 %s154, 1
        %s866 = smul.addr %s865, 8
        %s867 = scalar_lea.vmem [#allocation9], %s866
        // Predicated region
        $region172: #{exl2_forward.12} parent=142 // pred_check
          %p868 = pneg %p164
        $region173: #{exl2_forward.12} parent=142 // pred_check_branch
          %870 = sbr.rel (%p868) target = $region175
        $region174: #{exl2_forward.12} parent=142 // pred_region
          %s871 = sadd.s32 %s21, %s22
          %s872 = smul.u32 2, %s871
          %s873 = smul.addr %s872, 2
          %s874 = sadd.s32 %s20, %s873
          %s875 = smul.addr %s874, 4
          %s876 = scalar_lea.vmem %s3, %s875
          // Predicated region
          $region176: #{exl2_forward.12} parent=174 // pred_check
            _
          $region177: #{exl2_forward.12} parent=174 // pred_check_branch
            %878 = sbr.rel (0) target = $region179
          $region178: #{exl2_forward.12} parent=174 // pred_region
            // Predicated region
            $region180: #{exl2_forward.12} parent=178 // pred_check
              _
            $region181: #{exl2_forward.12} parent=178 // pred_check_branch
              %880 = sbr.rel target = $region183
            $region182: #{exl2_forward.12} parent=178 // pred_region
              // Predicated region
              $region195: #{exl2_forward.12} parent=182 // pred_check
                _
              $region196: #{exl2_forward.12} parent=182 // pred_check_branch
                %898 = sbr.rel (0) target = $region198
              $region197: #{exl2_forward.12} parent=182 // pred_region
                loop: start=0, step=1, limit=1
                $region199: #{exl2_forward.12} parent=197 // loop_pre_header
                  _
                $region200: #{exl2_forward.12} parent=197 // loop_header
                  %s900 = sphi 0, %s904
                  %p901 = scmp.ge.s32.totalorder %s900, 1
                  %s905 = sphi %s867, %s867
                  %s906 = sphi %s876, %s876
                $region201: #{exl2_forward.12} parent=197 // loop_header_branch
                  %903 = sbr.rel (%p901) target = $region205
                $region202: #{exl2_forward.12} parent=197 // loop_body
                  _
                $region203: #{exl2_forward.12} parent=197 // loop_footer
                  %s904 = sadd.s32 1, %s900
                $region204: #{exl2_forward.12} parent=197 // loop_footer_branch
                  %899 = sbr.rel target = $region200
                $region205: #{exl2_forward.12} parent=197 // loop_exit
                  _
                %s908 = ssub.s32 16, 1
                loop: start=0, step=1, limit=1
                $region206: #{exl2_forward.12} parent=197 // loop_pre_header
                  _
                $region207: #{exl2_forward.12} parent=197 // loop_header
                  %s910 = sphi 0, %s914
                  %p911 = scmp.ge.s32.totalorder %s910, 1
                  %s915 = sphi %s867, %s867
                  %s916 = sphi %s876, %s876
                $region208: #{exl2_forward.12} parent=197 // loop_header_branch
                  %913 = sbr.rel (%p911) target = $region212
                $region209: #{exl2_forward.12} parent=197 // loop_body
                  %v917 = vld [vmem:[%s915] sm:%s908]
                  %918 = vst [vmem:[%s916] sm:%s908] %v917
                  %v919 = vld [vmem:[%s915 + $0x4] sm:%s908]
                  %920 = vst [vmem:[%s916 + $0x8] sm:%s908] %v919
                $region210: #{exl2_forward.12} parent=197 // loop_footer
                  %s914 = sadd.s32 1, %s910
                $region211: #{exl2_forward.12} parent=197 // loop_footer_branch
                  %909 = sbr.rel target = $region207
                $region212: #{exl2_forward.12} parent=197 // loop_exit
                  _
              $region198: #{exl2_forward.12} parent=182 // pred_fallthru
                _
            $region183: #{exl2_forward.12} parent=178 // pred_fallthru
              _
            // Predicated region
            $region184: #{exl2_forward.12} parent=178 // pred_check
              _
            $region185: #{exl2_forward.12} parent=178 // pred_check_branch
              %882 = sbr.rel (0) target = $region187
            $region186: #{exl2_forward.12} parent=178 // pred_region
              %s884 = ssub.s32 16, 1
              loop: start=0, step=1, limit=1
              $region188: #{exl2_forward.12} parent=186 // loop_pre_header
                _
              $region189: #{exl2_forward.12} parent=186 // loop_header
                %s886 = sphi 0, %s890
                %p887 = scmp.ge.s32.totalorder %s886, 1
                %s891 = sphi %s867, %s867
                %s892 = sphi %s876, %s876
              $region190: #{exl2_forward.12} parent=186 // loop_header_branch
                %889 = sbr.rel (%p887) target = $region194
              $region191: #{exl2_forward.12} parent=186 // loop_body
                %v893 = vld [vmem:[%s891] sm:%s884]
                %894 = vst [vmem:[%s892] sm:%s884] %v893
                %v895 = vld [vmem:[%s891 + $0x4] sm:%s884]
                %896 = vst [vmem:[%s892 + $0x8] sm:%s884] %v895
              $region192: #{exl2_forward.12} parent=186 // loop_footer
                %s890 = sadd.s32 1, %s886
              $region193: #{exl2_forward.12} parent=186 // loop_footer_branch
                %885 = sbr.rel target = $region189
              $region194: #{exl2_forward.12} parent=186 // loop_exit
                _
            $region187: #{exl2_forward.12} parent=178 // pred_fallthru
              _
          $region179: #{exl2_forward.12} parent=174 // pred_fallthru
            _
          %921 = vnop
        $region175: #{exl2_forward.12} parent=142 // pred_fallthru
          _
      $region143: #{exl2_forward.12} parent=5 // pred_fallthru
        _
      %p922 = scmp.le.s32.totalorder 2, %s9
      // Predicated region
      $region213: #{exl2_forward.12} parent=5 // pred_check
        %p923 = pneg %p922
      $region214: #{exl2_forward.12} parent=5 // pred_check_branch
        %925 = sbr.rel (%p923) target = $region216
      $region215: #{exl2_forward.12} parent=5 // pred_region
        %s926 = ssub.s32 %s9, 2
        // Predicated region
        $region217: #{exl2_forward.12} parent=215 // pred_check
          %p927 = pneg %p170
        $region218: #{exl2_forward.12} parent=215 // pred_check_branch
          %929 = sbr.rel (%p927) target = $region220
        $region219: #{exl2_forward.12} parent=215 // pred_region
          %s930 = sand.u32 %s155, 1
          %s931 = sand.u32 %s155, 1
          %s932 = smul.addr %s931, 8
          %s933 = scalar_lea.vmem [#allocation9], %s932
        $region220: #{exl2_forward.12} parent=215 // pred_fallthru
          _
      $region216: #{exl2_forward.12} parent=5 // pred_fallthru
        _
    $region6: #{exl2_forward.12} parent=1 // loop_footer
      %s13 = sadd.s32 1, %s9
    $region7: #{exl2_forward.12} parent=1 // loop_footer_branch
      %8 = sbr.rel target = $region3
    $region8: #{exl2_forward.12} parent=1 // loop_exit
      _

// kernel: exl2_forward.14
$region0: #{exl2_forward.14}
  #allocation0 [shape = 'u32[]', space=smem, size = 0x4, offset = 0x4, fixed_abs, tag = 'smem constant byte address 0x4 - core index']
  #allocation1 [shape = 'u32[144,128]{1,0:T(1,128)}', space=vmem, size = 0x12000, scoped, tag = 'internal scratch']
  #allocation2 [shape = 'bf16[32,256]{1,0:T(8,128)(2,1)}', space=vmem, size = 0x4000, scoped, tag = 'scratch operand']
  %s0 = inlined_call_operand.vmem [shape: bf16[32,256], index: 0, kind: input, shape index: {}]
  %s1 = inlined_call_operand.vmem [shape: bf16[1,256], index: 1, kind: input, shape index: {}]
  %s2 = inlined_call_operand.vmem [shape: s8[256,512], index: 2, kind: input, shape index: {}]
  %s3 = inlined_call_operand.vmem [shape: f32[1,512], index: 3, kind: input, shape index: {}]
  %s4 = inlined_call_operand.vmem [shape: bf16[32,512], index: 4, kind: output, shape index: {}]
  %s5 = sld [smem:[#allocation0]]
  $region30: #{exl2_forward.14} parent=0
    _
  %s7 = ssub.s32 1, %s5
  %s8 = scalar_select 0, %s7, %s5
  // Predicated region
  $region2: #{exl2_forward.14} parent=0 // pred_check
    _
  $region3: #{exl2_forward.14} parent=0 // pred_check_branch
    %10 = sbr.rel (0) target = $region5
  $region4: #{exl2_forward.14} parent=0 // pred_region
    _
  $region5: #{exl2_forward.14} parent=0 // pred_fallthru
    _
  // Predicated region
  $region6: #{exl2_forward.14} parent=0 // pred_check
    _
  $region7: #{exl2_forward.14} parent=0 // pred_check_branch
    %12 = sbr.rel (0) target = $region9
  $region8: #{exl2_forward.14} parent=0 // pred_region
    _
  $region9: #{exl2_forward.14} parent=0 // pred_fallthru
    _
  // Predicated region
  $region10: #{exl2_forward.14} parent=0 // pred_check
    _
  $region11: #{exl2_forward.14} parent=0 // pred_check_branch
    %14 = sbr.rel (0) target = $region13
  $region12: #{exl2_forward.14} parent=0 // pred_region
    _
  $region13: #{exl2_forward.14} parent=0 // pred_fallthru
    _
  // Predicated region
  $region14: #{exl2_forward.14} parent=0 // pred_check
    _
  $region15: #{exl2_forward.14} parent=0 // pred_check_branch
    %16 = sbr.rel (0) target = $region17
  $region16: #{exl2_forward.14} parent=0 // pred_region
    _
  $region17: #{exl2_forward.14} parent=0 // pred_fallthru
    _
  %p17 = scmp.eq.s32.totalorder 0, 0
  // Predicated region
  $region18: #{exl2_forward.14} parent=0 // pred_check
    %p18 = pneg %p17
  $region19: #{exl2_forward.14} parent=0 // pred_check_branch
    %20 = sbr.rel (%p18) target = $region21
  $region20: #{exl2_forward.14} parent=0 // pred_region
    %v21 = vld [vmem:[%s0] sm:$0xff]
    %v22 = vld [vmem:[%s0 + $0x8] sm:$0xff]
    %v23 = vld [vmem:[%s0 + $0x10] sm:$0xff]
    %v24 = vld [vmem:[%s0 + $0x18] sm:$0xff]
    %v25 = vunpack.c.l.bf16 %v21
    %v26 = vunpack.c.h.bf16 %v21
    %v27 = vunpack.c.l.bf16 %v22
    %v28 = vunpack.c.h.bf16 %v22
    %v29 = vunpack.c.l.bf16 %v23
    %v30 = vunpack.c.h.bf16 %v23
    %v31 = vunpack.c.l.bf16 %v24
    %v32 = vunpack.c.h.bf16 %v24
    %v33 = vmul.f32 %v25, %v25
    %v34 = vmul.f32 %v26, %v26
    %v35 = vmul.f32 %v27, %v27
    %v36 = vmul.f32 %v28, %v28
    %v37 = vmul.f32 %v29, %v29
    %v38 = vmul.f32 %v30, %v30
    %v39 = vmul.f32 %v31, %v31
    %v40 = vmul.f32 %v32, %v32
    %v41 = vadd.f32 %v33, %v34
    %42 = vadd.xlane.f32.xlu0 %v41
    %v43 = vpop.xlane.xlu0 %42
    %v44 = vadd.f32 %v35, %v36
    %45 = vadd.xlane.f32.xlu0 %v44
    %v46 = vpop.xlane.xlu0 %45
    %v47 = vadd.f32 %v37, %v38
    %48 = vadd.xlane.f32.xlu0 %v47
    %v49 = vpop.xlane.xlu0 %48
    %v50 = vadd.f32 %v39, %v40
    %51 = vadd.xlane.f32.xlu0 %v50
    %v52 = vpop.xlane.xlu0 %51
    %v53 = vrcp.pop 256.0
    %v54 = vmul.f32 %v43, %v53
    %v55 = vmul.f32 %v46, %v53
    %v56 = vmul.f32 %v49, %v53
    %v57 = vmul.f32 %v52, %v53
    %v58 = vadd.f32 %v54, 1e-06
    %v59 = vadd.f32 %v55, 1e-06
    %v60 = vadd.f32 %v56, 1e-06
    %v61 = vadd.f32 %v57, 1e-06
    %v62 = vrsqrt.pop %v58
    %v63 = vrsqrt.pop %v59
    %v64 = vrsqrt.pop %v60
    %v65 = vrsqrt.pop %v61
    %v66 = vmul.f32 %v25, %v62
    %v67 = vmul.f32 %v26, %v62
    %v68 = vmul.f32 %v27, %v63
    %v69 = vmul.f32 %v28, %v63
    %v70 = vmul.f32 %v29, %v64
    %v71 = vmul.f32 %v30, %v64
    %v72 = vmul.f32 %v31, %v65
    %v73 = vmul.f32 %v32, %v65
    %v74 = vld [vmem:[%s1] sm:$0x3]
    %v75 = vunpack.c.l.bf16 %v74
    %v77 = vlaneseq
    %v78 = vshrl.u32 %v77, 7
    %v79 = vsub.s32 0, %v78
    %v80 = vrot.slane %v75, %v79
    %v81 = vlaneseq
    %v82 = vshrl.u32 %v81, 7
    %v83 = vsub.s32 2, %v82
    %v84 = vrot.slane %v75, %v83
    %v87 = vlaneseq
    %v88 = vshrl.u32 %v87, 7
    %v89 = vsub.s32 0, %v88
    %v90 = vrot.slane %v80, %v89
    %v91 = vlaneseq
    %v92 = vshrl.u32 %v91, 7
    %v93 = vsub.s32 0, %v92
    %v94 = vrot.slane %v84, %v93
    %v95 = vmul.f32 %v66, %v90
    %v96 = vmul.f32 %v67, %v94
    %v97 = vmul.f32 %v68, %v90
    %v98 = vmul.f32 %v69, %v94
    %v99 = vmul.f32 %v70, %v90
    %v100 = vmul.f32 %v71, %v94
    %v101 = vmul.f32 %v72, %v90
    %v102 = vmul.f32 %v73, %v94
    %v103 = vpack.c.bf16 %v97, %v95
    %v104 = vpack.c.bf16 %v98, %v96
    %v105 = vpack.c.bf16 %v101, %v99
    %v106 = vpack.c.bf16 %v102, %v100
    %v111 = vunpack.c.l.b16 %v103
    %v112 = vunpack.c.l.b16 %v104
    %v113 = vunpack.c.h.b16 %v103
    %v114 = vunpack.c.h.b16 %v104
    %v115 = vunpack.c.l.b16 %v105
    %v116 = vunpack.c.l.b16 %v106
    %v117 = vunpack.c.h.b16 %v105
    %v118 = vunpack.c.h.b16 %v106
    %v119 = vpack.c.b16 %v112, %v111
    %v120 = vpack.c.b16 %v114, %v113
    %v121 = vpack.c.b16 %v116, %v115
    %v122 = vpack.c.b16 %v118, %v117
    %127 = vst [vmem:[#allocation2] sm:$0xff] %v119
    %128 = vst [vmem:[#allocation2 + $0x8] sm:$0xff] %v120
    %129 = vst [vmem:[#allocation2 + $0x10] sm:$0xff] %v121
    %130 = vst [vmem:[#allocation2 + $0x18] sm:$0xff] %v122
  $region21: #{exl2_forward.14} parent=0 // pred_fallthru
    _
  %v131 = vld [vmem:[%s2] sm:$0xff]
  %v132 = vld [vmem:[%s2 + $0x8] sm:$0xff]
  %v133 = vld [vmem:[%s2 + $0x10] sm:$0xff]
  %v134 = vld [vmem:[%s2 + $0x18] sm:$0xff]
  %v135 = vld [vmem:[%s2 + $0x20] sm:$0xff]
  %v136 = vld [vmem:[%s2 + $0x28] sm:$0xff]
  %v137 = vld [vmem:[%s2 + $0x30] sm:$0xff]
  %v138 = vld [vmem:[%s2 + $0x38] sm:$0xff]
  %v139 = vld [vmem:[%s2 + $0x40] sm:$0xff]
  %v140 = vld [vmem:[%s2 + $0x48] sm:$0xff]
  %v141 = vld [vmem:[%s2 + $0x50] sm:$0xff]
  %v142 = vld [vmem:[%s2 + $0x58] sm:$0xff]
  %v143 = vld [vmem:[%s2 + $0x60] sm:$0xff]
  %v144 = vld [vmem:[%s2 + $0x68] sm:$0xff]
  %v145 = vld [vmem:[%s2 + $0x70] sm:$0xff]
  %v146 = vld [vmem:[%s2 + $0x78] sm:$0xff]
  %v147 = vld [vmem:[%s2 + $0x80] sm:$0xff]
  %v148 = vld [vmem:[%s2 + $0x88] sm:$0xff]
  %v149 = vld [vmem:[%s2 + $0x90] sm:$0xff]
  %v150 = vld [vmem:[%s2 + $0x98] sm:$0xff]
  %v151 = vld [vmem:[%s2 + $0xa0] sm:$0xff]
  %v152 = vld [vmem:[%s2 + $0xa8] sm:$0xff]
  %v153 = vld [vmem:[%s2 + $0xb0] sm:$0xff]
  %v154 = vld [vmem:[%s2 + $0xb8] sm:$0xff]
  %v155 = vld [vmem:[%s2 + $0xc0] sm:$0xff]
  %v156 = vld [vmem:[%s2 + $0xc8] sm:$0xff]
  %v157 = vld [vmem:[%s2 + $0xd0] sm:$0xff]
  %v158 = vld [vmem:[%s2 + $0xd8] sm:$0xff]
  %v159 = vld [vmem:[%s2 + $0xe0] sm:$0xff]
  %v160 = vld [vmem:[%s2 + $0xe8] sm:$0xff]
  %v161 = vld [vmem:[%s2 + $0xf0] sm:$0xff]
  %v162 = vld [vmem:[%s2 + $0xf8] sm:$0xff]
  %v163 = vunpack.c.l.s8.bf16 %v131
  %v164 = vunpack.c.l.s8.bf16 %v132
  %v165 = vunpack.c.l.s8.bf16 %v133
  %v166 = vunpack.c.l.s8.bf16 %v134
  %v167 = vunpack.c.h.s8.bf16 %v131
  %v168 = vunpack.c.h.s8.bf16 %v132
  %v169 = vunpack.c.h.s8.bf16 %v133
  %v170 = vunpack.c.h.s8.bf16 %v134
  %v171 = vunpack.c.l.s8.bf16 %v135
  %v172 = vunpack.c.l.s8.bf16 %v136
  %v173 = vunpack.c.l.s8.bf16 %v137
  %v174 = vunpack.c.l.s8.bf16 %v138
  %v175 = vunpack.c.h.s8.bf16 %v135
  %v176 = vunpack.c.h.s8.bf16 %v136
  %v177 = vunpack.c.h.s8.bf16 %v137
  %v178 = vunpack.c.h.s8.bf16 %v138
  %v179 = vunpack.c.l.s8.bf16 %v139
  %v180 = vunpack.c.l.s8.bf16 %v140
  %v181 = vunpack.c.l.s8.bf16 %v141
  %v182 = vunpack.c.l.s8.bf16 %v142
  %v183 = vunpack.c.h.s8.bf16 %v139
  %v184 = vunpack.c.h.s8.bf16 %v140
  %v185 = vunpack.c.h.s8.bf16 %v141
  %v186 = vunpack.c.h.s8.bf16 %v142
  %v187 = vunpack.c.l.s8.bf16 %v143
  %v188 = vunpack.c.l.s8.bf16 %v144
  %v189 = vunpack.c.l.s8.bf16 %v145
  %v190 = vunpack.c.l.s8.bf16 %v146
  %v191 = vunpack.c.h.s8.bf16 %v143
  %v192 = vunpack.c.h.s8.bf16 %v144
  %v193 = vunpack.c.h.s8.bf16 %v145
  %v194 = vunpack.c.h.s8.bf16 %v146
  %v195 = vunpack.c.l.s8.bf16 %v147
  %v196 = vunpack.c.l.s8.bf16 %v148
  %v197 = vunpack.c.l.s8.bf16 %v149
  %v198 = vunpack.c.l.s8.bf16 %v150
  %v199 = vunpack.c.h.s8.bf16 %v147
  %v200 = vunpack.c.h.s8.bf16 %v148
  %v201 = vunpack.c.h.s8.bf16 %v149
  %v202 = vunpack.c.h.s8.bf16 %v150
  %v203 = vunpack.c.l.s8.bf16 %v151
  %v204 = vunpack.c.l.s8.bf16 %v152
  %v205 = vunpack.c.l.s8.bf16 %v153
  %v206 = vunpack.c.l.s8.bf16 %v154
  %v207 = vunpack.c.h.s8.bf16 %v151
  %v208 = vunpack.c.h.s8.bf16 %v152
  %v209 = vunpack.c.h.s8.bf16 %v153
  %v210 = vunpack.c.h.s8.bf16 %v154
  %v211 = vunpack.c.l.s8.bf16 %v155
  %v212 = vunpack.c.l.s8.bf16 %v156
  %v213 = vunpack.c.l.s8.bf16 %v157
  %v214 = vunpack.c.l.s8.bf16 %v158
  %v215 = vunpack.c.h.s8.bf16 %v155
  %v216 = vunpack.c.h.s8.bf16 %v156
  %v217 = vunpack.c.h.s8.bf16 %v157
  %v218 = vunpack.c.h.s8.bf16 %v158
  %v219 = vunpack.c.l.s8.bf16 %v159
  %v220 = vunpack.c.l.s8.bf16 %v160
  %v221 = vunpack.c.l.s8.bf16 %v161
  %v222 = vunpack.c.l.s8.bf16 %v162
  %v223 = vunpack.c.h.s8.bf16 %v159
  %v224 = vunpack.c.h.s8.bf16 %v160
  %v225 = vunpack.c.h.s8.bf16 %v161
  %v226 = vunpack.c.h.s8.bf16 %v162
  %v227 = vld [vmem:[#allocation2] sm:$0xff]
  %v228 = vld [vmem:[#allocation2 + $0x8] sm:$0xff]
  %v229 = vld [vmem:[#allocation2 + $0x10] sm:$0xff]
  %v230 = vld [vmem:[#allocation2 + $0x18] sm:$0xff]
  %v235 = vunpack.c.l.b16 %v227
  %v236 = vunpack.c.h.b16 %v227
  %v237 = vunpack.c.l.b16 %v228
  %v238 = vunpack.c.h.b16 %v228
  %v239 = vunpack.c.l.b16 %v229
  %v240 = vunpack.c.h.b16 %v229
  %v241 = vunpack.c.l.b16 %v230
  %v242 = vunpack.c.h.b16 %v230
  %v243 = vpack.c.b16 %v237, %v235
  %v244 = vpack.c.b16 %v238, %v236
  %v245 = vpack.c.b16 %v241, %v239
  %v246 = vpack.c.b16 %v242, %v240
  %251 = vmatprep.subr.bf16.mxu0 %v192
  %252 = vmatpush1.bf16.msra.mxu0 %v191
  %253 = vmatprep.subr.bf16.mxu0 %v188
  %254 = vmatpush1.bf16.msra.mxu0 %v187
  %255 = vmatprep.subr.bf16.mxu0 %v184
  %256 = vmatpush1.bf16.msra.mxu0 %v183
  %257 = vmatprep.subr.bf16.mxu0 %v180
  %258 = vmatpush1.bf16.msra.mxu0 %v179
  %259 = vmatprep.subr.bf16.mxu0 %v176
  %260 = vmatpush1.bf16.msra.mxu0 %v175
  %261 = vmatprep.subr.bf16.mxu0 %v172
  %262 = vmatpush1.bf16.msra.mxu0 %v171
  %263 = vmatprep.subr.bf16.mxu0 %v168
  %264 = vmatpush1.bf16.msra.mxu0 %v167
  %265 = vmatprep.subr.bf16.mxu0 %v164
  %266 = vmatpush1.bf16.msra.mxu0 %v163
  %267 = vmatprep.subr.bf16.mxu0 %v224
  %268 = vmatpush2.bf16.msra.mxu0 %v223
  %269 = vmatprep.subr.bf16.mxu0 %v220
  %270 = vmatpush2.bf16.msra.mxu0 %v219
  %271 = vmatprep.subr.bf16.mxu0 %v216
  %272 = vmatpush2.bf16.msra.mxu0 %v215
  %273 = vmatprep.subr.bf16.mxu0 %v212
  %274 = vmatpush2.bf16.msra.mxu0 %v211
  %275 = vmatprep.subr.bf16.mxu0 %v208
  %276 = vmatpush2.bf16.msra.mxu0 %v207
  %277 = vmatprep.subr.bf16.mxu0 %v204
  %278 = vmatpush2.bf16.msra.mxu0 %v203
  %279 = vmatprep.subr.bf16.mxu0 %v200
  %280 = vmatpush2.bf16.msra.mxu0 %v199
  %281 = vmatprep.subr.bf16.mxu0 %v196
  %282 = vmatpush2.bf16.msra.mxu0 %v195
  %283 = vmatprep.mubr.bf16.mxu0 %v244
  %284 = vmatmul.mubr.bf16.gmra.mxu0 %v243
  %v285 = vpop.f32.mrf.mxu0
  %v286 = vadd.f32 0.0, %v285
  %v287 = vpop.f32.mrf.mxu0
  %v288 = vadd.f32 0.0, %v287
  %v289 = vpop.f32.mrf.mxu0
  %v290 = vadd.f32 0.0, %v289
  %v291 = vpop.f32.mrf.mxu0
  %v292 = vadd.f32 0.0, %v291
  %293 = vmatprep.mubr.bf16.mxu0 %v246
  %294 = vmatmul.mubr.bf16.gmra.mxu0 %v245
  %v295 = vpop.f32.mrf.mxu0
  %v296 = vadd.f32 0.0, %v295
  %v297 = vpop.f32.mrf.mxu0
  %v298 = vadd.f32 0.0, %v297
  %v299 = vpop.f32.mrf.mxu0
  %v300 = vadd.f32 0.0, %v299
  %v301 = vpop.f32.mrf.mxu0
  %v302 = vadd.f32 0.0, %v301
  %303 = vdwg.mxu0
  %304 = vmatprep.subr.bf16.mxu0 %v194
  %305 = vmatpush1.bf16.msra.mxu0 %v193
  %306 = vmatprep.subr.bf16.mxu0 %v190
  %307 = vmatpush1.bf16.msra.mxu0 %v189
  %308 = vmatprep.subr.bf16.mxu0 %v186
  %309 = vmatpush1.bf16.msra.mxu0 %v185
  %310 = vmatprep.subr.bf16.mxu0 %v182
  %311 = vmatpush1.bf16.msra.mxu0 %v181
  %312 = vmatprep.subr.bf16.mxu0 %v178
  %313 = vmatpush1.bf16.msra.mxu0 %v177
  %314 = vmatprep.subr.bf16.mxu0 %v174
  %315 = vmatpush1.bf16.msra.mxu0 %v173
  %316 = vmatprep.subr.bf16.mxu0 %v170
  %317 = vmatpush1.bf16.msra.mxu0 %v169
  %318 = vmatprep.subr.bf16.mxu0 %v166
  %319 = vmatpush1.bf16.msra.mxu0 %v165
  %320 = vmatprep.subr.bf16.mxu0 %v226
  %321 = vmatpush2.bf16.msra.mxu0 %v225
  %322 = vmatprep.subr.bf16.mxu0 %v222
  %323 = vmatpush2.bf16.msra.mxu0 %v221
  %324 = vmatprep.subr.bf16.mxu0 %v218
  %325 = vmatpush2.bf16.msra.mxu0 %v217
  %326 = vmatprep.subr.bf16.mxu0 %v214
  %327 = vmatpush2.bf16.msra.mxu0 %v213
  %328 = vmatprep.subr.bf16.mxu0 %v210
  %329 = vmatpush2.bf16.msra.mxu0 %v209
  %330 = vmatprep.subr.bf16.mxu0 %v206
  %331 = vmatpush2.bf16.msra.mxu0 %v205
  %332 = vmatprep.subr.bf16.mxu0 %v202
  %333 = vmatpush2.bf16.msra.mxu0 %v201
  %334 = vmatprep.subr.bf16.mxu0 %v198
  %335 = vmatpush2.bf16.msra.mxu0 %v197
  %336 = vmatprep.mubr.bf16.mxu0 %v244
  %337 = vmatmul.mubr.bf16.gmra.mxu0 %v243
  %v338 = vpop.f32.mrf.mxu0
  %v339 = vadd.f32 0.0, %v338
  %v340 = vpop.f32.mrf.mxu0
  %v341 = vadd.f32 0.0, %v340
  %v342 = vpop.f32.mrf.mxu0
  %v343 = vadd.f32 0.0, %v342
  %v344 = vpop.f32.mrf.mxu0
  %v345 = vadd.f32 0.0, %v344
  %346 = vmatprep.mubr.bf16.mxu0 %v246
  %347 = vmatmul.mubr.bf16.gmra.mxu0 %v245
  %v348 = vpop.f32.mrf.mxu0
  %v349 = vadd.f32 0.0, %v348
  %v350 = vpop.f32.mrf.mxu0
  %v351 = vadd.f32 0.0, %v350
  %v352 = vpop.f32.mrf.mxu0
  %v353 = vadd.f32 0.0, %v352
  %v354 = vpop.f32.mrf.mxu0
  %v355 = vadd.f32 0.0, %v354
  %356 = vdwg.mxu0
  %v357 = vld [vmem:[%s3] sm:$0xf]
  %v359 = vlaneseq
  %v360 = vshrl.u32 %v359, 7
  %v361 = vsub.s32 0, %v360
  %v362 = vrot.slane %v357, %v361
  %v363 = vlaneseq
  %v364 = vshrl.u32 %v363, 7
  %v365 = vsub.s32 1, %v364
  %v366 = vrot.slane %v357, %v365
  %v367 = vlaneseq
  %v368 = vshrl.u32 %v367, 7
  %v369 = vsub.s32 2, %v368
  %v370 = vrot.slane %v357, %v369
  %v371 = vlaneseq
  %v372 = vshrl.u32 %v371, 7
  %v373 = vsub.s32 3, %v372
  %v374 = vrot.slane %v357, %v373
  %v379 = vmul.f32 %v286, %v362
  %v380 = vmul.f32 %v288, %v366
  %v381 = vmul.f32 %v339, %v370
  %v382 = vmul.f32 %v341, %v374
  %v383 = vmul.f32 %v290, %v362
  %v384 = vmul.f32 %v292, %v366
  %v385 = vmul.f32 %v343, %v370
  %v386 = vmul.f32 %v345, %v374
  %v387 = vmul.f32 %v296, %v362
  %v388 = vmul.f32 %v298, %v366
  %v389 = vmul.f32 %v349, %v370
  %v390 = vmul.f32 %v351, %v374
  %v391 = vmul.f32 %v300, %v362
  %v392 = vmul.f32 %v302, %v366
  %v393 = vmul.f32 %v353, %v370
  %v394 = vmul.f32 %v355, %v374
  %v395 = vmul.f32 %v379, %v379
  %v396 = vmul.f32 %v380, %v380
  %v397 = vmul.f32 %v381, %v381
  %v398 = vmul.f32 %v382, %v382
  %v399 = vmul.f32 %v383, %v383
  %v400 = vmul.f32 %v384, %v384
  %v401 = vmul.f32 %v385, %v385
  %v402 = vmul.f32 %v386, %v386
  %v403 = vmul.f32 %v387, %v387
  %v404 = vmul.f32 %v388, %v388
  %v405 = vmul.f32 %v389, %v389
  %v406 = vmul.f32 %v390, %v390
  %v407 = vmul.f32 %v391, %v391
  %v408 = vmul.f32 %v392, %v392
  %v409 = vmul.f32 %v393, %v393
  %v410 = vmul.f32 %v394, %v394
  %v411 = vmul.f32 %v379, %v395
  %v412 = vmul.f32 %v380, %v396
  %v413 = vmul.f32 %v381, %v397
  %v414 = vmul.f32 %v382, %v398
  %v415 = vmul.f32 %v383, %v399
  %v416 = vmul.f32 %v384, %v400
  %v417 = vmul.f32 %v385, %v401
  %v418 = vmul.f32 %v386, %v402
  %v419 = vmul.f32 %v387, %v403
  %v420 = vmul.f32 %v388, %v404
  %v421 = vmul.f32 %v389, %v405
  %v422 = vmul.f32 %v390, %v406
  %v423 = vmul.f32 %v391, %v407
  %v424 = vmul.f32 %v392, %v408
  %v425 = vmul.f32 %v393, %v409
  %v426 = vmul.f32 %v394, %v410
  %v427 = vmul.f32 %v411, 0.044715
  %v428 = vmul.f32 %v412, 0.044715
  %v429 = vmul.f32 %v413, 0.044715
  %v430 = vmul.f32 %v414, 0.044715
  %v431 = vmul.f32 %v415, 0.044715
  %v432 = vmul.f32 %v416, 0.044715
  %v433 = vmul.f32 %v417, 0.044715
  %v434 = vmul.f32 %v418, 0.044715
  %v435 = vmul.f32 %v419, 0.044715
  %v436 = vmul.f32 %v420, 0.044715
  %v437 = vmul.f32 %v421, 0.044715
  %v438 = vmul.f32 %v422, 0.044715
  %v439 = vmul.f32 %v423, 0.044715
  %v440 = vmul.f32 %v424, 0.044715
  %v441 = vmul.f32 %v425, 0.044715
  %v442 = vmul.f32 %v426, 0.044715
  %v443 = vadd.f32 %v379, %v427
  %v444 = vadd.f32 %v380, %v428
  %v445 = vadd.f32 %v381, %v429
  %v446 = vadd.f32 %v382, %v430
  %v447 = vadd.f32 %v383, %v431
  %v448 = vadd.f32 %v384, %v432
  %v449 = vadd.f32 %v385, %v433
  %v450 = vadd.f32 %v386, %v434
  %v451 = vadd.f32 %v387, %v435
  %v452 = vadd.f32 %v388, %v436
  %v453 = vadd.f32 %v389, %v437
  %v454 = vadd.f32 %v390, %v438
  %v455 = vadd.f32 %v391, %v439
  %v456 = vadd.f32 %v392, %v440
  %v457 = vadd.f32 %v393, %v441
  %v458 = vadd.f32 %v394, %v442
  %v459 = vmul.f32 %v443, 0.7978846
  %v460 = vmul.f32 %v444, 0.7978846
  %v461 = vmul.f32 %v445, 0.7978846
  %v462 = vmul.f32 %v446, 0.7978846
  %v463 = vmul.f32 %v447, 0.7978846
  %v464 = vmul.f32 %v448, 0.7978846
  %v465 = vmul.f32 %v449, 0.7978846
  %v466 = vmul.f32 %v450, 0.7978846
  %v467 = vmul.f32 %v451, 0.7978846
  %v468 = vmul.f32 %v452, 0.7978846
  %v469 = vmul.f32 %v453, 0.7978846
  %v470 = vmul.f32 %v454, 0.7978846
  %v471 = vmul.f32 %v455, 0.7978846
  %v472 = vmul.f32 %v456, 0.7978846
  %v473 = vmul.f32 %v457, 0.7978846
  %v474 = vmul.f32 %v458, 0.7978846
  %v475 = vtanh.pop %v459
  %v476 = vtanh.pop %v460
  %v477 = vtanh.pop %v461
  %v478 = vtanh.pop %v462
  %v479 = vtanh.pop %v463
  %v480 = vtanh.pop %v464
  %v481 = vtanh.pop %v465
  %v482 = vtanh.pop %v466
  %v483 = vtanh.pop %v467
  %v484 = vtanh.pop %v468
  %v485 = vtanh.pop %v469
  %v486 = vtanh.pop %v470
  %v487 = vtanh.pop %v471
  %v488 = vtanh.pop %v472
  %v489 = vtanh.pop %v473
  %v490 = vtanh.pop %v474
  %v491 = vadd.f32 %v475, 1.0
  %v492 = vadd.f32 %v476, 1.0
  %v493 = vadd.f32 %v477, 1.0
  %v494 = vadd.f32 %v478, 1.0
  %v495 = vadd.f32 %v479, 1.0
  %v496 = vadd.f32 %v480, 1.0
  %v497 = vadd.f32 %v481, 1.0
  %v498 = vadd.f32 %v482, 1.0
  %v499 = vadd.f32 %v483, 1.0
  %v500 = vadd.f32 %v484, 1.0
  %v501 = vadd.f32 %v485, 1.0
  %v502 = vadd.f32 %v486, 1.0
  %v503 = vadd.f32 %v487, 1.0
  %v504 = vadd.f32 %v488, 1.0
  %v505 = vadd.f32 %v489, 1.0
  %v506 = vadd.f32 %v490, 1.0
  %v507 = vmul.f32 %v491, 0.5
  %v508 = vmul.f32 %v492, 0.5
  %v509 = vmul.f32 %v493, 0.5
  %v510 = vmul.f32 %v494, 0.5
  %v511 = vmul.f32 %v495, 0.5
  %v512 = vmul.f32 %v496, 0.5
  %v513 = vmul.f32 %v497, 0.5
  %v514 = vmul.f32 %v498, 0.5
  %v515 = vmul.f32 %v499, 0.5
  %v516 = vmul.f32 %v500, 0.5
  %v517 = vmul.f32 %v501, 0.5
  %v518 = vmul.f32 %v502, 0.5
  %v519 = vmul.f32 %v503, 0.5
  %v520 = vmul.f32 %v504, 0.5
  %v521 = vmul.f32 %v505, 0.5
  %v522 = vmul.f32 %v506, 0.5
  %v523 = vmul.f32 %v379, %v507
  %v524 = vmul.f32 %v380, %v508
  %v525 = vmul.f32 %v381, %v509
  %v526 = vmul.f32 %v382, %v510
  %v527 = vmul.f32 %v383, %v511
  %v528 = vmul.f32 %v384, %v512
  %v529 = vmul.f32 %v385, %v513
  %v530 = vmul.f32 %v386, %v514
  %v531 = vmul.f32 %v387, %v515
  %v532 = vmul.f32 %v388, %v516
  %v533 = vmul.f32 %v389, %v517
  %v534 = vmul.f32 %v390, %v518
  %v535 = vmul.f32 %v391, %v519
  %v536 = vmul.f32 %v392, %v520
  %v537 = vmul.f32 %v393, %v521
  %v538 = vmul.f32 %v394, %v522
  %v539 = vpack.c.bf16 %v527, %v523
  %v540 = vpack.c.bf16 %v528, %v524
  %v541 = vpack.c.bf16 %v529, %v525
  %v542 = vpack.c.bf16 %v530, %v526
  %v543 = vpack.c.bf16 %v535, %v531
  %v544 = vpack.c.bf16 %v536, %v532
  %v545 = vpack.c.bf16 %v537, %v533
  %v546 = vpack.c.bf16 %v538, %v534
  %v555 = vunpack.c.l.b16 %v539
  %v556 = vunpack.c.l.b16 %v540
  %v557 = vunpack.c.l.b16 %v541
  %v558 = vunpack.c.l.b16 %v542
  %v559 = vunpack.c.h.b16 %v539
  %v560 = vunpack.c.h.b16 %v540
  %v561 = vunpack.c.h.b16 %v541
  %v562 = vunpack.c.h.b16 %v542
  %v563 = vunpack.c.l.b16 %v543
  %v564 = vunpack.c.l.b16 %v544
  %v565 = vunpack.c.l.b16 %v545
  %v566 = vunpack.c.l.b16 %v546
  %v567 = vunpack.c.h.b16 %v543
  %v568 = vunpack.c.h.b16 %v544
  %v569 = vunpack.c.h.b16 %v545
  %v570 = vunpack.c.h.b16 %v546
  %v571 = vpack.c.b16 %v556, %v555
  %v572 = vpack.c.b16 %v558, %v557
  %v573 = vpack.c.b16 %v560, %v559
  %v574 = vpack.c.b16 %v562, %v561
  %v575 = vpack.c.b16 %v564, %v563
  %v576 = vpack.c.b16 %v566, %v565
  %v577 = vpack.c.b16 %v568, %v567
  %v578 = vpack.c.b16 %v570, %v569
  %587 = vst [vmem:[%s4] sm:$0xff] %v571
  %588 = vst [vmem:[%s4 + $0x8] sm:$0xff] %v572
  %589 = vst [vmem:[%s4 + $0x10] sm:$0xff] %v573
  %590 = vst [vmem:[%s4 + $0x18] sm:$0xff] %v574
  %591 = vst [vmem:[%s4 + $0x20] sm:$0xff] %v575
  %592 = vst [vmem:[%s4 + $0x28] sm:$0xff] %v576
  %593 = vst [vmem:[%s4 + $0x30] sm:$0xff] %v577
  %594 = vst [vmem:[%s4 + $0x38] sm:$0xff] %v578
  // Predicated region
  $region22: #{exl2_forward.14} parent=0 // pred_check
    _
  $region23: #{exl2_forward.14} parent=0 // pred_check_branch
    %596 = sbr.rel (0) target = $region25
  $region24: #{exl2_forward.14} parent=0 // pred_region
    _
  $region25: #{exl2_forward.14} parent=0 // pred_fallthru
    _
  // Predicated region
  $region26: #{exl2_forward.14} parent=0 // pred_check
    _
  $region27: #{exl2_forward.14} parent=0 // pred_check_branch
    %598 = sbr.rel (0) target = $region29
  $region28: #{exl2_forward.14} parent=0 // pred_region
    _
  $region29: #{exl2_forward.14} parent=0 // pred_fallthru
    _

// kernel: exl2_forward.15
$region0: #{exl2_forward.15}
  #allocation0 [shape = 'u32[]', space=smem, size = 0x4, offset = 0x4, fixed_abs, tag = 'smem constant byte address 0x4 - core index']
  #allocation1 [shape = 'u32[144,128]{1,0:T(1,128)}', space=vmem, size = 0x12000, scoped, tag = 'internal scratch']
  #allocation2 [shape = 'f32[32,256]{1,0:T(8,128)}', space=vmem, size = 0x8000, scoped, tag = 'scratch operand']
  %s0 = inlined_call_operand.vmem [shape: bf16[32,512], index: 0, kind: input, shape index: {}]
  %s1 = inlined_call_operand.vmem [shape: s8[512,256], index: 1, kind: input, shape index: {}]
  %s2 = inlined_call_operand.vmem [shape: f32[1,256], index: 2, kind: input, shape index: {}]
  %s3 = inlined_call_operand.vmem [shape: bf16[32,256], index: 3, kind: input, shape index: {}]
  %s4 = inlined_call_operand.vmem [shape: bf16[32,256], index: 4, kind: output, shape index: {}]
  %s5 = sld [smem:[#allocation0]]
  $region34: #{exl2_forward.15} parent=0
    _
  %s7 = ssub.s32 1, %s5
  %s8 = scalar_select 0, %s7, %s5
  // Predicated region
  $region2: #{exl2_forward.15} parent=0 // pred_check
    _
  $region3: #{exl2_forward.15} parent=0 // pred_check_branch
    %10 = sbr.rel (0) target = $region5
  $region4: #{exl2_forward.15} parent=0 // pred_region
    _
  $region5: #{exl2_forward.15} parent=0 // pred_fallthru
    _
  // Predicated region
  $region6: #{exl2_forward.15} parent=0 // pred_check
    _
  $region7: #{exl2_forward.15} parent=0 // pred_check_branch
    %12 = sbr.rel (0) target = $region9
  $region8: #{exl2_forward.15} parent=0 // pred_region
    _
  $region9: #{exl2_forward.15} parent=0 // pred_fallthru
    _
  // Predicated region
  $region10: #{exl2_forward.15} parent=0 // pred_check
    _
  $region11: #{exl2_forward.15} parent=0 // pred_check_branch
    %14 = sbr.rel (0) target = $region13
  $region12: #{exl2_forward.15} parent=0 // pred_region
    _
  $region13: #{exl2_forward.15} parent=0 // pred_fallthru
    _
  // Predicated region
  $region14: #{exl2_forward.15} parent=0 // pred_check
    _
  $region15: #{exl2_forward.15} parent=0 // pred_check_branch
    %16 = sbr.rel (0) target = $region17
  $region16: #{exl2_forward.15} parent=0 // pred_region
    _
  $region17: #{exl2_forward.15} parent=0 // pred_fallthru
    _
  %p17 = scmp.eq.s32.totalorder 0, 0
  // Predicated region
  $region18: #{exl2_forward.15} parent=0 // pred_check
    %p18 = pneg %p17
  $region19: #{exl2_forward.15} parent=0 // pred_check_branch
    %20 = sbr.rel (%p18) target = $region21
  $region20: #{exl2_forward.15} parent=0 // pred_region
    %21 = vst [vmem:[#allocation2] sm:$0xff] 0.0
    %22 = vst [vmem:[#allocation2 + $0x8] sm:$0xff] 0.0
    %23 = vst [vmem:[#allocation2 + $0x10] sm:$0xff] 0.0
    %24 = vst [vmem:[#allocation2 + $0x18] sm:$0xff] 0.0
    %25 = vst [vmem:[#allocation2 + $0x20] sm:$0xff] 0.0
    %26 = vst [vmem:[#allocation2 + $0x28] sm:$0xff] 0.0
    %27 = vst [vmem:[#allocation2 + $0x30] sm:$0xff] 0.0
    %28 = vst [vmem:[#allocation2 + $0x38] sm:$0xff] 0.0
  $region21: #{exl2_forward.15} parent=0 // pred_fallthru
    _
  %v29 = vld [vmem:[%s1] sm:$0xff]
  %v30 = vld [vmem:[%s1 + $0x8] sm:$0xff]
  %v31 = vld [vmem:[%s1 + $0x10] sm:$0xff]
  %v32 = vld [vmem:[%s1 + $0x18] sm:$0xff]
  %v33 = vld [vmem:[%s1 + $0x20] sm:$0xff]
  %v34 = vld [vmem:[%s1 + $0x28] sm:$0xff]
  %v35 = vld [vmem:[%s1 + $0x30] sm:$0xff]
  %v36 = vld [vmem:[%s1 + $0x38] sm:$0xff]
  %v37 = vld [vmem:[%s1 + $0x40] sm:$0xff]
  %v38 = vld [vmem:[%s1 + $0x48] sm:$0xff]
  %v39 = vld [vmem:[%s1 + $0x50] sm:$0xff]
  %v40 = vld [vmem:[%s1 + $0x58] sm:$0xff]
  %v41 = vld [vmem:[%s1 + $0x60] sm:$0xff]
  %v42 = vld [vmem:[%s1 + $0x68] sm:$0xff]
  %v43 = vld [vmem:[%s1 + $0x70] sm:$0xff]
  %v44 = vld [vmem:[%s1 + $0x78] sm:$0xff]
  %v45 = vld [vmem:[%s1 + $0x80] sm:$0xff]
  %v46 = vld [vmem:[%s1 + $0x88] sm:$0xff]
  %v47 = vld [vmem:[%s1 + $0x90] sm:$0xff]
  %v48 = vld [vmem:[%s1 + $0x98] sm:$0xff]
  %v49 = vld [vmem:[%s1 + $0xa0] sm:$0xff]
  %v50 = vld [vmem:[%s1 + $0xa8] sm:$0xff]
  %v51 = vld [vmem:[%s1 + $0xb0] sm:$0xff]
  %v52 = vld [vmem:[%s1 + $0xb8] sm:$0xff]
  %v53 = vld [vmem:[%s1 + $0xc0] sm:$0xff]
  %v54 = vld [vmem:[%s1 + $0xc8] sm:$0xff]
  %v55 = vld [vmem:[%s1 + $0xd0] sm:$0xff]
  %v56 = vld [vmem:[%s1 + $0xd8] sm:$0xff]
  %v57 = vld [vmem:[%s1 + $0xe0] sm:$0xff]
  %v58 = vld [vmem:[%s1 + $0xe8] sm:$0xff]
  %v59 = vld [vmem:[%s1 + $0xf0] sm:$0xff]
  %v60 = vld [vmem:[%s1 + $0xf8] sm:$0xff]
  %v61 = vunpack.c.l.s8.bf16 %v29
  %v62 = vunpack.c.l.s8.bf16 %v30
  %v63 = vunpack.c.h.s8.bf16 %v29
  %v64 = vunpack.c.h.s8.bf16 %v30
  %v65 = vunpack.c.l.s8.bf16 %v31
  %v66 = vunpack.c.l.s8.bf16 %v32
  %v67 = vunpack.c.h.s8.bf16 %v31
  %v68 = vunpack.c.h.s8.bf16 %v32
  %v69 = vunpack.c.l.s8.bf16 %v33
  %v70 = vunpack.c.l.s8.bf16 %v34
  %v71 = vunpack.c.h.s8.bf16 %v33
  %v72 = vunpack.c.h.s8.bf16 %v34
  %v73 = vunpack.c.l.s8.bf16 %v35
  %v74 = vunpack.c.l.s8.bf16 %v36
  %v75 = vunpack.c.h.s8.bf16 %v35
  %v76 = vunpack.c.h.s8.bf16 %v36
  %v77 = vunpack.c.l.s8.bf16 %v37
  %v78 = vunpack.c.l.s8.bf16 %v38
  %v79 = vunpack.c.h.s8.bf16 %v37
  %v80 = vunpack.c.h.s8.bf16 %v38
  %v81 = vunpack.c.l.s8.bf16 %v39
  %v82 = vunpack.c.l.s8.bf16 %v40
  %v83 = vunpack.c.h.s8.bf16 %v39
  %v84 = vunpack.c.h.s8.bf16 %v40
  %v85 = vunpack.c.l.s8.bf16 %v41
  %v86 = vunpack.c.l.s8.bf16 %v42
  %v87 = vunpack.c.h.s8.bf16 %v41
  %v88 = vunpack.c.h.s8.bf16 %v42
  %v89 = vunpack.c.l.s8.bf16 %v43
  %v90 = vunpack.c.l.s8.bf16 %v44
  %v91 = vunpack.c.h.s8.bf16 %v43
  %v92 = vunpack.c.h.s8.bf16 %v44
  %v93 = vunpack.c.l.s8.bf16 %v45
  %v94 = vunpack.c.l.s8.bf16 %v46
  %v95 = vunpack.c.h.s8.bf16 %v45
  %v96 = vunpack.c.h.s8.bf16 %v46
  %v97 = vunpack.c.l.s8.bf16 %v47
  %v98 = vunpack.c.l.s8.bf16 %v48
  %v99 = vunpack.c.h.s8.bf16 %v47
  %v100 = vunpack.c.h.s8.bf16 %v48
  %v101 = vunpack.c.l.s8.bf16 %v49
  %v102 = vunpack.c.l.s8.bf16 %v50
  %v103 = vunpack.c.h.s8.bf16 %v49
  %v104 = vunpack.c.h.s8.bf16 %v50
  %v105 = vunpack.c.l.s8.bf16 %v51
  %v106 = vunpack.c.l.s8.bf16 %v52
  %v107 = vunpack.c.h.s8.bf16 %v51
  %v108 = vunpack.c.h.s8.bf16 %v52
  %v109 = vunpack.c.l.s8.bf16 %v53
  %v110 = vunpack.c.l.s8.bf16 %v54
  %v111 = vunpack.c.h.s8.bf16 %v53
  %v112 = vunpack.c.h.s8.bf16 %v54
  %v113 = vunpack.c.l.s8.bf16 %v55
  %v114 = vunpack.c.l.s8.bf16 %v56
  %v115 = vunpack.c.h.s8.bf16 %v55
  %v116 = vunpack.c.h.s8.bf16 %v56
  %v117 = vunpack.c.l.s8.bf16 %v57
  %v118 = vunpack.c.l.s8.bf16 %v58
  %v119 = vunpack.c.h.s8.bf16 %v57
  %v120 = vunpack.c.h.s8.bf16 %v58
  %v121 = vunpack.c.l.s8.bf16 %v59
  %v122 = vunpack.c.l.s8.bf16 %v60
  %v123 = vunpack.c.h.s8.bf16 %v59
  %v124 = vunpack.c.h.s8.bf16 %v60
  %v125 = vld [vmem:[#allocation2] sm:$0xff]
  %v126 = vld [vmem:[#allocation2 + $0x8] sm:$0xff]
  %v127 = vld [vmem:[#allocation2 + $0x10] sm:$0xff]
  %v128 = vld [vmem:[#allocation2 + $0x18] sm:$0xff]
  %v129 = vld [vmem:[#allocation2 + $0x20] sm:$0xff]
  %v130 = vld [vmem:[#allocation2 + $0x28] sm:$0xff]
  %v131 = vld [vmem:[#allocation2 + $0x30] sm:$0xff]
  %v132 = vld [vmem:[#allocation2 + $0x38] sm:$0xff]
  %v133 = vld [vmem:[%s0] sm:$0xff]
  %v134 = vld [vmem:[%s0 + $0x8] sm:$0xff]
  %v135 = vld [vmem:[%s0 + $0x10] sm:$0xff]
  %v136 = vld [vmem:[%s0 + $0x18] sm:$0xff]
  %v137 = vld [vmem:[%s0 + $0x20] sm:$0xff]
  %v138 = vld [vmem:[%s0 + $0x28] sm:$0xff]
  %v139 = vld [vmem:[%s0 + $0x30] sm:$0xff]
  %v140 = vld [vmem:[%s0 + $0x38] sm:$0xff]
  %v149 = vunpack.c.l.b16 %v133
  %v150 = vunpack.c.h.b16 %v133
  %v151 = vunpack.c.l.b16 %v134
  %v152 = vunpack.c.h.b16 %v134
  %v153 = vunpack.c.l.b16 %v135
  %v154 = vunpack.c.h.b16 %v135
  %v155 = vunpack.c.l.b16 %v136
  %v156 = vunpack.c.h.b16 %v136
  %v157 = vunpack.c.l.b16 %v137
  %v158 = vunpack.c.h.b16 %v137
  %v159 = vunpack.c.l.b16 %v138
  %v160 = vunpack.c.h.b16 %v138
  %v161 = vunpack.c.l.b16 %v139
  %v162 = vunpack.c.h.b16 %v139
  %v163 = vunpack.c.l.b16 %v140
  %v164 = vunpack.c.h.b16 %v140
  %v165 = vpack.c.b16 %v153, %v149
  %v166 = vpack.c.b16 %v154, %v150
  %v167 = vpack.c.b16 %v155, %v151
  %v168 = vpack.c.b16 %v156, %v152
  %v169 = vpack.c.b16 %v161, %v157
  %v170 = vpack.c.b16 %v162, %v158
  %v171 = vpack.c.b16 %v163, %v159
  %v172 = vpack.c.b16 %v164, %v160
  %181 = vmatprep.subr.bf16.mxu0 %v76
  %182 = vmatpush1.bf16.msra.mxu0 %v75
  %183 = vmatprep.subr.bf16.mxu0 %v74
  %184 = vmatpush1.bf16.msra.mxu0 %v73
  %185 = vmatprep.subr.bf16.mxu0 %v72
  %186 = vmatpush1.bf16.msra.mxu0 %v71
  %187 = vmatprep.subr.bf16.mxu0 %v70
  %188 = vmatpush1.bf16.msra.mxu0 %v69
  %189 = vmatprep.subr.bf16.mxu0 %v68
  %190 = vmatpush1.bf16.msra.mxu0 %v67
  %191 = vmatprep.subr.bf16.mxu0 %v66
  %192 = vmatpush1.bf16.msra.mxu0 %v65
  %193 = vmatprep.subr.bf16.mxu0 %v64
  %194 = vmatpush1.bf16.msra.mxu0 %v63
  %195 = vmatprep.subr.bf16.mxu0 %v62
  %196 = vmatpush1.bf16.msra.mxu0 %v61
  %197 = vmatprep.subr.bf16.mxu0 %v92
  %198 = vmatpush2.bf16.msra.mxu0 %v91
  %199 = vmatprep.subr.bf16.mxu0 %v90
  %200 = vmatpush2.bf16.msra.mxu0 %v89
  %201 = vmatprep.subr.bf16.mxu0 %v88
  %202 = vmatpush2.bf16.msra.mxu0 %v87
  %203 = vmatprep.subr.bf16.mxu0 %v86
  %204 = vmatpush2.bf16.msra.mxu0 %v85
  %205 = vmatprep.subr.bf16.mxu0 %v84
  %206 = vmatpush2.bf16.msra.mxu0 %v83
  %207 = vmatprep.subr.bf16.mxu0 %v82
  %208 = vmatpush2.bf16.msra.mxu0 %v81
  %209 = vmatprep.subr.bf16.mxu0 %v80
  %210 = vmatpush2.bf16.msra.mxu0 %v79
  %211 = vmatprep.subr.bf16.mxu0 %v78
  %212 = vmatpush2.bf16.msra.mxu0 %v77
  %213 = vmatprep.mubr.bf16.mxu0 %v166
  %214 = vmatmul.mubr.bf16.gmra.mxu0 %v165
  %v215 = vpop.f32.mrf.mxu0
  %v216 = vadd.f32 0.0, %v215
  %v217 = vpop.f32.mrf.mxu0
  %v218 = vadd.f32 0.0, %v217
  %v219 = vpop.f32.mrf.mxu0
  %v220 = vadd.f32 0.0, %v219
  %v221 = vpop.f32.mrf.mxu0
  %v222 = vadd.f32 0.0, %v221
  %223 = vmatprep.mubr.bf16.mxu0 %v170
  %224 = vmatmul.mubr.bf16.gmra.mxu0 %v169
  %v225 = vpop.f32.mrf.mxu0
  %v226 = vadd.f32 0.0, %v225
  %v227 = vpop.f32.mrf.mxu0
  %v228 = vadd.f32 0.0, %v227
  %v229 = vpop.f32.mrf.mxu0
  %v230 = vadd.f32 0.0, %v229
  %v231 = vpop.f32.mrf.mxu0
  %v232 = vadd.f32 0.0, %v231
  %233 = vdwg.mxu0
  %234 = vmatprep.subr.bf16.mxu0 %v108
  %235 = vmatpush1.bf16.msra.mxu0 %v107
  %236 = vmatprep.subr.bf16.mxu0 %v106
  %237 = vmatpush1.bf16.msra.mxu0 %v105
  %238 = vmatprep.subr.bf16.mxu0 %v104
  %239 = vmatpush1.bf16.msra.mxu0 %v103
  %240 = vmatprep.subr.bf16.mxu0 %v102
  %241 = vmatpush1.bf16.msra.mxu0 %v101
  %242 = vmatprep.subr.bf16.mxu0 %v100
  %243 = vmatpush1.bf16.msra.mxu0 %v99
  %244 = vmatprep.subr.bf16.mxu0 %v98
  %245 = vmatpush1.bf16.msra.mxu0 %v97
  %246 = vmatprep.subr.bf16.mxu0 %v96
  %247 = vmatpush1.bf16.msra.mxu0 %v95
  %248 = vmatprep.subr.bf16.mxu0 %v94
  %249 = vmatpush1.bf16.msra.mxu0 %v93
  %250 = vmatprep.subr.bf16.mxu0 %v124
  %251 = vmatpush2.bf16.msra.mxu0 %v123
  %252 = vmatprep.subr.bf16.mxu0 %v122
  %253 = vmatpush2.bf16.msra.mxu0 %v121
  %254 = vmatprep.subr.bf16.mxu0 %v120
  %255 = vmatpush2.bf16.msra.mxu0 %v119
  %256 = vmatprep.subr.bf16.mxu0 %v118
  %257 = vmatpush2.bf16.msra.mxu0 %v117
  %258 = vmatprep.subr.bf16.mxu0 %v116
  %259 = vmatpush2.bf16.msra.mxu0 %v115
  %260 = vmatprep.subr.bf16.mxu0 %v114
  %261 = vmatpush2.bf16.msra.mxu0 %v113
  %262 = vmatprep.subr.bf16.mxu0 %v112
  %263 = vmatpush2.bf16.msra.mxu0 %v111
  %264 = vmatprep.subr.bf16.mxu0 %v110
  %265 = vmatpush2.bf16.msra.mxu0 %v109
  %266 = vmatprep.mubr.bf16.mxu0 %v168
  %267 = vmatmul.mubr.bf16.gmra.mxu0 %v167
  %v268 = vpop.f32.mrf.mxu0
  %v269 = vadd.f32 %v216, %v268
  %v270 = vpop.f32.mrf.mxu0
  %v271 = vadd.f32 %v218, %v270
  %v272 = vpop.f32.mrf.mxu0
  %v273 = vadd.f32 %v220, %v272
  %v274 = vpop.f32.mrf.mxu0
  %v275 = vadd.f32 %v222, %v274
  %276 = vmatprep.mubr.bf16.mxu0 %v172
  %277 = vmatmul.mubr.bf16.gmra.mxu0 %v171
  %v278 = vpop.f32.mrf.mxu0
  %v279 = vadd.f32 %v226, %v278
  %v280 = vpop.f32.mrf.mxu0
  %v281 = vadd.f32 %v228, %v280
  %v282 = vpop.f32.mrf.mxu0
  %v283 = vadd.f32 %v230, %v282
  %v284 = vpop.f32.mrf.mxu0
  %v285 = vadd.f32 %v232, %v284
  %286 = vdwg.mxu0
  %v287 = vadd.f32 %v125, %v269
  %v288 = vadd.f32 %v126, %v271
  %v289 = vadd.f32 %v127, %v273
  %v290 = vadd.f32 %v128, %v275
  %v291 = vadd.f32 %v129, %v279
  %v292 = vadd.f32 %v130, %v281
  %v293 = vadd.f32 %v131, %v283
  %v294 = vadd.f32 %v132, %v285
  %295 = vst [vmem:[#allocation2] sm:$0xff] %v287
  %296 = vst [vmem:[#allocation2 + $0x8] sm:$0xff] %v288
  %297 = vst [vmem:[#allocation2 + $0x10] sm:$0xff] %v289
  %298 = vst [vmem:[#allocation2 + $0x18] sm:$0xff] %v290
  %299 = vst [vmem:[#allocation2 + $0x20] sm:$0xff] %v291
  %300 = vst [vmem:[#allocation2 + $0x28] sm:$0xff] %v292
  %301 = vst [vmem:[#allocation2 + $0x30] sm:$0xff] %v293
  %302 = vst [vmem:[#allocation2 + $0x38] sm:$0xff] %v294
  // Predicated region
  $region22: #{exl2_forward.15} parent=0 // pred_check
    %p303 = pneg %p17
  $region23: #{exl2_forward.15} parent=0 // pred_check_branch
    %305 = sbr.rel (%p303) target = $region25
  $region24: #{exl2_forward.15} parent=0 // pred_region
    %v306 = vld [vmem:[#allocation2] sm:$0xff]
    %v307 = vld [vmem:[#allocation2 + $0x8] sm:$0xff]
    %v308 = vld [vmem:[#allocation2 + $0x10] sm:$0xff]
    %v309 = vld [vmem:[#allocation2 + $0x18] sm:$0xff]
    %v310 = vld [vmem:[#allocation2 + $0x20] sm:$0xff]
    %v311 = vld [vmem:[#allocation2 + $0x28] sm:$0xff]
    %v312 = vld [vmem:[#allocation2 + $0x30] sm:$0xff]
    %v313 = vld [vmem:[#allocation2 + $0x38] sm:$0xff]
    %v314 = vld [vmem:[%s2] sm:$0x3]
    %v316 = vlaneseq
    %v317 = vshrl.u32 %v316, 7
    %v318 = vsub.s32 0, %v317
    %v319 = vrot.slane %v314, %v318
    %v320 = vlaneseq
    %v321 = vshrl.u32 %v320, 7
    %v322 = vsub.s32 1, %v321
    %v323 = vrot.slane %v314, %v322
    %v326 = vmul.f32 %v306, %v319
    %v327 = vmul.f32 %v307, %v323
    %v328 = vmul.f32 %v308, %v319
    %v329 = vmul.f32 %v309, %v323
    %v330 = vmul.f32 %v310, %v319
    %v331 = vmul.f32 %v311, %v323
    %v332 = vmul.f32 %v312, %v319
    %v333 = vmul.f32 %v313, %v323
    %v334 = vld [vmem:[%s3] sm:$0xff]
    %v335 = vld [vmem:[%s3 + $0x8] sm:$0xff]
    %v336 = vld [vmem:[%s3 + $0x10] sm:$0xff]
    %v337 = vld [vmem:[%s3 + $0x18] sm:$0xff]
    %v338 = vunpack.c.l.bf16 %v334
    %v339 = vunpack.c.h.bf16 %v334
    %v340 = vunpack.c.l.bf16 %v335
    %v341 = vunpack.c.h.bf16 %v335
    %v342 = vunpack.c.l.bf16 %v336
    %v343 = vunpack.c.h.bf16 %v336
    %v344 = vunpack.c.l.bf16 %v337
    %v345 = vunpack.c.h.bf16 %v337
    %v346 = vadd.f32 %v326, %v338
    %v347 = vadd.f32 %v327, %v339
    %v348 = vadd.f32 %v328, %v340
    %v349 = vadd.f32 %v329, %v341
    %v350 = vadd.f32 %v330, %v342
    %v351 = vadd.f32 %v331, %v343
    %v352 = vadd.f32 %v332, %v344
    %v353 = vadd.f32 %v333, %v345
    %v354 = vpack.c.bf16 %v348, %v346
    %v355 = vpack.c.bf16 %v349, %v347
    %v356 = vpack.c.bf16 %v352, %v350
    %v357 = vpack.c.bf16 %v353, %v351
    %v362 = vunpack.c.l.b16 %v354
    %v363 = vunpack.c.l.b16 %v355
    %v364 = vunpack.c.h.b16 %v354
    %v365 = vunpack.c.h.b16 %v355
    %v366 = vunpack.c.l.b16 %v356
    %v367 = vunpack.c.l.b16 %v357
    %v368 = vunpack.c.h.b16 %v356
    %v369 = vunpack.c.h.b16 %v357
    %v370 = vpack.c.b16 %v363, %v362
    %v371 = vpack.c.b16 %v365, %v364
    %v372 = vpack.c.b16 %v367, %v366
    %v373 = vpack.c.b16 %v369, %v368
    %378 = vst [vmem:[%s4] sm:$0xff] %v370
    %379 = vst [vmem:[%s4 + $0x8] sm:$0xff] %v371
    %380 = vst [vmem:[%s4 + $0x10] sm:$0xff] %v372
    %381 = vst [vmem:[%s4 + $0x18] sm:$0xff] %v373
  $region25: #{exl2_forward.15} parent=0 // pred_fallthru
    _
  // Predicated region
  $region26: #{exl2_forward.15} parent=0 // pred_check
    _
  $region27: #{exl2_forward.15} parent=0 // pred_check_branch
    %383 = sbr.rel (0) target = $region29
  $region28: #{exl2_forward.15} parent=0 // pred_region
    _
  $region29: #{exl2_forward.15} parent=0 // pred_fallthru
    _
  // Predicated region
  $region30: #{exl2_forward.15} parent=0 // pred_check
    _
  $region31: #{exl2_forward.15} parent=0 // pred_check_branch
    %385 = sbr.rel (0) target = $region33
  $region32: #{exl2_forward.15} parent=0 // pred_region
    _
  $region33: #{exl2_forward.15} parent=0 // pred_fallthru
    _

// kernel: exl2_forward.21
$region0: #{exl2_forward.21}
  #allocation0 [shape = 'u32[]', space=smem, size = 0x4, offset = 0x4, fixed_abs, tag = 'smem constant byte address 0x4 - core index']
  #allocation1 [shape = 'u32[144,128]{1,0:T(1,128)}', space=vmem, size = 0x12000, scoped, tag = 'internal scratch']
  #allocation2 [shape = 'bf16[32,256]{1,0:T(8,128)(2,1)}', space=vmem, size = 0x4000, scoped, tag = 'scratch operand']
  %s0 = inlined_call_operand.vmem [shape: bf16[32,256], index: 0, kind: input, shape index: {}]
  %s1 = inlined_call_operand.vmem [shape: bf16[1,256], index: 1, kind: input, shape index: {}]
  %s2 = inlined_call_operand.vmem [shape: s8[256,512], index: 2, kind: input, shape index: {}]
  %s3 = inlined_call_operand.vmem [shape: f32[1,512], index: 3, kind: input, shape index: {}]
  %s4 = inlined_call_operand.hbm [shape: bf16[32,512], index: 4, kind: output, shape index: {}]
  %s5 = sld [smem:[#allocation0]]
  $region30: #{exl2_forward.21} parent=0
    _
  %s7 = ssub.s32 1, %s5
  %s8 = scalar_select 0, %s7, %s5
  $region1: #{exl2_forward.21} parent=0
    #allocation3 [shape = 'u8[32768]{0}', space=vmem, size = 0x8000, scoped, tag = 'output window, operand 0, single buffered']
    #allocation4 [shape = 's32[1]{0}', space=sflag, size = 0x4, scoped, tag = 'scoped memory for exl2_forward.21']
    %9 = vsyncpa [#allocation4], 0
    // Predicated region
    $region2: #{exl2_forward.21} parent=1 // pred_check
      _
    $region3: #{exl2_forward.21} parent=1 // pred_check_branch
      %11 = sbr.rel (0) target = $region5
    $region4: #{exl2_forward.21} parent=1 // pred_region
      _
    $region5: #{exl2_forward.21} parent=1 // pred_fallthru
      _
    // Predicated region
    $region6: #{exl2_forward.21} parent=1 // pred_check
      _
    $region7: #{exl2_forward.21} parent=1 // pred_check_branch
      %13 = sbr.rel (0) target = $region9
    $region8: #{exl2_forward.21} parent=1 // pred_region
      _
    $region9: #{exl2_forward.21} parent=1 // pred_fallthru
      _
    // Predicated region
    $region10: #{exl2_forward.21} parent=1 // pred_check
      _
    $region11: #{exl2_forward.21} parent=1 // pred_check_branch
      %15 = sbr.rel (0) target = $region13
    $region12: #{exl2_forward.21} parent=1 // pred_region
      _
    $region13: #{exl2_forward.21} parent=1 // pred_fallthru
      _
    // Predicated region
    $region14: #{exl2_forward.21} parent=1 // pred_check
      _
    $region15: #{exl2_forward.21} parent=1 // pred_check_branch
      %17 = sbr.rel (0) target = $region17
    $region16: #{exl2_forward.21} parent=1 // pred_region
      _
    $region17: #{exl2_forward.21} parent=1 // pred_fallthru
      _
    %p18 = scmp.eq.s32.totalorder 0, 0
    // Predicated region
    $region18: #{exl2_forward.21} parent=1 // pred_check
      %p19 = pneg %p18
    $region19: #{exl2_forward.21} parent=1 // pred_check_branch
      %21 = sbr.rel (%p19) target = $region21
    $region20: #{exl2_forward.21} parent=1 // pred_region
      %v22 = vld [vmem:[%s0] sm:$0xff]
      %v23 = vld [vmem:[%s0 + $0x8] sm:$0xff]
      %v24 = vld [vmem:[%s0 + $0x10] sm:$0xff]
      %v25 = vld [vmem:[%s0 + $0x18] sm:$0xff]
      %v26 = vunpack.c.l.bf16 %v22
      %v27 = vunpack.c.h.bf16 %v22
      %v28 = vunpack.c.l.bf16 %v23
      %v29 = vunpack.c.h.bf16 %v23
      %v30 = vunpack.c.l.bf16 %v24
      %v31 = vunpack.c.h.bf16 %v24
      %v32 = vunpack.c.l.bf16 %v25
      %v33 = vunpack.c.h.bf16 %v25
      %v34 = vmul.f32 %v26, %v26
      %v35 = vmul.f32 %v27, %v27
      %v36 = vmul.f32 %v28, %v28
      %v37 = vmul.f32 %v29, %v29
      %v38 = vmul.f32 %v30, %v30
      %v39 = vmul.f32 %v31, %v31
      %v40 = vmul.f32 %v32, %v32
      %v41 = vmul.f32 %v33, %v33
      %v42 = vadd.f32 %v34, %v35
      %43 = vadd.xlane.f32.xlu0 %v42
      %v44 = vpop.xlane.xlu0 %43
      %v45 = vadd.f32 %v36, %v37
      %46 = vadd.xlane.f32.xlu0 %v45
      %v47 = vpop.xlane.xlu0 %46
      %v48 = vadd.f32 %v38, %v39
      %49 = vadd.xlane.f32.xlu0 %v48
      %v50 = vpop.xlane.xlu0 %49
      %v51 = vadd.f32 %v40, %v41
      %52 = vadd.xlane.f32.xlu0 %v51
      %v53 = vpop.xlane.xlu0 %52
      %v54 = vrcp.pop 256.0
      %v55 = vmul.f32 %v44, %v54
      %v56 = vmul.f32 %v47, %v54
      %v57 = vmul.f32 %v50, %v54
      %v58 = vmul.f32 %v53, %v54
      %v59 = vadd.f32 %v55, 1e-06
      %v60 = vadd.f32 %v56, 1e-06
      %v61 = vadd.f32 %v57, 1e-06
      %v62 = vadd.f32 %v58, 1e-06
      %v63 = vrsqrt.pop %v59
      %v64 = vrsqrt.pop %v60
      %v65 = vrsqrt.pop %v61
      %v66 = vrsqrt.pop %v62
      %v67 = vmul.f32 %v26, %v63
      %v68 = vmul.f32 %v27, %v63
      %v69 = vmul.f32 %v28, %v64
      %v70 = vmul.f32 %v29, %v64
      %v71 = vmul.f32 %v30, %v65
      %v72 = vmul.f32 %v31, %v65
      %v73 = vmul.f32 %v32, %v66
      %v74 = vmul.f32 %v33, %v66
      %v75 = vld [vmem:[%s1] sm:$0x3]
      %v76 = vunpack.c.l.bf16 %v75
      %v78 = vlaneseq
      %v79 = vshrl.u32 %v78, 7
      %v80 = vsub.s32 0, %v79
      %v81 = vrot.slane %v76, %v80
      %v82 = vlaneseq
      %v83 = vshrl.u32 %v82, 7
      %v84 = vsub.s32 2, %v83
      %v85 = vrot.slane %v76, %v84
      %v88 = vlaneseq
      %v89 = vshrl.u32 %v88, 7
      %v90 = vsub.s32 0, %v89
      %v91 = vrot.slane %v81, %v90
      %v92 = vlaneseq
      %v93 = vshrl.u32 %v92, 7
      %v94 = vsub.s32 0, %v93
      %v95 = vrot.slane %v85, %v94
      %v96 = vmul.f32 %v67, %v91
      %v97 = vmul.f32 %v68, %v95
      %v98 = vmul.f32 %v69, %v91
      %v99 = vmul.f32 %v70, %v95
      %v100 = vmul.f32 %v71, %v91
      %v101 = vmul.f32 %v72, %v95
      %v102 = vmul.f32 %v73, %v91
      %v103 = vmul.f32 %v74, %v95
      %v104 = vpack.c.bf16 %v98, %v96
      %v105 = vpack.c.bf16 %v99, %v97
      %v106 = vpack.c.bf16 %v102, %v100
      %v107 = vpack.c.bf16 %v103, %v101
      %v112 = vunpack.c.l.b16 %v104
      %v113 = vunpack.c.l.b16 %v105
      %v114 = vunpack.c.h.b16 %v104
      %v115 = vunpack.c.h.b16 %v105
      %v116 = vunpack.c.l.b16 %v106
      %v117 = vunpack.c.l.b16 %v107
      %v118 = vunpack.c.h.b16 %v106
      %v119 = vunpack.c.h.b16 %v107
      %v120 = vpack.c.b16 %v113, %v112
      %v121 = vpack.c.b16 %v115, %v114
      %v122 = vpack.c.b16 %v117, %v116
      %v123 = vpack.c.b16 %v119, %v118
      %128 = vst [vmem:[#allocation2] sm:$0xff] %v120
      %129 = vst [vmem:[#allocation2 + $0x8] sm:$0xff] %v121
      %130 = vst [vmem:[#allocation2 + $0x10] sm:$0xff] %v122
      %131 = vst [vmem:[#allocation2 + $0x18] sm:$0xff] %v123
    $region21: #{exl2_forward.21} parent=1 // pred_fallthru
      _
    %v132 = vld [vmem:[%s2] sm:$0xff]
    %v133 = vld [vmem:[%s2 + $0x8] sm:$0xff]
    %v134 = vld [vmem:[%s2 + $0x10] sm:$0xff]
    %v135 = vld [vmem:[%s2 + $0x18] sm:$0xff]
    %v136 = vld [vmem:[%s2 + $0x20] sm:$0xff]
    %v137 = vld [vmem:[%s2 + $0x28] sm:$0xff]
    %v138 = vld [vmem:[%s2 + $0x30] sm:$0xff]
    %v139 = vld [vmem:[%s2 + $0x38] sm:$0xff]
    %v140 = vld [vmem:[%s2 + $0x40] sm:$0xff]
    %v141 = vld [vmem:[%s2 + $0x48] sm:$0xff]
    %v142 = vld [vmem:[%s2 + $0x50] sm:$0xff]
    %v143 = vld [vmem:[%s2 + $0x58] sm:$0xff]
    %v144 = vld [vmem:[%s2 + $0x60] sm:$0xff]
    %v145 = vld [vmem:[%s2 + $0x68] sm:$0xff]
    %v146 = vld [vmem:[%s2 + $0x70] sm:$0xff]
    %v147 = vld [vmem:[%s2 + $0x78] sm:$0xff]
    %v148 = vld [vmem:[%s2 + $0x80] sm:$0xff]
    %v149 = vld [vmem:[%s2 + $0x88] sm:$0xff]
    %v150 = vld [vmem:[%s2 + $0x90] sm:$0xff]
    %v151 = vld [vmem:[%s2 + $0x98] sm:$0xff]
    %v152 = vld [vmem:[%s2 + $0xa0] sm:$0xff]
    %v153 = vld [vmem:[%s2 + $0xa8] sm:$0xff]
    %v154 = vld [vmem:[%s2 + $0xb0] sm:$0xff]
    %v155 = vld [vmem:[%s2 + $0xb8] sm:$0xff]
    %v156 = vld [vmem:[%s2 + $0xc0] sm:$0xff]
    %v157 = vld [vmem:[%s2 + $0xc8] sm:$0xff]
    %v158 = vld [vmem:[%s2 + $0xd0] sm:$0xff]
    %v159 = vld [vmem:[%s2 + $0xd8] sm:$0xff]
    %v160 = vld [vmem:[%s2 + $0xe0] sm:$0xff]
    %v161 = vld [vmem:[%s2 + $0xe8] sm:$0xff]
    %v162 = vld [vmem:[%s2 + $0xf0] sm:$0xff]
    %v163 = vld [vmem:[%s2 + $0xf8] sm:$0xff]
    %v164 = vunpack.c.l.s8.bf16 %v132
    %v165 = vunpack.c.l.s8.bf16 %v133
    %v166 = vunpack.c.l.s8.bf16 %v134
    %v167 = vunpack.c.l.s8.bf16 %v135
    %v168 = vunpack.c.h.s8.bf16 %v132
    %v169 = vunpack.c.h.s8.bf16 %v133
    %v170 = vunpack.c.h.s8.bf16 %v134
    %v171 = vunpack.c.h.s8.bf16 %v135
    %v172 = vunpack.c.l.s8.bf16 %v136
    %v173 = vunpack.c.l.s8.bf16 %v137
    %v174 = vunpack.c.l.s8.bf16 %v138
    %v175 = vunpack.c.l.s8.bf16 %v139
    %v176 = vunpack.c.h.s8.bf16 %v136
    %v177 = vunpack.c.h.s8.bf16 %v137
    %v178 = vunpack.c.h.s8.bf16 %v138
    %v179 = vunpack.c.h.s8.bf16 %v139
    %v180 = vunpack.c.l.s8.bf16 %v140
    %v181 = vunpack.c.l.s8.bf16 %v141
    %v182 = vunpack.c.l.s8.bf16 %v142
    %v183 = vunpack.c.l.s8.bf16 %v143
    %v184 = vunpack.c.h.s8.bf16 %v140
    %v185 = vunpack.c.h.s8.bf16 %v141
    %v186 = vunpack.c.h.s8.bf16 %v142
    %v187 = vunpack.c.h.s8.bf16 %v143
    %v188 = vunpack.c.l.s8.bf16 %v144
    %v189 = vunpack.c.l.s8.bf16 %v145
    %v190 = vunpack.c.l.s8.bf16 %v146
    %v191 = vunpack.c.l.s8.bf16 %v147
    %v192 = vunpack.c.h.s8.bf16 %v144
    %v193 = vunpack.c.h.s8.bf16 %v145
    %v194 = vunpack.c.h.s8.bf16 %v146
    %v195 = vunpack.c.h.s8.bf16 %v147
    %v196 = vunpack.c.l.s8.bf16 %v148
    %v197 = vunpack.c.l.s8.bf16 %v149
    %v198 = vunpack.c.l.s8.bf16 %v150
    %v199 = vunpack.c.l.s8.bf16 %v151
    %v200 = vunpack.c.h.s8.bf16 %v148
    %v201 = vunpack.c.h.s8.bf16 %v149
    %v202 = vunpack.c.h.s8.bf16 %v150
    %v203 = vunpack.c.h.s8.bf16 %v151
    %v204 = vunpack.c.l.s8.bf16 %v152
    %v205 = vunpack.c.l.s8.bf16 %v153
    %v206 = vunpack.c.l.s8.bf16 %v154
    %v207 = vunpack.c.l.s8.bf16 %v155
    %v208 = vunpack.c.h.s8.bf16 %v152
    %v209 = vunpack.c.h.s8.bf16 %v153
    %v210 = vunpack.c.h.s8.bf16 %v154
    %v211 = vunpack.c.h.s8.bf16 %v155
    %v212 = vunpack.c.l.s8.bf16 %v156
    %v213 = vunpack.c.l.s8.bf16 %v157
    %v214 = vunpack.c.l.s8.bf16 %v158
    %v215 = vunpack.c.l.s8.bf16 %v159
    %v216 = vunpack.c.h.s8.bf16 %v156
    %v217 = vunpack.c.h.s8.bf16 %v157
    %v218 = vunpack.c.h.s8.bf16 %v158
    %v219 = vunpack.c.h.s8.bf16 %v159
    %v220 = vunpack.c.l.s8.bf16 %v160
    %v221 = vunpack.c.l.s8.bf16 %v161
    %v222 = vunpack.c.l.s8.bf16 %v162
    %v223 = vunpack.c.l.s8.bf16 %v163
    %v224 = vunpack.c.h.s8.bf16 %v160
    %v225 = vunpack.c.h.s8.bf16 %v161
    %v226 = vunpack.c.h.s8.bf16 %v162
    %v227 = vunpack.c.h.s8.bf16 %v163
    %v228 = vld [vmem:[#allocation2] sm:$0xff]
    %v229 = vld [vmem:[#allocation2 + $0x8] sm:$0xff]
    %v230 = vld [vmem:[#allocation2 + $0x10] sm:$0xff]
    %v231 = vld [vmem:[#allocation2 + $0x18] sm:$0xff]
    %v236 = vunpack.c.l.b16 %v228
    %v237 = vunpack.c.h.b16 %v228
    %v238 = vunpack.c.l.b16 %v229
    %v239 = vunpack.c.h.b16 %v229
    %v240 = vunpack.c.l.b16 %v230
    %v241 = vunpack.c.h.b16 %v230
    %v242 = vunpack.c.l.b16 %v231
    %v243 = vunpack.c.h.b16 %v231
    %v244 = vpack.c.b16 %v238, %v236
    %v245 = vpack.c.b16 %v239, %v237
    %v246 = vpack.c.b16 %v242, %v240
    %v247 = vpack.c.b16 %v243, %v241
    %252 = vmatprep.subr.bf16.mxu0 %v193
    %253 = vmatpush1.bf16.msra.mxu0 %v192
    %254 = vmatprep.subr.bf16.mxu0 %v189
    %255 = vmatpush1.bf16.msra.mxu0 %v188
    %256 = vmatprep.subr.bf16.mxu0 %v185
    %257 = vmatpush1.bf16.msra.mxu0 %v184
    %258 = vmatprep.subr.bf16.mxu0 %v181
    %259 = vmatpush1.bf16.msra.mxu0 %v180
    %260 = vmatprep.subr.bf16.mxu0 %v177
    %261 = vmatpush1.bf16.msra.mxu0 %v176
    %262 = vmatprep.subr.bf16.mxu0 %v173
    %263 = vmatpush1.bf16.msra.mxu0 %v172
    %264 = vmatprep.subr.bf16.mxu0 %v169
    %265 = vmatpush1.bf16.msra.mxu0 %v168
    %266 = vmatprep.subr.bf16.mxu0 %v165
    %267 = vmatpush1.bf16.msra.mxu0 %v164
    %268 = vmatprep.subr.bf16.mxu0 %v225
    %269 = vmatpush2.bf16.msra.mxu0 %v224
    %270 = vmatprep.subr.bf16.mxu0 %v221
    %271 = vmatpush2.bf16.msra.mxu0 %v220
    %272 = vmatprep.subr.bf16.mxu0 %v217
    %273 = vmatpush2.bf16.msra.mxu0 %v216
    %274 = vmatprep.subr.bf16.mxu0 %v213
    %275 = vmatpush2.bf16.msra.mxu0 %v212
    %276 = vmatprep.subr.bf16.mxu0 %v209
    %277 = vmatpush2.bf16.msra.mxu0 %v208
    %278 = vmatprep.subr.bf16.mxu0 %v205
    %279 = vmatpush2.bf16.msra.mxu0 %v204
    %280 = vmatprep.subr.bf16.mxu0 %v201
    %281 = vmatpush2.bf16.msra.mxu0 %v200
    %282 = vmatprep.subr.bf16.mxu0 %v197
    %283 = vmatpush2.bf16.msra.mxu0 %v196
    %284 = vmatprep.mubr.bf16.mxu0 %v245
    %285 = vmatmul.mubr.bf16.gmra.mxu0 %v244
    %v286 = vpop.f32.mrf.mxu0
    %v287 = vadd.f32 0.0, %v286
    %v288 = vpop.f32.mrf.mxu0
    %v289 = vadd.f32 0.0, %v288
    %v290 = vpop.f32.mrf.mxu0
    %v291 = vadd.f32 0.0, %v290
    %v292 = vpop.f32.mrf.mxu0
    %v293 = vadd.f32 0.0, %v292
    %294 = vmatprep.mubr.bf16.mxu0 %v247
    %295 = vmatmul.mubr.bf16.gmra.mxu0 %v246
    %v296 = vpop.f32.mrf.mxu0
    %v297 = vadd.f32 0.0, %v296
    %v298 = vpop.f32.mrf.mxu0
    %v299 = vadd.f32 0.0, %v298
    %v300 = vpop.f32.mrf.mxu0
    %v301 = vadd.f32 0.0, %v300
    %v302 = vpop.f32.mrf.mxu0
    %v303 = vadd.f32 0.0, %v302
    %304 = vdwg.mxu0
    %305 = vmatprep.subr.bf16.mxu0 %v195
    %306 = vmatpush1.bf16.msra.mxu0 %v194
    %307 = vmatprep.subr.bf16.mxu0 %v191
    %308 = vmatpush1.bf16.msra.mxu0 %v190
    %309 = vmatprep.subr.bf16.mxu0 %v187
    %310 = vmatpush1.bf16.msra.mxu0 %v186
    %311 = vmatprep.subr.bf16.mxu0 %v183
    %312 = vmatpush1.bf16.msra.mxu0 %v182
    %313 = vmatprep.subr.bf16.mxu0 %v179
    %314 = vmatpush1.bf16.msra.mxu0 %v178
    %315 = vmatprep.subr.bf16.mxu0 %v175
    %316 = vmatpush1.bf16.msra.mxu0 %v174
    %317 = vmatprep.subr.bf16.mxu0 %v171
    %318 = vmatpush1.bf16.msra.mxu0 %v170
    %319 = vmatprep.subr.bf16.mxu0 %v167
    %320 = vmatpush1.bf16.msra.mxu0 %v166
    %321 = vmatprep.subr.bf16.mxu0 %v227
    %322 = vmatpush2.bf16.msra.mxu0 %v226
    %323 = vmatprep.subr.bf16.mxu0 %v223
    %324 = vmatpush2.bf16.msra.mxu0 %v222
    %325 = vmatprep.subr.bf16.mxu0 %v219
    %326 = vmatpush2.bf16.msra.mxu0 %v218
    %327 = vmatprep.subr.bf16.mxu0 %v215
    %328 = vmatpush2.bf16.msra.mxu0 %v214
    %329 = vmatprep.subr.bf16.mxu0 %v211
    %330 = vmatpush2.bf16.msra.mxu0 %v210
    %331 = vmatprep.subr.bf16.mxu0 %v207
    %332 = vmatpush2.bf16.msra.mxu0 %v206
    %333 = vmatprep.subr.bf16.mxu0 %v203
    %334 = vmatpush2.bf16.msra.mxu0 %v202
    %335 = vmatprep.subr.bf16.mxu0 %v199
    %336 = vmatpush2.bf16.msra.mxu0 %v198
    %337 = vmatprep.mubr.bf16.mxu0 %v245
    %338 = vmatmul.mubr.bf16.gmra.mxu0 %v244
    %v339 = vpop.f32.mrf.mxu0
    %v340 = vadd.f32 0.0, %v339
    %v341 = vpop.f32.mrf.mxu0
    %v342 = vadd.f32 0.0, %v341
    %v343 = vpop.f32.mrf.mxu0
    %v344 = vadd.f32 0.0, %v343
    %v345 = vpop.f32.mrf.mxu0
    %v346 = vadd.f32 0.0, %v345
    %347 = vmatprep.mubr.bf16.mxu0 %v247
    %348 = vmatmul.mubr.bf16.gmra.mxu0 %v246
    %v349 = vpop.f32.mrf.mxu0
    %v350 = vadd.f32 0.0, %v349
    %v351 = vpop.f32.mrf.mxu0
    %v352 = vadd.f32 0.0, %v351
    %v353 = vpop.f32.mrf.mxu0
    %v354 = vadd.f32 0.0, %v353
    %v355 = vpop.f32.mrf.mxu0
    %v356 = vadd.f32 0.0, %v355
    %357 = vdwg.mxu0
    %v358 = vld [vmem:[%s3] sm:$0xf]
    %v360 = vlaneseq
    %v361 = vshrl.u32 %v360, 7
    %v362 = vsub.s32 0, %v361
    %v363 = vrot.slane %v358, %v362
    %v364 = vlaneseq
    %v365 = vshrl.u32 %v364, 7
    %v366 = vsub.s32 1, %v365
    %v367 = vrot.slane %v358, %v366
    %v368 = vlaneseq
    %v369 = vshrl.u32 %v368, 7
    %v370 = vsub.s32 2, %v369
    %v371 = vrot.slane %v358, %v370
    %v372 = vlaneseq
    %v373 = vshrl.u32 %v372, 7
    %v374 = vsub.s32 3, %v373
    %v375 = vrot.slane %v358, %v374
    %v380 = vmul.f32 %v287, %v363
    %v381 = vmul.f32 %v289, %v367
    %v382 = vmul.f32 %v340, %v371
    %v383 = vmul.f32 %v342, %v375
    %v384 = vmul.f32 %v291, %v363
    %v385 = vmul.f32 %v293, %v367
    %v386 = vmul.f32 %v344, %v371
    %v387 = vmul.f32 %v346, %v375
    %v388 = vmul.f32 %v297, %v363
    %v389 = vmul.f32 %v299, %v367
    %v390 = vmul.f32 %v350, %v371
    %v391 = vmul.f32 %v352, %v375
    %v392 = vmul.f32 %v301, %v363
    %v393 = vmul.f32 %v303, %v367
    %v394 = vmul.f32 %v354, %v371
    %v395 = vmul.f32 %v356, %v375
    %v396 = vpack.c.bf16 %v384, %v380
    %v397 = vpack.c.bf16 %v385, %v381
    %v398 = vpack.c.bf16 %v386, %v382
    %v399 = vpack.c.bf16 %v387, %v383
    %v400 = vpack.c.bf16 %v392, %v388
    %v401 = vpack.c.bf16 %v393, %v389
    %v402 = vpack.c.bf16 %v394, %v390
    %v403 = vpack.c.bf16 %v395, %v391
    %v412 = vunpack.c.l.b16 %v396
    %v413 = vunpack.c.l.b16 %v397
    %v414 = vunpack.c.l.b16 %v398
    %v415 = vunpack.c.l.b16 %v399
    %v416 = vunpack.c.h.b16 %v396
    %v417 = vunpack.c.h.b16 %v397
    %v418 = vunpack.c.h.b16 %v398
    %v419 = vunpack.c.h.b16 %v399
    %v420 = vunpack.c.l.b16 %v400
    %v421 = vunpack.c.l.b16 %v401
    %v422 = vunpack.c.l.b16 %v402
    %v423 = vunpack.c.l.b16 %v403
    %v424 = vunpack.c.h.b16 %v400
    %v425 = vunpack.c.h.b16 %v401
    %v426 = vunpack.c.h.b16 %v402
    %v427 = vunpack.c.h.b16 %v403
    %v428 = vpack.c.b16 %v413, %v412
    %v429 = vpack.c.b16 %v415, %v414
    %v430 = vpack.c.b16 %v417, %v416
    %v431 = vpack.c.b16 %v419, %v418
    %v432 = vpack.c.b16 %v421, %v420
    %v433 = vpack.c.b16 %v423, %v422
    %v434 = vpack.c.b16 %v425, %v424
    %v435 = vpack.c.b16 %v427, %v426
    %444 = vst [vmem:[#allocation3] sm:$0xff] %v428
    %445 = vst [vmem:[#allocation3 + $0x8] sm:$0xff] %v429
    %446 = vst [vmem:[#allocation3 + $0x10] sm:$0xff] %v430
    %447 = vst [vmem:[#allocation3 + $0x18] sm:$0xff] %v431
    %448 = vst [vmem:[#allocation3 + $0x20] sm:$0xff] %v432
    %449 = vst [vmem:[#allocation3 + $0x28] sm:$0xff] %v433
    %450 = vst [vmem:[#allocation3 + $0x30] sm:$0xff] %v434
    %451 = vst [vmem:[#allocation3 + $0x38] sm:$0xff] %v435
    // Predicated region
    $region22: #{exl2_forward.21} parent=1 // pred_check
      _
    $region23: #{exl2_forward.21} parent=1 // pred_check_branch
      %453 = sbr.rel (0) target = $region25
    $region24: #{exl2_forward.21} parent=1 // pred_region
      %s455 = ssub.s32 1024, 1024
      %456 = vsyncadd [#allocation4], %s455
      %s457 = sshll.u32 [#allocation3], 4
      %s458 = int_to_ptr.vmem [resolvable:$true] %s457
      %463 = dma.vmem_to_hbm [thread:$0]  %s458, 1024, %s4, [#allocation4], 256, 256, 16
    $region25: #{exl2_forward.21} parent=1 // pred_fallthru
      _
    // Predicated region
    $region26: #{exl2_forward.21} parent=1 // pred_check
      _
    $region27: #{exl2_forward.21} parent=1 // pred_check_branch
      %465 = sbr.rel (0) target = $region29
    $region28: #{exl2_forward.21} parent=1 // pred_region
      %466 = dma.done [#allocation4], 1024
    $region29: #{exl2_forward.21} parent=1 // pred_fallthru
      _
    %467 = vsyncpa [#allocation4], 1

</llo_original>
